<compile_context>
chip_gen: v7x
topology: tpu7x:2x2x1
jax: 0.10.0
libtpu: 0.0.40
codegen_flags: <defaults>
</compile_context>

<pallas_src>
import functools

import jax
import jax.numpy as jnp
from jax.experimental import pallas as pl
from jax.experimental.pallas import tpu as pltpu

N_EMBD = 64
N_HEAD = 8
HEAD_SIZE = N_EMBD // N_HEAD
LN_EPS = 1e-5
ATTN_SCALE = float(N_EMBD) ** (-0.5)   # PyTorch Head scales by C**-0.5 (C = n_embd)


def _layernorm(x, gamma, beta):
    x = x.astype(jnp.float32)
    mu = jnp.mean(x, axis=-1, keepdims=True)
    var = jnp.mean((x - mu) ** 2, axis=-1, keepdims=True)
    return (x - mu) * jax.lax.rsqrt(var + LN_EPS) * gamma + beta


def block_kernel(
    x_ref,                         # (Mb, C)   f32 activations, Mb = Bb*T rows
    wqkv_ref,                      # (C, 3C)   bf16 fused q|k|v weight (scale folded into q)
    wprojh_ref,                    # (H, hs, C) bf16 per-head projection weight
    bproj_ref,                     # (1, C)    f32
    g1_ref, b1_ref,                # (1, C)    f32
    g2_ref, b2_ref,                # (1, C)    f32
    w1_ref, bb1_ref,               # (C, 4C) bf16, (1, 4C) f32
    w2_ref, bb2_ref,               # (4C, C) bf16, (1, C)  f32
    o_ref,                         # (Mb, C)   f32
    *, batch_block, seq_len,
):
    C, H, hs = N_EMBD, N_HEAD, HEAD_SIZE
    Bb, T = batch_block, seq_len
    Mb = Bb * T

    x = x_ref[...].astype(jnp.float32)                         # (Mb, C)

    # ---- self-attention branch: sa(ln1(x)) ----
    xn = _layernorm(x, g1_ref[...], b1_ref[...])
    # Fused QKV: one (Mb,64)x(64,192) MXU push, bf16 operands, f32 accumulate.
    # The C**-0.5 attention scale is already folded into the q columns.
    qkv = jnp.dot(xn.astype(jnp.bfloat16), wqkv_ref[...],
                  preferred_element_type=jnp.float32)           # (Mb, 3C)
    qkv = qkv.astype(jnp.bfloat16)                              # single cast, then slice

    # Stack heads on the leading (major, untiled) batch axis: per-head 8-lane
    # column slices + axis-0 concat only (no transposes / minor-dim concats).
    def heads(col0):
        return jnp.concatenate(
            [qkv[:, col0 + h * hs: col0 + (h + 1) * hs].reshape(Bb, T, hs)
             for h in range(H)],
            axis=0)                                             # (H*Bb, T, hs)

    q_bh = heads(0)
    k_bh = heads(C)
    v_bh = heads(2 * C)

    # One scores einsum / softmax / ctx einsum for all heads (batch = H*Bb).
    s = jnp.einsum('bqd,bkd->bqk', q_bh, k_bh,
                   preferred_element_type=jnp.float32)          # (H*Bb, T, T)
    m = jnp.max(s, axis=-1, keepdims=True)
    e = jnp.exp(s - m)
    p = e * pl.reciprocal(jnp.sum(e, axis=-1, keepdims=True), approx=True)
    ctx = jnp.einsum('bqk,bkd->bqd', p.astype(jnp.bfloat16), v_bh,
                     preferred_element_type=jnp.float32)        # (H*Bb, T, hs)

    # Output projection, head-batched: (H, Mb, hs) x (H, hs, C) -> (H, Mb, C),
    # then a single leading-dim reduce.  ((H*Bb,T)->(H,Bb*T) is a pure
    # major-dim regroup; the lane dim is untouched.)
    ctx_h = ctx.reshape(H, Mb, hs).astype(jnp.bfloat16)
    proj = jnp.einsum('hmd,hdc->hmc', ctx_h, wprojh_ref[...],
                      preferred_element_type=jnp.float32)       # (H, Mb, C)
    sa = jnp.sum(proj, axis=0) + bproj_ref[...]                 # (Mb, C)
    x1 = x + sa                                                 # residual 1 (dropout = id)

    # ---- feed-forward branch: ffwd(ln2(x1)) ----
    xn2 = _layernorm(x1, g2_ref[...], b2_ref[...])
    h1 = jnp.dot(xn2.astype(jnp.bfloat16), w1_ref[...],
                 preferred_element_type=jnp.float32) + bb1_ref[...]
    h1 = jnp.maximum(h1, 0.0)                                   # ReLU
    ff = jnp.dot(h1.astype(jnp.bfloat16), w2_ref[...],
                 preferred_element_type=jnp.float32) + bb2_ref[...]

    # C=64 (<128 lanes) -> masked stores; at this width an in-kernel 64<->128
    # relayout would cost more than it saves, so keep the natural layout.
    o_ref[...] = (x1 + ff).astype(o_ref.dtype)                  # residual 2 (dropout = id)


def _default_batch_block(B, T, max_rows=4096, min_split_rows=512):
    """Rows per grid step = Bb*T.  Prefer ONE grid step (per-step overhead is
    ~0.35us and dominates this tiny model); only tile when (a) the per-step
    row count would exceed max_rows, or (b) a 2-way split (for a 2-TC chip)
    still leaves >= min_split_rows sublane-aligned rows per step."""
    T = max(int(T), 1)
    bb = B
    if B * T > max_rows:
        bb = max(1, max_rows // T)
    elif B % 2 == 0 and (B // 2) * T >= min_split_rows:
        bb = B // 2
    # Tiling is only legal/useful if bb divides B and keeps each step's row
    # count a multiple of 8 (sublane tile); otherwise fall back to one step.
    while bb > 1 and bb < B and (B % bb or (bb * T) % 8):
        bb -= 1
    if bb < B and (B % bb or (bb * T) % 8):
        bb = B
    return max(bb, 1)


def _vmem_limit_bytes(rows):
    """Raise the scoped-VMEM cap when the tile is big (v5e default is only
    16 MiB); clamp to 48 MiB so it stays below v7x's 64 MiB physical VMEM."""
    C = N_EMBD
    weights = 2 * 2 * (3 * C * C + C * C + 4 * C * C + 4 * C * C)   # bf16, double-buffered
    act = 2 * 2 * rows * C * 4                                      # in/out f32, double-buffered
    interm = rows * (3 * C + 4 * C + 6 * C) * 4                     # qkv + mlp hidden + temps
    est = 2 * (weights + act + interm) + (8 << 20)                  # 2x headroom + slack
    return max(32 << 20, min(est, 48 << 20))


def pack_params(params):
    """One-time weight packing (hoisted out of the forward): fused QKV with
    the attention scale folded into the q columns, per-head projection weight,
    bf16 MXU operands.  Biases / LayerNorm params stay f32."""
    wqkv = jnp.concatenate(
        [params["wq"] * ATTN_SCALE, params["wk"], params["wv"]],
        axis=1).astype(jnp.bfloat16)                                 # (C, 3C)
    return {
        "wqkv": wqkv,
        "wprojh": params["wproj"].reshape(N_HEAD, HEAD_SIZE, N_EMBD)
                                  .astype(jnp.bfloat16),             # (H, hs, C)
        "bproj": params["bproj"].astype(jnp.float32),
        "g1": params["g1"], "b1": params["b1"],
        "g2": params["g2"], "b2": params["b2"],
        "w1": params["w1"].astype(jnp.bfloat16), "bb1": params["bb1"],
        "w2": params["w2"].astype(jnp.bfloat16), "bb2": params["bb2"],
    }


def transformer_block(x, packed, batch_block=None):
    """x: (B, T, C) float32, packed = pack_params(...)  ->  (B, T, C) float32."""
    B, T, C = x.shape
    assert C == N_EMBD
    Bb = _default_batch_block(B, T) if batch_block is None else batch_block
    assert B % Bb == 0
    Mb = Bb * T

    x2 = x.reshape(B * T, C)

    weight_args = [
        packed["wqkv"], packed["wprojh"], packed["bproj"],
        packed["g1"], packed["b1"], packed["g2"], packed["b2"],
        packed["w1"], packed["bb1"], packed["w2"], packed["bb2"],
    ]
    # Weights stay VMEM-resident across the whole grid (constant index maps).
    weight_specs = [
        pl.BlockSpec(w.shape, lambda i, nd=w.ndim: (0,) * nd) for w in weight_args
    ]

    grid_spec = pltpu.PrefetchScalarGridSpec(
        num_scalar_prefetch=0,
        grid=(B // Bb,),
        in_specs=[pl.BlockSpec((Mb, C), lambda i: (i, 0))] + weight_specs,
        out_specs=pl.BlockSpec((Mb, C), lambda i: (i, 0)),
        scratch_shapes=[],
    )

    out2 = pl.pallas_call(
        functools.partial(block_kernel, batch_block=Bb, seq_len=T),
        out_shape=jax.ShapeDtypeStruct((B * T, C), jnp.float32),
        grid_spec=grid_spec,
        compiler_params=pltpu.CompilerParams(
            dimension_semantics=("parallel",),
            vmem_limit_bytes=_vmem_limit_bytes(Mb)),
    )(x2, *weight_args)
    return out2.reshape(B, T, C)


def init_params(key):
    ks = jax.random.split(key, 9)
    C = N_EMBD
    scale = 0.1

    def rnd(k, shape):
        return (scale * jax.random.normal(k, shape)).astype(jnp.float32)

    return {
        # per-head K/Q/V weights concatenated along the output dim (head order)
        "wq": rnd(ks[0], (C, C)),
        "wk": rnd(ks[1], (C, C)),
        "wv": rnd(ks[2], (C, C)),
        "wproj": rnd(ks[3], (C, C)),
        "bproj": rnd(ks[4], (1, C)),
        # LayerNorm params (PyTorch default init: gamma=1, beta=0)
        "g1": jnp.ones((1, C), jnp.float32),
        "b1": jnp.zeros((1, C), jnp.float32),
        "g2": jnp.ones((1, C), jnp.float32),
        "b2": jnp.zeros((1, C), jnp.float32),
        # FeedForward
        "w1": rnd(ks[5], (C, 4 * C)),
        "bb1": rnd(ks[6], (1, 4 * C)),
        "w2": rnd(ks[7], (4 * C, C)),
        "bb2": rnd(ks[8], (1, C)),
    }


def reference_block(x, p, mxu_dtype=jnp.float32):
    """Pure-JAX reference (same math as the PyTorch Block in eval mode).
    `mxu_dtype=bf16` mirrors the kernel's MXU operand casts (f32 accumulation
    everywhere); `mxu_dtype=f32` is the exact module math."""
    B, T, C = x.shape
    H, hs = N_HEAD, HEAD_SIZE
    cast = lambda a: a.astype(mxu_dtype)

    xn = _layernorm(x, p["g1"], p["b1"])
    # Scale folded into wq before the cast, exactly like pack_params.
    wqkv = jnp.concatenate([p["wq"] * ATTN_SCALE, p["wk"], p["wv"]], axis=1)
    qkv = jnp.einsum("btc,cd->btd", cast(xn), cast(wqkv),
                     preferred_element_type=jnp.float32)              # (B,T,3C)
    qkv = cast(qkv)
    q = qkv[..., :C].reshape(B, T, H, hs)
    k = qkv[..., C:2 * C].reshape(B, T, H, hs)
    v = qkv[..., 2 * C:].reshape(B, T, H, hs)
    s = jnp.einsum("bqhd,bkhd->bhqk", q, k, preferred_element_type=jnp.float32)
    m = jnp.max(s, axis=-1, keepdims=True)
    e = jnp.exp(s - m)
    w = e / jnp.sum(e, axis=-1, keepdims=True)
    ctx = jnp.einsum("bhqk,bkhd->bqhd", cast(w), v,
                     preferred_element_type=jnp.float32).reshape(B, T, C)
    sa = jnp.einsum("btc,cd->btd", cast(ctx), cast(p["wproj"]),
                    preferred_element_type=jnp.float32) + p["bproj"]
    x1 = x + sa
    xn2 = _layernorm(x1, p["g2"], p["b2"])
    h1 = jnp.einsum("btc,cd->btd", cast(xn2), cast(p["w1"]),
                    preferred_element_type=jnp.float32) + p["bb1"]
    h1 = jnp.maximum(h1, 0.0)
    ff = jnp.einsum("btc,cd->btd", cast(h1), cast(p["w2"]),
                    preferred_element_type=jnp.float32) + p["bb2"]
    return x1 + ff


if __name__ == "__main__":
    key = jax.random.PRNGKey(0)
    k_x, k_p = jax.random.split(key)

    B, T = 2, 8
    x = jax.random.normal(k_x, (B, T, N_EMBD), dtype=jnp.float32)
    params = init_params(k_p)
    packed = pack_params(params)          # one-time packing, hoisted out of the forward

    out = transformer_block(x, packed)
    out = jax.block_until_ready(out)
    assert out.shape == (B, T, N_EMBD)

    # Tight check vs a reference that reproduces the kernel's bf16 MXU operands
    # (f32 accumulation in both) -> proves the kernel math is right.  The only
    # extra kernel-side approximation is the EUP approx reciprocal (~1e-4 rel).
    ref_bf16 = reference_block(x, params, mxu_dtype=jnp.bfloat16)
    err_bf16 = float(jnp.max(jnp.abs(out - ref_bf16)))
    assert jnp.allclose(out, ref_bf16, atol=1e-2, rtol=1e-2), err_bf16

    # Loose sanity check vs the exact f32 module math (difference is bf16
    # operand quantization on the matmuls -- accepted numerics change).
    ref_f32 = reference_block(x, params, mxu_dtype=jnp.float32)
    err_f32 = float(jnp.max(jnp.abs(out - ref_f32)))
    assert err_f32 < 0.25, err_f32

    print("KERNEL_OK")
</pallas_src>

<mosaic_0001>
module attributes {stable_mosaic.version = 11 : i64} {
  func.func @block_kernel(%arg0: i32, %arg1: memref<16x64xf32, #tpu.memory_space<vmem>>, %arg2: memref<64x192xbf16, #tpu.memory_space<vmem>>, %arg3: memref<8x8x64xbf16, #tpu.memory_space<vmem>>, %arg4: memref<1x64xf32, #tpu.memory_space<vmem>>, %arg5: memref<1x64xf32, #tpu.memory_space<vmem>>, %arg6: memref<1x64xf32, #tpu.memory_space<vmem>>, %arg7: memref<1x64xf32, #tpu.memory_space<vmem>>, %arg8: memref<1x64xf32, #tpu.memory_space<vmem>>, %arg9: memref<64x256xbf16, #tpu.memory_space<vmem>>, %arg10: memref<1x256xf32, #tpu.memory_space<vmem>>, %arg11: memref<256x64xbf16, #tpu.memory_space<vmem>>, %arg12: memref<1x64xf32, #tpu.memory_space<vmem>>, %arg13: memref<16x64xf32, #tpu.memory_space<vmem>>) attributes {dimension_semantics = [#tpu.dimension_semantics<parallel>], iteration_bounds = array<i64: 1>, scalar_prefetch = 0 : i64, scratch_operands = 0 : i64, tpu.core_type = #tpu.core_type<tc>, window_params = [{transform_indices = @transform_0, window_bounds = array<i64: 16, 64>}, {pipeline_mode = #tpu.pipeline_mode<synchronous>, transform_indices = @transform_1, window_bounds = array<i64: 64, 192>}, {pipeline_mode = #tpu.pipeline_mode<synchronous>, transform_indices = @transform_2, window_bounds = array<i64: 8, 8, 64>}, {pipeline_mode = #tpu.pipeline_mode<synchronous>, transform_indices = @transform_3, window_bounds = array<i64: 1, 64>}, {pipeline_mode = #tpu.pipeline_mode<synchronous>, transform_indices = @transform_4, window_bounds = array<i64: 1, 64>}, {pipeline_mode = #tpu.pipeline_mode<synchronous>, transform_indices = @transform_5, window_bounds = array<i64: 1, 64>}, {pipeline_mode = #tpu.pipeline_mode<synchronous>, transform_indices = @transform_6, window_bounds = array<i64: 1, 64>}, {pipeline_mode = #tpu.pipeline_mode<synchronous>, transform_indices = @transform_7, window_bounds = array<i64: 1, 64>}, {pipeline_mode = #tpu.pipeline_mode<synchronous>, transform_indices = @transform_8, window_bounds = array<i64: 64, 256>}, {pipeline_mode = #tpu.pipeline_mode<synchronous>, transform_indices = @transform_9, window_bounds = array<i64: 1, 256>}, {pipeline_mode = #tpu.pipeline_mode<synchronous>, transform_indices = @transform_10, window_bounds = array<i64: 256, 64>}, {pipeline_mode = #tpu.pipeline_mode<synchronous>, transform_indices = @transform_11, window_bounds = array<i64: 1, 64>}, {transform_indices = @transform_12, window_bounds = array<i64: 16, 64>}]} {
    %c0 = arith.constant 0 : index
    %c0_0 = arith.constant 0 : index
    %0 = vector.load %arg1[%c0, %c0_0] : memref<16x64xf32, #tpu.memory_space<vmem>>, vector<16x64xf32>
    %c0_1 = arith.constant 0 : index
    %c0_2 = arith.constant 0 : index
    %1 = vector.load %arg5[%c0_1, %c0_2] : memref<1x64xf32, #tpu.memory_space<vmem>>, vector<1x64xf32>
    %c0_3 = arith.constant 0 : index
    %c0_4 = arith.constant 0 : index
    %2 = vector.load %arg6[%c0_3, %c0_4] : memref<1x64xf32, #tpu.memory_space<vmem>>, vector<1x64xf32>
    %cst = arith.constant dense<0.000000e+00> : vector<16xf32>
    %3 = vector.multi_reduction <add>, %0, %cst [1] : vector<16x64xf32> to vector<16xf32>
    %4 = vector.shape_cast %3 : vector<16xf32> to vector<16x1xf32>
    %cst_5 = arith.constant 6.400000e+01 : f32
    %5 = vector.broadcast %cst_5 : f32 to vector<16x1xf32>
    %6 = arith.divf %4, %5 : vector<16x1xf32>
    %7 = vector.broadcast %6 : vector<16x1xf32> to vector<16x64xf32>
    %8 = arith.subf %0, %7 : vector<16x64xf32>
    %9 = arith.mulf %8, %8 : vector<16x64xf32>
    %cst_6 = arith.constant dense<0.000000e+00> : vector<16xf32>
    %10 = vector.multi_reduction <add>, %9, %cst_6 [1] : vector<16x64xf32> to vector<16xf32>
    %11 = vector.shape_cast %10 : vector<16xf32> to vector<16x1xf32>
    %cst_7 = arith.constant 6.400000e+01 : f32
    %12 = vector.broadcast %cst_7 : f32 to vector<16x1xf32>
    %13 = arith.divf %11, %12 : vector<16x1xf32>
    %14 = vector.broadcast %6 : vector<16x1xf32> to vector<16x64xf32>
    %15 = arith.subf %0, %14 : vector<16x64xf32>
    %cst_8 = arith.constant 9.99999974E-6 : f32
    %16 = vector.broadcast %cst_8 : f32 to vector<16x1xf32>
    %17 = arith.addf %13, %16 : vector<16x1xf32>
    %18 = math.rsqrt %17 : vector<16x1xf32>
    %19 = vector.broadcast %18 : vector<16x1xf32> to vector<16x64xf32>
    %20 = arith.mulf %15, %19 : vector<16x64xf32>
    %21 = vector.broadcast %1 : vector<1x64xf32> to vector<16x64xf32>
    %22 = arith.mulf %20, %21 : vector<16x64xf32>
    %23 = vector.broadcast %2 : vector<1x64xf32> to vector<16x64xf32>
    %24 = arith.addf %22, %23 : vector<16x64xf32>
    %25 = arith.truncf %24 : vector<16x64xf32> to vector<16x64xbf16>
    %c0_9 = arith.constant 0 : index
    %c0_10 = arith.constant 0 : index
    %26 = vector.load %arg2[%c0_9, %c0_10] : memref<64x192xbf16, #tpu.memory_space<vmem>>, vector<64x192xbf16>
    %cst_11 = arith.constant dense<0.000000e+00> : vector<16x192xf32>
    %27 = tpu.matmul %25, %26, %cst_11 {dimension_numbers = #tpu.dot_dimension_numbers<[1], [0], [0], [1], [0, 0, 1, 1], [], []>} : vector<16x64xbf16>, vector<64x192xbf16>, vector<16x192xf32> -> vector<16x192xf32>
    %28 = arith.truncf %27 : vector<16x192xf32> to vector<16x192xbf16>
    %29 = vector.extract_strided_slice %28 {offsets = [0, 0], sizes = [16, 8], strides = [1, 1]} : vector<16x192xbf16> to vector<16x8xbf16>
    %30 = vector.shape_cast %29 : vector<16x8xbf16> to vector<2x8x8xbf16>
    %31 = vector.extract_strided_slice %28 {offsets = [0, 8], sizes = [16, 8], strides = [1, 1]} : vector<16x192xbf16> to vector<16x8xbf16>
    %32 = vector.shape_cast %31 : vector<16x8xbf16> to vector<2x8x8xbf16>
    %33 = vector.extract_strided_slice %28 {offsets = [0, 16], sizes = [16, 8], strides = [1, 1]} : vector<16x192xbf16> to vector<16x8xbf16>
    %34 = vector.shape_cast %33 : vector<16x8xbf16> to vector<2x8x8xbf16>
    %35 = vector.extract_strided_slice %28 {offsets = [0, 24], sizes = [16, 8], strides = [1, 1]} : vector<16x192xbf16> to vector<16x8xbf16>
    %36 = vector.shape_cast %35 : vector<16x8xbf16> to vector<2x8x8xbf16>
    %37 = vector.extract_strided_slice %28 {offsets = [0, 32], sizes = [16, 8], strides = [1, 1]} : vector<16x192xbf16> to vector<16x8xbf16>
    %38 = vector.shape_cast %37 : vector<16x8xbf16> to vector<2x8x8xbf16>
    %39 = vector.extract_strided_slice %28 {offsets = [0, 40], sizes = [16, 8], strides = [1, 1]} : vector<16x192xbf16> to vector<16x8xbf16>
    %40 = vector.shape_cast %39 : vector<16x8xbf16> to vector<2x8x8xbf16>
    %41 = vector.extract_strided_slice %28 {offsets = [0, 48], sizes = [16, 8], strides = [1, 1]} : vector<16x192xbf16> to vector<16x8xbf16>
    %42 = vector.shape_cast %41 : vector<16x8xbf16> to vector<2x8x8xbf16>
    %43 = vector.extract_strided_slice %28 {offsets = [0, 56], sizes = [16, 8], strides = [1, 1]} : vector<16x192xbf16> to vector<16x8xbf16>
    %44 = vector.shape_cast %43 : vector<16x8xbf16> to vector<2x8x8xbf16>
    %45 = tpu.concatenate %30, %32, %34, %36, %38, %40, %42, %44 in 0 : vector<2x8x8xbf16>, vector<2x8x8xbf16>, vector<2x8x8xbf16>, vector<2x8x8xbf16>, vector<2x8x8xbf16>, vector<2x8x8xbf16>, vector<2x8x8xbf16>, vector<2x8x8xbf16> -> vector<16x8x8xbf16>
    %46 = vector.extract_strided_slice %28 {offsets = [0, 64], sizes = [16, 8], strides = [1, 1]} : vector<16x192xbf16> to vector<16x8xbf16>
    %47 = vector.shape_cast %46 : vector<16x8xbf16> to vector<2x8x8xbf16>
    %48 = vector.extract_strided_slice %28 {offsets = [0, 72], sizes = [16, 8], strides = [1, 1]} : vector<16x192xbf16> to vector<16x8xbf16>
    %49 = vector.shape_cast %48 : vector<16x8xbf16> to vector<2x8x8xbf16>
    %50 = vector.extract_strided_slice %28 {offsets = [0, 80], sizes = [16, 8], strides = [1, 1]} : vector<16x192xbf16> to vector<16x8xbf16>
    %51 = vector.shape_cast %50 : vector<16x8xbf16> to vector<2x8x8xbf16>
    %52 = vector.extract_strided_slice %28 {offsets = [0, 88], sizes = [16, 8], strides = [1, 1]} : vector<16x192xbf16> to vector<16x8xbf16>
    %53 = vector.shape_cast %52 : vector<16x8xbf16> to vector<2x8x8xbf16>
    %54 = vector.extract_strided_slice %28 {offsets = [0, 96], sizes = [16, 8], strides = [1, 1]} : vector<16x192xbf16> to vector<16x8xbf16>
    %55 = vector.shape_cast %54 : vector<16x8xbf16> to vector<2x8x8xbf16>
    %56 = vector.extract_strided_slice %28 {offsets = [0, 104], sizes = [16, 8], strides = [1, 1]} : vector<16x192xbf16> to vector<16x8xbf16>
    %57 = vector.shape_cast %56 : vector<16x8xbf16> to vector<2x8x8xbf16>
    %58 = vector.extract_strided_slice %28 {offsets = [0, 112], sizes = [16, 8], strides = [1, 1]} : vector<16x192xbf16> to vector<16x8xbf16>
    %59 = vector.shape_cast %58 : vector<16x8xbf16> to vector<2x8x8xbf16>
    %60 = vector.extract_strided_slice %28 {offsets = [0, 120], sizes = [16, 8], strides = [1, 1]} : vector<16x192xbf16> to vector<16x8xbf16>
    %61 = vector.shape_cast %60 : vector<16x8xbf16> to vector<2x8x8xbf16>
    %62 = tpu.concatenate %47, %49, %51, %53, %55, %57, %59, %61 in 0 : vector<2x8x8xbf16>, vector<2x8x8xbf16>, vector<2x8x8xbf16>, vector<2x8x8xbf16>, vector<2x8x8xbf16>, vector<2x8x8xbf16>, vector<2x8x8xbf16>, vector<2x8x8xbf16> -> vector<16x8x8xbf16>
    %63 = vector.extract_strided_slice %28 {offsets = [0, 128], sizes = [16, 8], strides = [1, 1]} : vector<16x192xbf16> to vector<16x8xbf16>
    %64 = vector.shape_cast %63 : vector<16x8xbf16> to vector<2x8x8xbf16>
    %65 = vector.extract_strided_slice %28 {offsets = [0, 136], sizes = [16, 8], strides = [1, 1]} : vector<16x192xbf16> to vector<16x8xbf16>
    %66 = vector.shape_cast %65 : vector<16x8xbf16> to vector<2x8x8xbf16>
    %67 = vector.extract_strided_slice %28 {offsets = [0, 144], sizes = [16, 8], strides = [1, 1]} : vector<16x192xbf16> to vector<16x8xbf16>
    %68 = vector.shape_cast %67 : vector<16x8xbf16> to vector<2x8x8xbf16>
    %69 = vector.extract_strided_slice %28 {offsets = [0, 152], sizes = [16, 8], strides = [1, 1]} : vector<16x192xbf16> to vector<16x8xbf16>
    %70 = vector.shape_cast %69 : vector<16x8xbf16> to vector<2x8x8xbf16>
    %71 = vector.extract_strided_slice %28 {offsets = [0, 160], sizes = [16, 8], strides = [1, 1]} : vector<16x192xbf16> to vector<16x8xbf16>
    %72 = vector.shape_cast %71 : vector<16x8xbf16> to vector<2x8x8xbf16>
    %73 = vector.extract_strided_slice %28 {offsets = [0, 168], sizes = [16, 8], strides = [1, 1]} : vector<16x192xbf16> to vector<16x8xbf16>
    %74 = vector.shape_cast %73 : vector<16x8xbf16> to vector<2x8x8xbf16>
    %75 = vector.extract_strided_slice %28 {offsets = [0, 176], sizes = [16, 8], strides = [1, 1]} : vector<16x192xbf16> to vector<16x8xbf16>
    %76 = vector.shape_cast %75 : vector<16x8xbf16> to vector<2x8x8xbf16>
    %77 = vector.extract_strided_slice %28 {offsets = [0, 184], sizes = [16, 8], strides = [1, 1]} : vector<16x192xbf16> to vector<16x8xbf16>
    %78 = vector.shape_cast %77 : vector<16x8xbf16> to vector<2x8x8xbf16>
    %79 = tpu.concatenate %64, %66, %68, %70, %72, %74, %76, %78 in 0 : vector<2x8x8xbf16>, vector<2x8x8xbf16>, vector<2x8x8xbf16>, vector<2x8x8xbf16>, vector<2x8x8xbf16>, vector<2x8x8xbf16>, vector<2x8x8xbf16>, vector<2x8x8xbf16> -> vector<16x8x8xbf16>
    "tpu.trace_start"() <{level = 10 : i32, message = "bqd,bkd->bqk"}> : () -> ()
    %cst_12 = arith.constant dense<0.000000e+00> : vector<16x8x8xf32>
    %80 = tpu.matmul %45, %62, %cst_12 {dimension_numbers = #tpu.dot_dimension_numbers<[2], [2], [1], [1], [0, 0, 0, 1, 1, 1], [0], [0]>} : vector<16x8x8xbf16>, vector<16x8x8xbf16>, vector<16x8x8xf32> -> vector<16x8x8xf32>
    "tpu.trace_stop"() : () -> ()
    %cst_13 = arith.constant dense<0xFF800000> : vector<16x8xf32>
    %81 = vector.multi_reduction <maximumf>, %80, %cst_13 [2] : vector<16x8x8xf32> to vector<16x8xf32>
    %82 = vector.shape_cast %81 : vector<16x8xf32> to vector<16x8x1xf32>
    %83 = vector.broadcast %82 : vector<16x8x1xf32> to vector<16x8x8xf32>
    %84 = arith.subf %80, %83 : vector<16x8x8xf32>
    %85 = math.exp %84 : vector<16x8x8xf32>
    %cst_14 = arith.constant dense<0.000000e+00> : vector<16x8xf32>
    %86 = vector.multi_reduction <add>, %85, %cst_14 [2] : vector<16x8x8xf32> to vector<16x8xf32>
    %87 = vector.shape_cast %86 : vector<16x8xf32> to vector<16x8x1xf32>
    %88 = tpu.reciprocal %87 {approx = true} : vector<16x8x1xf32> -> vector<16x8x1xf32>
    %89 = vector.broadcast %88 : vector<16x8x1xf32> to vector<16x8x8xf32>
    %90 = arith.mulf %85, %89 : vector<16x8x8xf32>
    %91 = arith.truncf %90 : vector<16x8x8xf32> to vector<16x8x8xbf16>
    "tpu.trace_start"() <{level = 10 : i32, message = "bqk,bkd->bqd"}> : () -> ()
    %cst_15 = arith.constant dense<0.000000e+00> : vector<16x8x8xf32>
    %92 = tpu.matmul %91, %79, %cst_15 {dimension_numbers = #tpu.dot_dimension_numbers<[2], [1], [1], [2], [0, 0, 0, 1, 1, 2], [0], [0]>} : vector<16x8x8xbf16>, vector<16x8x8xbf16>, vector<16x8x8xf32> -> vector<16x8x8xf32>
    "tpu.trace_stop"() : () -> ()
    %93 = vector.shape_cast %92 : vector<16x8x8xf32> to vector<8x16x8xf32>
    %94 = arith.truncf %93 : vector<8x16x8xf32> to vector<8x16x8xbf16>
    %c0_16 = arith.constant 0 : index
    %c0_17 = arith.constant 0 : index
    %c0_18 = arith.constant 0 : index
    %95 = vector.load %arg3[%c0_16, %c0_17, %c0_18] : memref<8x8x64xbf16, #tpu.memory_space<vmem>>, vector<8x8x64xbf16>
    "tpu.trace_start"() <{level = 10 : i32, message = "hmd,hdc->hmc"}> : () -> ()
    %cst_19 = arith.constant dense<0.000000e+00> : vector<8x16x64xf32>
    %96 = tpu.matmul %94, %95, %cst_19 {dimension_numbers = #tpu.dot_dimension_numbers<[2], [1], [1], [2], [0, 0, 0, 1, 1, 2], [0], [0]>} : vector<8x16x8xbf16>, vector<8x8x64xbf16>, vector<8x16x64xf32> -> vector<8x16x64xf32>
    "tpu.trace_stop"() : () -> ()
    %cst_20 = arith.constant dense<0.000000e+00> : vector<16x64xf32>
    %97 = vector.multi_reduction <add>, %96, %cst_20 [0] : vector<8x16x64xf32> to vector<16x64xf32>
    %c0_21 = arith.constant 0 : index
    %c0_22 = arith.constant 0 : index
    %98 = vector.load %arg4[%c0_21, %c0_22] : memref<1x64xf32, #tpu.memory_space<vmem>>, vector<1x64xf32>
    %99 = vector.broadcast %98 : vector<1x64xf32> to vector<16x64xf32>
    %100 = arith.addf %97, %99 : vector<16x64xf32>
    %101 = arith.addf %0, %100 : vector<16x64xf32>
    %c0_23 = arith.constant 0 : index
    %c0_24 = arith.constant 0 : index
    %102 = vector.load %arg7[%c0_23, %c0_24] : memref<1x64xf32, #tpu.memory_space<vmem>>, vector<1x64xf32>
    %c0_25 = arith.constant 0 : index
    %c0_26 = arith.constant 0 : index
    %103 = vector.load %arg8[%c0_25, %c0_26] : memref<1x64xf32, #tpu.memory_space<vmem>>, vector<1x64xf32>
    %cst_27 = arith.constant dense<0.000000e+00> : vector<16xf32>
    %104 = vector.multi_reduction <add>, %101, %cst_27 [1] : vector<16x64xf32> to vector<16xf32>
    %105 = vector.shape_cast %104 : vector<16xf32> to vector<16x1xf32>
    %cst_28 = arith.constant 6.400000e+01 : f32
    %106 = vector.broadcast %cst_28 : f32 to vector<16x1xf32>
    %107 = arith.divf %105, %106 : vector<16x1xf32>
    %108 = vector.broadcast %107 : vector<16x1xf32> to vector<16x64xf32>
    %109 = arith.subf %101, %108 : vector<16x64xf32>
    %110 = arith.mulf %109, %109 : vector<16x64xf32>
    %cst_29 = arith.constant dense<0.000000e+00> : vector<16xf32>
    %111 = vector.multi_reduction <add>, %110, %cst_29 [1] : vector<16x64xf32> to vector<16xf32>
    %112 = vector.shape_cast %111 : vector<16xf32> to vector<16x1xf32>
    %cst_30 = arith.constant 6.400000e+01 : f32
    %113 = vector.broadcast %cst_30 : f32 to vector<16x1xf32>
    %114 = arith.divf %112, %113 : vector<16x1xf32>
    %115 = vector.broadcast %107 : vector<16x1xf32> to vector<16x64xf32>
    %116 = arith.subf %101, %115 : vector<16x64xf32>
    %cst_31 = arith.constant 9.99999974E-6 : f32
    %117 = vector.broadcast %cst_31 : f32 to vector<16x1xf32>
    %118 = arith.addf %114, %117 : vector<16x1xf32>
    %119 = math.rsqrt %118 : vector<16x1xf32>
    %120 = vector.broadcast %119 : vector<16x1xf32> to vector<16x64xf32>
    %121 = arith.mulf %116, %120 : vector<16x64xf32>
    %122 = vector.broadcast %102 : vector<1x64xf32> to vector<16x64xf32>
    %123 = arith.mulf %121, %122 : vector<16x64xf32>
    %124 = vector.broadcast %103 : vector<1x64xf32> to vector<16x64xf32>
    %125 = arith.addf %123, %124 : vector<16x64xf32>
    %126 = arith.truncf %125 : vector<16x64xf32> to vector<16x64xbf16>
    %c0_32 = arith.constant 0 : index
    %c0_33 = arith.constant 0 : index
    %127 = vector.load %arg9[%c0_32, %c0_33] : memref<64x256xbf16, #tpu.memory_space<vmem>>, vector<64x256xbf16>
    %cst_34 = arith.constant dense<0.000000e+00> : vector<16x256xf32>
    %128 = tpu.matmul %126, %127, %cst_34 {dimension_numbers = #tpu.dot_dimension_numbers<[1], [0], [0], [1], [0, 0, 1, 1], [], []>} : vector<16x64xbf16>, vector<64x256xbf16>, vector<16x256xf32> -> vector<16x256xf32>
    %c0_35 = arith.constant 0 : index
    %c0_36 = arith.constant 0 : index
    %129 = vector.load %arg10[%c0_35, %c0_36] : memref<1x256xf32, #tpu.memory_space<vmem>>, vector<1x256xf32>
    %130 = vector.broadcast %129 : vector<1x256xf32> to vector<16x256xf32>
    %131 = arith.addf %128, %130 : vector<16x256xf32>
    %cst_37 = arith.constant 0.000000e+00 : f32
    %132 = vector.broadcast %cst_37 : f32 to vector<16x256xf32>
    %133 = arith.maximumf %131, %132 : vector<16x256xf32>
    %134 = arith.truncf %133 : vector<16x256xf32> to vector<16x256xbf16>
    %c0_38 = arith.constant 0 : index
    %c0_39 = arith.constant 0 : index
    %135 = vector.load %arg11[%c0_38, %c0_39] : memref<256x64xbf16, #tpu.memory_space<vmem>>, vector<256x64xbf16>
    %cst_40 = arith.constant dense<0.000000e+00> : vector<16x64xf32>
    %136 = tpu.matmul %134, %135, %cst_40 {dimension_numbers = #tpu.dot_dimension_numbers<[1], [0], [0], [1], [0, 0, 1, 1], [], []>} : vector<16x256xbf16>, vector<256x64xbf16>, vector<16x64xf32> -> vector<16x64xf32>
    %c0_41 = arith.constant 0 : index
    %c0_42 = arith.constant 0 : index
    %137 = vector.load %arg12[%c0_41, %c0_42] : memref<1x64xf32, #tpu.memory_space<vmem>>, vector<1x64xf32>
    %138 = vector.broadcast %137 : vector<1x64xf32> to vector<16x64xf32>
    %139 = arith.addf %136, %138 : vector<16x64xf32>
    %140 = arith.addf %101, %139 : vector<16x64xf32>
    %c0_43 = arith.constant 0 : index
    %c0_44 = arith.constant 0 : index
    %141 = vector.load %arg13[%c0_43, %c0_44] : memref<16x64xf32, #tpu.memory_space<vmem>>, vector<16x64xf32>
    tpu.vector_store %arg13[%c0_43, %c0_44], %140 {strides = array<i32>} : memref<16x64xf32, #tpu.memory_space<vmem>>, vector<16x64xf32>,
    return
  }
  func.func @transform_0(%arg0: i32) -> (i32, i32) {
    %c0_i32 = arith.constant 0 : i32
    %c0_i32_0 = arith.constant 0 : i32
    return %arg0, %c0_i32 : i32, i32
  }
  func.func @transform_1(%arg0: i32) -> (i32, i32) {
    %c0_i32 = arith.constant 0 : i32
    %c0_i32_0 = arith.constant 0 : i32
    %c0_i32_1 = arith.constant 0 : i32
    return %c0_i32, %c0_i32_0 : i32, i32
  }
  func.func @transform_2(%arg0: i32) -> (i32, i32, i32) {
    %c0_i32 = arith.constant 0 : i32
    %c0_i32_0 = arith.constant 0 : i32
    %c0_i32_1 = arith.constant 0 : i32
    %c0_i32_2 = arith.constant 0 : i32
    return %c0_i32, %c0_i32_0, %c0_i32_1 : i32, i32, i32
  }
  func.func @transform_3(%arg0: i32) -> (i32, i32) {
    %c0_i32 = arith.constant 0 : i32
    %c0_i32_0 = arith.constant 0 : i32
    %c0_i32_1 = arith.constant 0 : i32
    return %c0_i32, %c0_i32_0 : i32, i32
  }
  func.func @transform_4(%arg0: i32) -> (i32, i32) {
    %c0_i32 = arith.constant 0 : i32
    %c0_i32_0 = arith.constant 0 : i32
    %c0_i32_1 = arith.constant 0 : i32
    return %c0_i32, %c0_i32_0 : i32, i32
  }
  func.func @transform_5(%arg0: i32) -> (i32, i32) {
    %c0_i32 = arith.constant 0 : i32
    %c0_i32_0 = arith.constant 0 : i32
    %c0_i32_1 = arith.constant 0 : i32
    return %c0_i32, %c0_i32_0 : i32, i32
  }
  func.func @transform_6(%arg0: i32) -> (i32, i32) {
    %c0_i32 = arith.constant 0 : i32
    %c0_i32_0 = arith.constant 0 : i32
    %c0_i32_1 = arith.constant 0 : i32
    return %c0_i32, %c0_i32_0 : i32, i32
  }
  func.func @transform_7(%arg0: i32) -> (i32, i32) {
    %c0_i32 = arith.constant 0 : i32
    %c0_i32_0 = arith.constant 0 : i32
    %c0_i32_1 = arith.constant 0 : i32
    return %c0_i32, %c0_i32_0 : i32, i32
  }
  func.func @transform_8(%arg0: i32) -> (i32, i32) {
    %c0_i32 = arith.constant 0 : i32
    %c0_i32_0 = arith.constant 0 : i32
    %c0_i32_1 = arith.constant 0 : i32
    return %c0_i32, %c0_i32_0 : i32, i32
  }
  func.func @transform_9(%arg0: i32) -> (i32, i32) {
    %c0_i32 = arith.constant 0 : i32
    %c0_i32_0 = arith.constant 0 : i32
    %c0_i32_1 = arith.constant 0 : i32
    return %c0_i32, %c0_i32_0 : i32, i32
  }
  func.func @transform_10(%arg0: i32) -> (i32, i32) {
    %c0_i32 = arith.constant 0 : i32
    %c0_i32_0 = arith.constant 0 : i32
    %c0_i32_1 = arith.constant 0 : i32
    return %c0_i32, %c0_i32_0 : i32, i32
  }
  func.func @transform_11(%arg0: i32) -> (i32, i32) {
    %c0_i32 = arith.constant 0 : i32
    %c0_i32_0 = arith.constant 0 : i32
    %c0_i32_1 = arith.constant 0 : i32
    return %c0_i32, %c0_i32_0 : i32, i32
  }
  func.func @transform_12(%arg0: i32) -> (i32, i32) {
    %c0_i32 = arith.constant 0 : i32
    %c0_i32_0 = arith.constant 0 : i32
    return %arg0, %c0_i32 : i32, i32
  }
}

</mosaic_0001>

<llo_original>
// kernel: tpu_custom_call.1
$region0: #{tpu_custom_call.1}
  #allocation0 [shape = 'u32[]', space=smem, size = 0x4, offset = 0x4, fixed_abs, tag = 'smem constant byte address 0x4 - core index']
  #allocation1 [shape = 'u32[144,128]{1,0:T(1,128)}', space=vmem, size = 0x12000, scoped, tag = 'internal scratch']
  %s0 = inlined_call_operand.vmem [shape: f32[16,64], index: 0, kind: input, shape index: {}]
  %s1 = inlined_call_operand.vmem [shape: bf16[64,192], index: 1, kind: input, shape index: {}]
  %s2 = inlined_call_operand.vmem [shape: bf16[8,8,64], index: 2, kind: input, shape index: {}]
  %s3 = inlined_call_operand.vmem [shape: f32[1,64], index: 3, kind: input, shape index: {}]
  %s4 = inlined_call_operand.vmem [shape: f32[1,64], index: 4, kind: input, shape index: {}]
  %s5 = inlined_call_operand.vmem [shape: f32[1,64], index: 5, kind: input, shape index: {}]
  %s6 = inlined_call_operand.vmem [shape: f32[1,64], index: 6, kind: input, shape index: {}]
  %s7 = inlined_call_operand.vmem [shape: f32[1,64], index: 7, kind: input, shape index: {}]
  %s8 = inlined_call_operand.vmem [shape: bf16[64,256], index: 8, kind: input, shape index: {}]
  %s9 = inlined_call_operand.vmem [shape: f32[1,256], index: 9, kind: input, shape index: {}]
  %s10 = inlined_call_operand.vmem [shape: bf16[256,64], index: 10, kind: input, shape index: {}]
  %s11 = inlined_call_operand.vmem [shape: f32[1,64], index: 11, kind: input, shape index: {}]
  %s12 = inlined_call_operand.hbm [shape: f32[16,64], index: 12, kind: output, shape index: {}]
  %s13 = sld [smem:[#allocation0]]
  $region58: #{tpu_custom_call.1} parent=0
    _
  %s15 = ssub.s32 1, %s13
  %s16 = scalar_select 0, %s15, %s13
  $region1: #{tpu_custom_call.1} parent=0
    #allocation2 [shape = 'u8[8192]{0}', space=vmem, size = 0x2000, scoped, tag = 'output window, operand 0, single buffered']
    #allocation3 [shape = 's32[1]{0}', space=sflag, size = 0x4, scoped, tag = 'scoped memory for tpu_custom_call.1']
    %17 = vsyncpa [#allocation3], 0
    // Predicated region
    $region2: #{tpu_custom_call.1} parent=1 // pred_check
      _
    $region3: #{tpu_custom_call.1} parent=1 // pred_check_branch
      %19 = sbr.rel (0) target = $region5
    $region4: #{tpu_custom_call.1} parent=1 // pred_region
      _
    $region5: #{tpu_custom_call.1} parent=1 // pred_fallthru
      _
    // Predicated region
    $region6: #{tpu_custom_call.1} parent=1 // pred_check
      _
    $region7: #{tpu_custom_call.1} parent=1 // pred_check_branch
      %21 = sbr.rel (0) target = $region9
    $region8: #{tpu_custom_call.1} parent=1 // pred_region
      _
    $region9: #{tpu_custom_call.1} parent=1 // pred_fallthru
      _
    // Predicated region
    $region10: #{tpu_custom_call.1} parent=1 // pred_check
      _
    $region11: #{tpu_custom_call.1} parent=1 // pred_check_branch
      %23 = sbr.rel (0) target = $region13
    $region12: #{tpu_custom_call.1} parent=1 // pred_region
      _
    $region13: #{tpu_custom_call.1} parent=1 // pred_fallthru
      _
    // Predicated region
    $region14: #{tpu_custom_call.1} parent=1 // pred_check
      _
    $region15: #{tpu_custom_call.1} parent=1 // pred_check_branch
      %25 = sbr.rel (0) target = $region17
    $region16: #{tpu_custom_call.1} parent=1 // pred_region
      _
    $region17: #{tpu_custom_call.1} parent=1 // pred_fallthru
      _
    // Predicated region
    $region18: #{tpu_custom_call.1} parent=1 // pred_check
      _
    $region19: #{tpu_custom_call.1} parent=1 // pred_check_branch
      %27 = sbr.rel (0) target = $region21
    $region20: #{tpu_custom_call.1} parent=1 // pred_region
      _
    $region21: #{tpu_custom_call.1} parent=1 // pred_fallthru
      _
    // Predicated region
    $region22: #{tpu_custom_call.1} parent=1 // pred_check
      _
    $region23: #{tpu_custom_call.1} parent=1 // pred_check_branch
      %29 = sbr.rel (0) target = $region25
    $region24: #{tpu_custom_call.1} parent=1 // pred_region
      _
    $region25: #{tpu_custom_call.1} parent=1 // pred_fallthru
      _
    // Predicated region
    $region26: #{tpu_custom_call.1} parent=1 // pred_check
      _
    $region27: #{tpu_custom_call.1} parent=1 // pred_check_branch
      %31 = sbr.rel (0) target = $region29
    $region28: #{tpu_custom_call.1} parent=1 // pred_region
      _
    $region29: #{tpu_custom_call.1} parent=1 // pred_fallthru
      _
    // Predicated region
    $region30: #{tpu_custom_call.1} parent=1 // pred_check
      _
    $region31: #{tpu_custom_call.1} parent=1 // pred_check_branch
      %33 = sbr.rel (0) target = $region33
    $region32: #{tpu_custom_call.1} parent=1 // pred_region
      _
    $region33: #{tpu_custom_call.1} parent=1 // pred_fallthru
      _
    // Predicated region
    $region34: #{tpu_custom_call.1} parent=1 // pred_check
      _
    $region35: #{tpu_custom_call.1} parent=1 // pred_check_branch
      %35 = sbr.rel (0) target = $region37
    $region36: #{tpu_custom_call.1} parent=1 // pred_region
      _
    $region37: #{tpu_custom_call.1} parent=1 // pred_fallthru
      _
    // Predicated region
    $region38: #{tpu_custom_call.1} parent=1 // pred_check
      _
    $region39: #{tpu_custom_call.1} parent=1 // pred_check_branch
      %37 = sbr.rel (0) target = $region41
    $region40: #{tpu_custom_call.1} parent=1 // pred_region
      _
    $region41: #{tpu_custom_call.1} parent=1 // pred_fallthru
      _
    // Predicated region
    $region42: #{tpu_custom_call.1} parent=1 // pred_check
      _
    $region43: #{tpu_custom_call.1} parent=1 // pred_check_branch
      %39 = sbr.rel (0) target = $region45
    $region44: #{tpu_custom_call.1} parent=1 // pred_region
      _
    $region45: #{tpu_custom_call.1} parent=1 // pred_fallthru
      _
    // Predicated region
    $region46: #{tpu_custom_call.1} parent=1 // pred_check
      _
    $region47: #{tpu_custom_call.1} parent=1 // pred_check_branch
      %41 = sbr.rel (0) target = $region49
    $region48: #{tpu_custom_call.1} parent=1 // pred_region
      _
    $region49: #{tpu_custom_call.1} parent=1 // pred_fallthru
      _
    %v43 = vld [vmem:[%s0] sm:$0xff]
    %v44 = vld [vmem:[%s0 + $0x8] sm:$0xff]
    %v45 = vld [vmem:[%s4] sm:$0x1]
    %v46 = vld [vmem:[%s5] sm:$0x1]
    %vm47 = vcmask 523264
    %v48 = vsel %vm47, %v43, 0.0
    %49 = vadd.xlane.f32.xlu0 %v48
    %v50 = vpop.xlane.xlu0 %49
    %v51 = vsel %vm47, %v44, 0.0
    %52 = vadd.xlane.f32.xlu0 %v51
    %v53 = vpop.xlane.xlu0 %52
    %v54 = vrcp.pop 64.0
    %v55 = vmul.f32 %v50, %v54
    %v56 = vmul.f32 %v53, %v54
    %v57 = vsub.f32 %v43, %v55
    %v58 = vsub.f32 %v44, %v56
    %v59 = vmul.f32 %v57, %v57
    %v60 = vmul.f32 %v58, %v58
    %v61 = vsel %vm47, %v59, 0.0
    %62 = vadd.xlane.f32.xlu0 %v61
    %v63 = vpop.xlane.xlu0 %62
    %v64 = vsel %vm47, %v60, 0.0
    %65 = vadd.xlane.f32.xlu0 %v64
    %v66 = vpop.xlane.xlu0 %65
    %v67 = vmul.f32 %v63, %v54
    %v68 = vmul.f32 %v66, %v54
    %v69 = vadd.f32 %v67, 1e-05
    %v70 = vadd.f32 %v68, 1e-05
    %v71 = vrsqrt.pop %v69
    %v72 = vrsqrt.pop %v70
    %v73 = vmul.f32 %v57, %v71
    %v74 = vmul.f32 %v58, %v72
    %v76 = vlaneseq
    %v77 = vshrl.u32 %v76, 7
    %v78 = vsub.s32 0, %v77
    %v79 = vrot.slane %v45, %v78
    %v81 = vmul.f32 %v73, %v79
    %v82 = vmul.f32 %v74, %v79
    %v84 = vlaneseq
    %v85 = vshrl.u32 %v84, 7
    %v86 = vsub.s32 0, %v85
    %v87 = vrot.slane %v46, %v86
    %v89 = vadd.f32 %v81, %v87
    %v90 = vadd.f32 %v82, %v87
    %v91 = vpack.c.bf16 %v90, %v89
    %v92 = vld [vmem:[%s1] sm:$0xff]
    %v93 = vld [vmem:[%s1 + $0x8] sm:$0xff]
    %v94 = vld [vmem:[%s1 + $0x10] sm:$0xff]
    %v95 = vld [vmem:[%s1 + $0x18] sm:$0xff]
    %v96 = vld [vmem:[%s1 + $0x20] sm:$0xff]
    %v97 = vld [vmem:[%s1 + $0x28] sm:$0xff]
    %v98 = vld [vmem:[%s1 + $0x30] sm:$0xff]
    %v99 = vld [vmem:[%s1 + $0x38] sm:$0xff]
    %v108 = vunpack.c.l.b16 %v92
    %v109 = vunpack.c.h.b16 %v92
    %v110 = vunpack.c.l.b16 %v93
    %v111 = vunpack.c.h.b16 %v93
    %v112 = vunpack.c.l.b16 %v94
    %v113 = vunpack.c.h.b16 %v94
    %v114 = vunpack.c.l.b16 %v95
    %v115 = vunpack.c.h.b16 %v95
    %v116 = vunpack.c.l.b16 %v96
    %v117 = vunpack.c.h.b16 %v96
    %v118 = vunpack.c.l.b16 %v97
    %v119 = vunpack.c.h.b16 %v97
    %v120 = vunpack.c.l.b16 %v98
    %v121 = vunpack.c.h.b16 %v98
    %v122 = vunpack.c.l.b16 %v99
    %v123 = vunpack.c.h.b16 %v99
    %v124 = vpack.c.b16 %v110, %v108
    %v125 = vpack.c.b16 %v111, %v109
    %v126 = vpack.c.b16 %v114, %v112
    %v127 = vpack.c.b16 %v115, %v113
    %v128 = vpack.c.b16 %v118, %v116
    %v129 = vpack.c.b16 %v119, %v117
    %v130 = vpack.c.b16 %v122, %v120
    %v131 = vpack.c.b16 %v123, %v121
    %v141 = vsel %vm47, %v91, 0
    %143 = vmatprep.subr.bf16.mxu0 %v125
    %144 = vmatpush1.bf16.msra.mxu0 %v124
    %145 = vmatprep.subr.bf16.mxu0 %v127
    %146 = vmatpush1.bf16.msra.mxu0 %v126
    %147 = vmatprep.subr.bf16.mxu0 %v129
    %148 = vmatpush1.bf16.msra.mxu0 %v128
    %149 = vmatprep.subr.bf16.mxu0 %v131
    %150 = vmatpush1.bf16.msra.mxu0 %v130
    %151 = vmatprep.subr.bf16.mxu0 0
    %152 = vmatpush1.bf16.msra.mxu0 0
    %153 = vmatprep.subr.bf16.mxu0 0
    %154 = vmatpush1.bf16.msra.mxu0 0
    %155 = vmatprep.subr.bf16.mxu0 0
    %156 = vmatpush1.bf16.msra.mxu0 0
    %157 = vmatprep.subr.bf16.mxu0 0
    %158 = vmatpush1.bf16.msra.mxu0 0
    %159 = vmatprep.subr.bf16.mxu0 0
    %160 = vmatpush1.bf16.msra.mxu0 0
    %161 = vmatprep.subr.bf16.mxu0 0
    %162 = vmatpush1.bf16.msra.mxu0 0
    %163 = vmatprep.subr.bf16.mxu0 0
    %164 = vmatpush1.bf16.msra.mxu0 0
    %165 = vmatprep.subr.bf16.mxu0 0
    %166 = vmatpush1.bf16.msra.mxu0 0
    %167 = vmatprep.subr.bf16.mxu0 0
    %168 = vmatpush1.bf16.msra.mxu0 0
    %169 = vmatprep.subr.bf16.mxu0 0
    %170 = vmatpush1.bf16.msra.mxu0 0
    %171 = vmatprep.subr.bf16.mxu0 0
    %172 = vmatpush1.bf16.msra.mxu0 0
    %173 = vmatprep.subr.bf16.mxu0 0
    %174 = vmatpush1.bf16.msra.mxu0 0
    %175 = vmatprep.mubr.bf16.mxu0 0
    %176 = vmatmul.mubr.bf16.gmra.mrb[0].mxu0 %v141
    %v177 = vpop.f32.mrb[0].mxu0
    %v178 = vadd.f32 0.0, %v177
    %v179 = vpop.f32.mrb[0].mxu0
    %v180 = vadd.f32 0.0, %v179
    %v181 = vpop.f32.mrb[0].mxu0
    %v182 = vadd.f32 0.0, %v181
    %v183 = vpop.f32.mrb[0].mxu0
    %v184 = vadd.f32 0.0, %v183
    %185 = vdwg.mxu0
    %v186 = vpack.c.bf16 %v182, %v178
    %v187 = vpack.c.bf16 %v184, %v180
    %v189 = vunpack.c.l.b16 %v186
    %v190 = vunpack.c.h.b16 %v186
    %v191 = vpack.c.b16 %v189, %v189
    %v192 = vpack.c.b16 %v190, %v190
    %193 = vrot.lane.b32.xlu0 %v191, 120
    %v194 = vpop.permute.xlu0 %193
    %195 = vrot.lane.b32.xlu0 %v192, 120
    %v196 = vpop.permute.xlu0 %195
    %197 = vrot.lane.b32.xlu0 %v191, 112
    %v198 = vpop.permute.xlu0 %197
    %199 = vrot.lane.b32.xlu0 %v192, 112
    %v200 = vpop.permute.xlu0 %199
    %201 = vrot.lane.b32.xlu0 %v191, 104
    %v202 = vpop.permute.xlu0 %201
    %203 = vrot.lane.b32.xlu0 %v192, 104
    %v204 = vpop.permute.xlu0 %203
    %205 = vrot.lane.b32.xlu0 %v191, 96
    %v206 = vpop.permute.xlu0 %205
    %207 = vrot.lane.b32.xlu0 %v192, 96
    %v208 = vpop.permute.xlu0 %207
    %209 = vrot.lane.b32.xlu0 %v191, 88
    %v210 = vpop.permute.xlu0 %209
    %211 = vrot.lane.b32.xlu0 %v192, 88
    %v212 = vpop.permute.xlu0 %211
    %213 = vrot.lane.b32.xlu0 %v191, 80
    %v214 = vpop.permute.xlu0 %213
    %215 = vrot.lane.b32.xlu0 %v192, 80
    %v216 = vpop.permute.xlu0 %215
    %217 = vrot.lane.b32.xlu0 %v191, 72
    %v218 = vpop.permute.xlu0 %217
    %219 = vrot.lane.b32.xlu0 %v192, 72
    %v220 = vpop.permute.xlu0 %219
    %v222 = vunpack.c.l.b16 %v187
    %v223 = vunpack.c.h.b16 %v187
    %v224 = vpack.c.b16 %v222, %v222
    %v225 = vpack.c.b16 %v223, %v223
    %226 = vrot.lane.b32.xlu0 %v224, 120
    %v227 = vpop.permute.xlu0 %226
    %228 = vrot.lane.b32.xlu0 %v225, 120
    %v229 = vpop.permute.xlu0 %228
    %230 = vrot.lane.b32.xlu0 %v224, 112
    %v231 = vpop.permute.xlu0 %230
    %232 = vrot.lane.b32.xlu0 %v225, 112
    %v233 = vpop.permute.xlu0 %232
    %234 = vrot.lane.b32.xlu0 %v224, 104
    %v235 = vpop.permute.xlu0 %234
    %236 = vrot.lane.b32.xlu0 %v225, 104
    %v237 = vpop.permute.xlu0 %236
    %238 = vrot.lane.b32.xlu0 %v224, 96
    %v239 = vpop.permute.xlu0 %238
    %240 = vrot.lane.b32.xlu0 %v225, 96
    %v241 = vpop.permute.xlu0 %240
    %242 = vrot.lane.b32.xlu0 %v224, 88
    %v243 = vpop.permute.xlu0 %242
    %244 = vrot.lane.b32.xlu0 %v225, 88
    %v245 = vpop.permute.xlu0 %244
    %246 = vrot.lane.b32.xlu0 %v224, 80
    %v247 = vpop.permute.xlu0 %246
    %248 = vrot.lane.b32.xlu0 %v225, 80
    %v249 = vpop.permute.xlu0 %248
    %250 = vrot.lane.b32.xlu0 %v224, 72
    %v251 = vpop.permute.xlu0 %250
    %252 = vrot.lane.b32.xlu0 %v225, 72
    %v253 = vpop.permute.xlu0 %252
    %254 = vrot.lane.b32.xlu0 %v191, 64
    %v255 = vpop.permute.xlu0 %254
    %vm256 = vcmask 64512
    %v258 = vsel %vm256, %v191, 0
    %v261 = vsel %vm256, %v255, 0
    %263 = vmatprep.subr.bf16.mxu0 0
    %264 = vmatpush1.bf16.xpose.msra.mxu0 %v261
    %265 = vmatprep.subr.bf16.mxu0 0
    %266 = vmatpush1.bf16.xpose.msra.mxu0 0
    %267 = vmatprep.subr.bf16.mxu0 0
    %268 = vmatpush1.bf16.xpose.msra.mxu0 0
    %269 = vmatprep.subr.bf16.mxu0 0
    %270 = vmatpush1.bf16.xpose.msra.mxu0 0
    %271 = vmatprep.subr.bf16.mxu0 0
    %272 = vmatpush1.bf16.xpose.msra.mxu0 0
    %273 = vmatprep.subr.bf16.mxu0 0
    %274 = vmatpush1.bf16.xpose.msra.mxu0 0
    %275 = vmatprep.subr.bf16.mxu0 0
    %276 = vmatpush1.bf16.xpose.msra.mxu0 0
    %277 = vmatprep.subr.bf16.mxu0 0
    %278 = vmatpush1.bf16.xpose.msra.mxu0 0
    %279 = vmatprep.subr.bf16.mxu0 0
    %280 = vmatpush1.bf16.xpose.msra.mxu0 0
    %281 = vmatprep.subr.bf16.mxu0 0
    %282 = vmatpush1.bf16.xpose.msra.mxu0 0
    %283 = vmatprep.subr.bf16.mxu0 0
    %284 = vmatpush1.bf16.xpose.msra.mxu0 0
    %285 = vmatprep.subr.bf16.mxu0 0
    %286 = vmatpush1.bf16.xpose.msra.mxu0 0
    %287 = vmatprep.subr.bf16.mxu0 0
    %288 = vmatpush1.bf16.xpose.msra.mxu0 0
    %289 = vmatprep.subr.bf16.mxu0 0
    %290 = vmatpush1.bf16.xpose.msra.mxu0 0
    %291 = vmatprep.subr.bf16.mxu0 0
    %292 = vmatpush1.bf16.xpose.msra.mxu0 0
    %293 = vmatprep.subr.bf16.mxu0 0
    %294 = vmatpush1.bf16.xpose.msra.mxu0 0
    %295 = vmatprep.mubr.bf16.mxu0 0
    %296 = vmatmul.mubr.bf16.gmra.mrb[0].mxu0 %v258
    %v297 = vpop.f32.mrb[0].mxu0
    %v298 = vadd.f32 0.0, %v297
    %v299 = vpop.f32.mrb[0].mxu0
    %v300 = vpop.f32.mrb[0].mxu0
    %v301 = vpop.f32.mrb[0].mxu0
    %302 = vdwg.mxu0
    %303 = vrot.lane.b32.xlu0 %v192, 64
    %v304 = vpop.permute.xlu0 %303
    %v306 = vsel %vm256, %v192, 0
    %v309 = vsel %vm256, %v304, 0
    %311 = vmatprep.subr.bf16.mxu0 0
    %312 = vmatpush1.bf16.xpose.msra.mxu0 %v309
    %313 = vmatprep.subr.bf16.mxu0 0
    %314 = vmatpush1.bf16.xpose.msra.mxu0 0
    %315 = vmatprep.subr.bf16.mxu0 0
    %316 = vmatpush1.bf16.xpose.msra.mxu0 0
    %317 = vmatprep.subr.bf16.mxu0 0
    %318 = vmatpush1.bf16.xpose.msra.mxu0 0
    %319 = vmatprep.subr.bf16.mxu0 0
    %320 = vmatpush1.bf16.xpose.msra.mxu0 0
    %321 = vmatprep.subr.bf16.mxu0 0
    %322 = vmatpush1.bf16.xpose.msra.mxu0 0
    %323 = vmatprep.subr.bf16.mxu0 0
    %324 = vmatpush1.bf16.xpose.msra.mxu0 0
    %325 = vmatprep.subr.bf16.mxu0 0
    %326 = vmatpush1.bf16.xpose.msra.mxu0 0
    %327 = vmatprep.subr.bf16.mxu0 0
    %328 = vmatpush1.bf16.xpose.msra.mxu0 0
    %329 = vmatprep.subr.bf16.mxu0 0
    %330 = vmatpush1.bf16.xpose.msra.mxu0 0
    %331 = vmatprep.subr.bf16.mxu0 0
    %332 = vmatpush1.bf16.xpose.msra.mxu0 0
    %333 = vmatprep.subr.bf16.mxu0 0
    %334 = vmatpush1.bf16.xpose.msra.mxu0 0
    %335 = vmatprep.subr.bf16.mxu0 0
    %336 = vmatpush1.bf16.xpose.msra.mxu0 0
    %337 = vmatprep.subr.bf16.mxu0 0
    %338 = vmatpush1.bf16.xpose.msra.mxu0 0
    %339 = vmatprep.subr.bf16.mxu0 0
    %340 = vmatpush1.bf16.xpose.msra.mxu0 0
    %341 = vmatprep.subr.bf16.mxu0 0
    %342 = vmatpush1.bf16.xpose.msra.mxu0 0
    %343 = vmatprep.mubr.bf16.mxu0 0
    %344 = vmatmul.mubr.bf16.gmra.mrb[0].mxu0 %v306
    %v345 = vpop.f32.mrb[0].mxu0
    %v346 = vadd.f32 0.0, %v345
    %v347 = vpop.f32.mrb[0].mxu0
    %v348 = vpop.f32.mrb[0].mxu0
    %v349 = vpop.f32.mrb[0].mxu0
    %350 = vdwg.mxu0
    %v351 = vunpack.c.l.b16 %v194
    %v352 = vpack.c.b16 %v351, %v351
    %353 = vrot.lane.b32.xlu0 %v352, 64
    %v354 = vpop.permute.xlu0 %353
    %v356 = vsel %vm256, %v194, 0
    %v359 = vsel %vm256, %v354, 0
    %361 = vmatprep.subr.bf16.mxu0 0
    %362 = vmatpush1.bf16.xpose.msra.mxu0 %v359
    %363 = vmatprep.subr.bf16.mxu0 0
    %364 = vmatpush1.bf16.xpose.msra.mxu0 0
    %365 = vmatprep.subr.bf16.mxu0 0
    %366 = vmatpush1.bf16.xpose.msra.mxu0 0
    %367 = vmatprep.subr.bf16.mxu0 0
    %368 = vmatpush1.bf16.xpose.msra.mxu0 0
    %369 = vmatprep.subr.bf16.mxu0 0
    %370 = vmatpush1.bf16.xpose.msra.mxu0 0
    %371 = vmatprep.subr.bf16.mxu0 0
    %372 = vmatpush1.bf16.xpose.msra.mxu0 0
    %373 = vmatprep.subr.bf16.mxu0 0
    %374 = vmatpush1.bf16.xpose.msra.mxu0 0
    %375 = vmatprep.subr.bf16.mxu0 0
    %376 = vmatpush1.bf16.xpose.msra.mxu0 0
    %377 = vmatprep.subr.bf16.mxu0 0
    %378 = vmatpush1.bf16.xpose.msra.mxu0 0
    %379 = vmatprep.subr.bf16.mxu0 0
    %380 = vmatpush1.bf16.xpose.msra.mxu0 0
    %381 = vmatprep.subr.bf16.mxu0 0
    %382 = vmatpush1.bf16.xpose.msra.mxu0 0
    %383 = vmatprep.subr.bf16.mxu0 0
    %384 = vmatpush1.bf16.xpose.msra.mxu0 0
    %385 = vmatprep.subr.bf16.mxu0 0
    %386 = vmatpush1.bf16.xpose.msra.mxu0 0
    %387 = vmatprep.subr.bf16.mxu0 0
    %388 = vmatpush1.bf16.xpose.msra.mxu0 0
    %389 = vmatprep.subr.bf16.mxu0 0
    %390 = vmatpush1.bf16.xpose.msra.mxu0 0
    %391 = vmatprep.subr.bf16.mxu0 0
    %392 = vmatpush1.bf16.xpose.msra.mxu0 0
    %393 = vmatprep.mubr.bf16.mxu0 0
    %394 = vmatmul.mubr.bf16.gmra.mrb[0].mxu0 %v356
    %v395 = vpop.f32.mrb[0].mxu0
    %v396 = vadd.f32 0.0, %v395
    %v397 = vpop.f32.mrb[0].mxu0
    %v398 = vpop.f32.mrb[0].mxu0
    %v399 = vpop.f32.mrb[0].mxu0
    %400 = vdwg.mxu0
    %v401 = vunpack.c.l.b16 %v196
    %v402 = vpack.c.b16 %v401, %v401
    %403 = vrot.lane.b32.xlu0 %v402, 64
    %v404 = vpop.permute.xlu0 %403
    %v406 = vsel %vm256, %v196, 0
    %v409 = vsel %vm256, %v404, 0
    %411 = vmatprep.subr.bf16.mxu0 0
    %412 = vmatpush1.bf16.xpose.msra.mxu0 %v409
    %413 = vmatprep.subr.bf16.mxu0 0
    %414 = vmatpush1.bf16.xpose.msra.mxu0 0
    %415 = vmatprep.subr.bf16.mxu0 0
    %416 = vmatpush1.bf16.xpose.msra.mxu0 0
    %417 = vmatprep.subr.bf16.mxu0 0
    %418 = vmatpush1.bf16.xpose.msra.mxu0 0
    %419 = vmatprep.subr.bf16.mxu0 0
    %420 = vmatpush1.bf16.xpose.msra.mxu0 0
    %421 = vmatprep.subr.bf16.mxu0 0
    %422 = vmatpush1.bf16.xpose.msra.mxu0 0
    %423 = vmatprep.subr.bf16.mxu0 0
    %424 = vmatpush1.bf16.xpose.msra.mxu0 0
    %425 = vmatprep.subr.bf16.mxu0 0
    %426 = vmatpush1.bf16.xpose.msra.mxu0 0
    %427 = vmatprep.subr.bf16.mxu0 0
    %428 = vmatpush1.bf16.xpose.msra.mxu0 0
    %429 = vmatprep.subr.bf16.mxu0 0
    %430 = vmatpush1.bf16.xpose.msra.mxu0 0
    %431 = vmatprep.subr.bf16.mxu0 0
    %432 = vmatpush1.bf16.xpose.msra.mxu0 0
    %433 = vmatprep.subr.bf16.mxu0 0
    %434 = vmatpush1.bf16.xpose.msra.mxu0 0
    %435 = vmatprep.subr.bf16.mxu0 0
    %436 = vmatpush1.bf16.xpose.msra.mxu0 0
    %437 = vmatprep.subr.bf16.mxu0 0
    %438 = vmatpush1.bf16.xpose.msra.mxu0 0
    %439 = vmatprep.subr.bf16.mxu0 0
    %440 = vmatpush1.bf16.xpose.msra.mxu0 0
    %441 = vmatprep.subr.bf16.mxu0 0
    %442 = vmatpush1.bf16.xpose.msra.mxu0 0
    %443 = vmatprep.mubr.bf16.mxu0 0
    %444 = vmatmul.mubr.bf16.gmra.mrb[0].mxu0 %v406
    %v445 = vpop.f32.mrb[0].mxu0
    %v446 = vadd.f32 0.0, %v445
    %v447 = vpop.f32.mrb[0].mxu0
    %v448 = vpop.f32.mrb[0].mxu0
    %v449 = vpop.f32.mrb[0].mxu0
    %450 = vdwg.mxu0
    %v451 = vunpack.c.l.b16 %v198
    %v452 = vpack.c.b16 %v451, %v451
    %453 = vrot.lane.b32.xlu0 %v452, 64
    %v454 = vpop.permute.xlu0 %453
    %v456 = vsel %vm256, %v198, 0
    %v459 = vsel %vm256, %v454, 0
    %461 = vmatprep.subr.bf16.mxu0 0
    %462 = vmatpush1.bf16.xpose.msra.mxu0 %v459
    %463 = vmatprep.subr.bf16.mxu0 0
    %464 = vmatpush1.bf16.xpose.msra.mxu0 0
    %465 = vmatprep.subr.bf16.mxu0 0
    %466 = vmatpush1.bf16.xpose.msra.mxu0 0
    %467 = vmatprep.subr.bf16.mxu0 0
    %468 = vmatpush1.bf16.xpose.msra.mxu0 0
    %469 = vmatprep.subr.bf16.mxu0 0
    %470 = vmatpush1.bf16.xpose.msra.mxu0 0
    %471 = vmatprep.subr.bf16.mxu0 0
    %472 = vmatpush1.bf16.xpose.msra.mxu0 0
    %473 = vmatprep.subr.bf16.mxu0 0
    %474 = vmatpush1.bf16.xpose.msra.mxu0 0
    %475 = vmatprep.subr.bf16.mxu0 0
    %476 = vmatpush1.bf16.xpose.msra.mxu0 0
    %477 = vmatprep.subr.bf16.mxu0 0
    %478 = vmatpush1.bf16.xpose.msra.mxu0 0
    %479 = vmatprep.subr.bf16.mxu0 0
    %480 = vmatpush1.bf16.xpose.msra.mxu0 0
    %481 = vmatprep.subr.bf16.mxu0 0
    %482 = vmatpush1.bf16.xpose.msra.mxu0 0
    %483 = vmatprep.subr.bf16.mxu0 0
    %484 = vmatpush1.bf16.xpose.msra.mxu0 0
    %485 = vmatprep.subr.bf16.mxu0 0
    %486 = vmatpush1.bf16.xpose.msra.mxu0 0
    %487 = vmatprep.subr.bf16.mxu0 0
    %488 = vmatpush1.bf16.xpose.msra.mxu0 0
    %489 = vmatprep.subr.bf16.mxu0 0
    %490 = vmatpush1.bf16.xpose.msra.mxu0 0
    %491 = vmatprep.subr.bf16.mxu0 0
    %492 = vmatpush1.bf16.xpose.msra.mxu0 0
    %493 = vmatprep.mubr.bf16.mxu0 0
    %494 = vmatmul.mubr.bf16.gmra.mrb[0].mxu0 %v456
    %v495 = vpop.f32.mrb[0].mxu0
    %v496 = vadd.f32 0.0, %v495
    %v497 = vpop.f32.mrb[0].mxu0
    %v498 = vpop.f32.mrb[0].mxu0
    %v499 = vpop.f32.mrb[0].mxu0
    %500 = vdwg.mxu0
    %v501 = vunpack.c.l.b16 %v200
    %v502 = vpack.c.b16 %v501, %v501
    %503 = vrot.lane.b32.xlu0 %v502, 64
    %v504 = vpop.permute.xlu0 %503
    %v506 = vsel %vm256, %v200, 0
    %v509 = vsel %vm256, %v504, 0
    %511 = vmatprep.subr.bf16.mxu0 0
    %512 = vmatpush1.bf16.xpose.msra.mxu0 %v509
    %513 = vmatprep.subr.bf16.mxu0 0
    %514 = vmatpush1.bf16.xpose.msra.mxu0 0
    %515 = vmatprep.subr.bf16.mxu0 0
    %516 = vmatpush1.bf16.xpose.msra.mxu0 0
    %517 = vmatprep.subr.bf16.mxu0 0
    %518 = vmatpush1.bf16.xpose.msra.mxu0 0
    %519 = vmatprep.subr.bf16.mxu0 0
    %520 = vmatpush1.bf16.xpose.msra.mxu0 0
    %521 = vmatprep.subr.bf16.mxu0 0
    %522 = vmatpush1.bf16.xpose.msra.mxu0 0
    %523 = vmatprep.subr.bf16.mxu0 0
    %524 = vmatpush1.bf16.xpose.msra.mxu0 0
    %525 = vmatprep.subr.bf16.mxu0 0
    %526 = vmatpush1.bf16.xpose.msra.mxu0 0
    %527 = vmatprep.subr.bf16.mxu0 0
    %528 = vmatpush1.bf16.xpose.msra.mxu0 0
    %529 = vmatprep.subr.bf16.mxu0 0
    %530 = vmatpush1.bf16.xpose.msra.mxu0 0
    %531 = vmatprep.subr.bf16.mxu0 0
    %532 = vmatpush1.bf16.xpose.msra.mxu0 0
    %533 = vmatprep.subr.bf16.mxu0 0
    %534 = vmatpush1.bf16.xpose.msra.mxu0 0
    %535 = vmatprep.subr.bf16.mxu0 0
    %536 = vmatpush1.bf16.xpose.msra.mxu0 0
    %537 = vmatprep.subr.bf16.mxu0 0
    %538 = vmatpush1.bf16.xpose.msra.mxu0 0
    %539 = vmatprep.subr.bf16.mxu0 0
    %540 = vmatpush1.bf16.xpose.msra.mxu0 0
    %541 = vmatprep.subr.bf16.mxu0 0
    %542 = vmatpush1.bf16.xpose.msra.mxu0 0
    %543 = vmatprep.mubr.bf16.mxu0 0
    %544 = vmatmul.mubr.bf16.gmra.mrb[0].mxu0 %v506
    %v545 = vpop.f32.mrb[0].mxu0
    %v546 = vadd.f32 0.0, %v545
    %v547 = vpop.f32.mrb[0].mxu0
    %v548 = vpop.f32.mrb[0].mxu0
    %v549 = vpop.f32.mrb[0].mxu0
    %550 = vdwg.mxu0
    %v551 = vunpack.c.l.b16 %v202
    %v552 = vpack.c.b16 %v551, %v551
    %553 = vrot.lane.b32.xlu0 %v552, 64
    %v554 = vpop.permute.xlu0 %553
    %v556 = vsel %vm256, %v202, 0
    %v559 = vsel %vm256, %v554, 0
    %561 = vmatprep.subr.bf16.mxu0 0
    %562 = vmatpush1.bf16.xpose.msra.mxu0 %v559
    %563 = vmatprep.subr.bf16.mxu0 0
    %564 = vmatpush1.bf16.xpose.msra.mxu0 0
    %565 = vmatprep.subr.bf16.mxu0 0
    %566 = vmatpush1.bf16.xpose.msra.mxu0 0
    %567 = vmatprep.subr.bf16.mxu0 0
    %568 = vmatpush1.bf16.xpose.msra.mxu0 0
    %569 = vmatprep.subr.bf16.mxu0 0
    %570 = vmatpush1.bf16.xpose.msra.mxu0 0
    %571 = vmatprep.subr.bf16.mxu0 0
    %572 = vmatpush1.bf16.xpose.msra.mxu0 0
    %573 = vmatprep.subr.bf16.mxu0 0
    %574 = vmatpush1.bf16.xpose.msra.mxu0 0
    %575 = vmatprep.subr.bf16.mxu0 0
    %576 = vmatpush1.bf16.xpose.msra.mxu0 0
    %577 = vmatprep.subr.bf16.mxu0 0
    %578 = vmatpush1.bf16.xpose.msra.mxu0 0
    %579 = vmatprep.subr.bf16.mxu0 0
    %580 = vmatpush1.bf16.xpose.msra.mxu0 0
    %581 = vmatprep.subr.bf16.mxu0 0
    %582 = vmatpush1.bf16.xpose.msra.mxu0 0
    %583 = vmatprep.subr.bf16.mxu0 0
    %584 = vmatpush1.bf16.xpose.msra.mxu0 0
    %585 = vmatprep.subr.bf16.mxu0 0
    %586 = vmatpush1.bf16.xpose.msra.mxu0 0
    %587 = vmatprep.subr.bf16.mxu0 0
    %588 = vmatpush1.bf16.xpose.msra.mxu0 0
    %589 = vmatprep.subr.bf16.mxu0 0
    %590 = vmatpush1.bf16.xpose.msra.mxu0 0
    %591 = vmatprep.subr.bf16.mxu0 0
    %592 = vmatpush1.bf16.xpose.msra.mxu0 0
    %593 = vmatprep.mubr.bf16.mxu0 0
    %594 = vmatmul.mubr.bf16.gmra.mrb[0].mxu0 %v556
    %v595 = vpop.f32.mrb[0].mxu0
    %v596 = vadd.f32 0.0, %v595
    %v597 = vpop.f32.mrb[0].mxu0
    %v598 = vpop.f32.mrb[0].mxu0
    %v599 = vpop.f32.mrb[0].mxu0
    %600 = vdwg.mxu0
    %v601 = vunpack.c.l.b16 %v204
    %v602 = vpack.c.b16 %v601, %v601
    %603 = vrot.lane.b32.xlu0 %v602, 64
    %v604 = vpop.permute.xlu0 %603
    %v606 = vsel %vm256, %v204, 0
    %v609 = vsel %vm256, %v604, 0
    %611 = vmatprep.subr.bf16.mxu0 0
    %612 = vmatpush1.bf16.xpose.msra.mxu0 %v609
    %613 = vmatprep.subr.bf16.mxu0 0
    %614 = vmatpush1.bf16.xpose.msra.mxu0 0
    %615 = vmatprep.subr.bf16.mxu0 0
    %616 = vmatpush1.bf16.xpose.msra.mxu0 0
    %617 = vmatprep.subr.bf16.mxu0 0
    %618 = vmatpush1.bf16.xpose.msra.mxu0 0
    %619 = vmatprep.subr.bf16.mxu0 0
    %620 = vmatpush1.bf16.xpose.msra.mxu0 0
    %621 = vmatprep.subr.bf16.mxu0 0
    %622 = vmatpush1.bf16.xpose.msra.mxu0 0
    %623 = vmatprep.subr.bf16.mxu0 0
    %624 = vmatpush1.bf16.xpose.msra.mxu0 0
    %625 = vmatprep.subr.bf16.mxu0 0
    %626 = vmatpush1.bf16.xpose.msra.mxu0 0
    %627 = vmatprep.subr.bf16.mxu0 0
    %628 = vmatpush1.bf16.xpose.msra.mxu0 0
    %629 = vmatprep.subr.bf16.mxu0 0
    %630 = vmatpush1.bf16.xpose.msra.mxu0 0
    %631 = vmatprep.subr.bf16.mxu0 0
    %632 = vmatpush1.bf16.xpose.msra.mxu0 0
    %633 = vmatprep.subr.bf16.mxu0 0
    %634 = vmatpush1.bf16.xpose.msra.mxu0 0
    %635 = vmatprep.subr.bf16.mxu0 0
    %636 = vmatpush1.bf16.xpose.msra.mxu0 0
    %637 = vmatprep.subr.bf16.mxu0 0
    %638 = vmatpush1.bf16.xpose.msra.mxu0 0
    %639 = vmatprep.subr.bf16.mxu0 0
    %640 = vmatpush1.bf16.xpose.msra.mxu0 0
    %641 = vmatprep.subr.bf16.mxu0 0
    %642 = vmatpush1.bf16.xpose.msra.mxu0 0
    %643 = vmatprep.mubr.bf16.mxu0 0
    %644 = vmatmul.mubr.bf16.gmra.mrb[0].mxu0 %v606
    %v645 = vpop.f32.mrb[0].mxu0
    %v646 = vadd.f32 0.0, %v645
    %v647 = vpop.f32.mrb[0].mxu0
    %v648 = vpop.f32.mrb[0].mxu0
    %v649 = vpop.f32.mrb[0].mxu0
    %650 = vdwg.mxu0
    %v651 = vunpack.c.l.b16 %v206
    %v652 = vpack.c.b16 %v651, %v651
    %653 = vrot.lane.b32.xlu0 %v652, 64
    %v654 = vpop.permute.xlu0 %653
    %v656 = vsel %vm256, %v206, 0
    %v659 = vsel %vm256, %v654, 0
    %661 = vmatprep.subr.bf16.mxu0 0
    %662 = vmatpush1.bf16.xpose.msra.mxu0 %v659
    %663 = vmatprep.subr.bf16.mxu0 0
    %664 = vmatpush1.bf16.xpose.msra.mxu0 0
    %665 = vmatprep.subr.bf16.mxu0 0
    %666 = vmatpush1.bf16.xpose.msra.mxu0 0
    %667 = vmatprep.subr.bf16.mxu0 0
    %668 = vmatpush1.bf16.xpose.msra.mxu0 0
    %669 = vmatprep.subr.bf16.mxu0 0
    %670 = vmatpush1.bf16.xpose.msra.mxu0 0
    %671 = vmatprep.subr.bf16.mxu0 0
    %672 = vmatpush1.bf16.xpose.msra.mxu0 0
    %673 = vmatprep.subr.bf16.mxu0 0
    %674 = vmatpush1.bf16.xpose.msra.mxu0 0
    %675 = vmatprep.subr.bf16.mxu0 0
    %676 = vmatpush1.bf16.xpose.msra.mxu0 0
    %677 = vmatprep.subr.bf16.mxu0 0
    %678 = vmatpush1.bf16.xpose.msra.mxu0 0
    %679 = vmatprep.subr.bf16.mxu0 0
    %680 = vmatpush1.bf16.xpose.msra.mxu0 0
    %681 = vmatprep.subr.bf16.mxu0 0
    %682 = vmatpush1.bf16.xpose.msra.mxu0 0
    %683 = vmatprep.subr.bf16.mxu0 0
    %684 = vmatpush1.bf16.xpose.msra.mxu0 0
    %685 = vmatprep.subr.bf16.mxu0 0
    %686 = vmatpush1.bf16.xpose.msra.mxu0 0
    %687 = vmatprep.subr.bf16.mxu0 0
    %688 = vmatpush1.bf16.xpose.msra.mxu0 0
    %689 = vmatprep.subr.bf16.mxu0 0
    %690 = vmatpush1.bf16.xpose.msra.mxu0 0
    %691 = vmatprep.subr.bf16.mxu0 0
    %692 = vmatpush1.bf16.xpose.msra.mxu0 0
    %693 = vmatprep.mubr.bf16.mxu0 0
    %694 = vmatmul.mubr.bf16.gmra.mrb[0].mxu0 %v656
    %v695 = vpop.f32.mrb[0].mxu0
    %v696 = vadd.f32 0.0, %v695
    %v697 = vpop.f32.mrb[0].mxu0
    %v698 = vpop.f32.mrb[0].mxu0
    %v699 = vpop.f32.mrb[0].mxu0
    %700 = vdwg.mxu0
    %v701 = vunpack.c.l.b16 %v208
    %v702 = vpack.c.b16 %v701, %v701
    %703 = vrot.lane.b32.xlu0 %v702, 64
    %v704 = vpop.permute.xlu0 %703
    %v706 = vsel %vm256, %v208, 0
    %v709 = vsel %vm256, %v704, 0
    %711 = vmatprep.subr.bf16.mxu0 0
    %712 = vmatpush1.bf16.xpose.msra.mxu0 %v709
    %713 = vmatprep.subr.bf16.mxu0 0
    %714 = vmatpush1.bf16.xpose.msra.mxu0 0
    %715 = vmatprep.subr.bf16.mxu0 0
    %716 = vmatpush1.bf16.xpose.msra.mxu0 0
    %717 = vmatprep.subr.bf16.mxu0 0
    %718 = vmatpush1.bf16.xpose.msra.mxu0 0
    %719 = vmatprep.subr.bf16.mxu0 0
    %720 = vmatpush1.bf16.xpose.msra.mxu0 0
    %721 = vmatprep.subr.bf16.mxu0 0
    %722 = vmatpush1.bf16.xpose.msra.mxu0 0
    %723 = vmatprep.subr.bf16.mxu0 0
    %724 = vmatpush1.bf16.xpose.msra.mxu0 0
    %725 = vmatprep.subr.bf16.mxu0 0
    %726 = vmatpush1.bf16.xpose.msra.mxu0 0
    %727 = vmatprep.subr.bf16.mxu0 0
    %728 = vmatpush1.bf16.xpose.msra.mxu0 0
    %729 = vmatprep.subr.bf16.mxu0 0
    %730 = vmatpush1.bf16.xpose.msra.mxu0 0
    %731 = vmatprep.subr.bf16.mxu0 0
    %732 = vmatpush1.bf16.xpose.msra.mxu0 0
    %733 = vmatprep.subr.bf16.mxu0 0
    %734 = vmatpush1.bf16.xpose.msra.mxu0 0
    %735 = vmatprep.subr.bf16.mxu0 0
    %736 = vmatpush1.bf16.xpose.msra.mxu0 0
    %737 = vmatprep.subr.bf16.mxu0 0
    %738 = vmatpush1.bf16.xpose.msra.mxu0 0
    %739 = vmatprep.subr.bf16.mxu0 0
    %740 = vmatpush1.bf16.xpose.msra.mxu0 0
    %741 = vmatprep.subr.bf16.mxu0 0
    %742 = vmatpush1.bf16.xpose.msra.mxu0 0
    %743 = vmatprep.mubr.bf16.mxu0 0
    %744 = vmatmul.mubr.bf16.gmra.mrb[0].mxu0 %v706
    %v745 = vpop.f32.mrb[0].mxu0
    %v746 = vadd.f32 0.0, %v745
    %v747 = vpop.f32.mrb[0].mxu0
    %v748 = vpop.f32.mrb[0].mxu0
    %v749 = vpop.f32.mrb[0].mxu0
    %750 = vdwg.mxu0
    %v751 = vunpack.c.l.b16 %v210
    %v752 = vpack.c.b16 %v751, %v751
    %753 = vrot.lane.b32.xlu0 %v752, 64
    %v754 = vpop.permute.xlu0 %753
    %v756 = vsel %vm256, %v210, 0
    %v759 = vsel %vm256, %v754, 0
    %761 = vmatprep.subr.bf16.mxu0 0
    %762 = vmatpush1.bf16.xpose.msra.mxu0 %v759
    %763 = vmatprep.subr.bf16.mxu0 0
    %764 = vmatpush1.bf16.xpose.msra.mxu0 0
    %765 = vmatprep.subr.bf16.mxu0 0
    %766 = vmatpush1.bf16.xpose.msra.mxu0 0
    %767 = vmatprep.subr.bf16.mxu0 0
    %768 = vmatpush1.bf16.xpose.msra.mxu0 0
    %769 = vmatprep.subr.bf16.mxu0 0
    %770 = vmatpush1.bf16.xpose.msra.mxu0 0
    %771 = vmatprep.subr.bf16.mxu0 0
    %772 = vmatpush1.bf16.xpose.msra.mxu0 0
    %773 = vmatprep.subr.bf16.mxu0 0
    %774 = vmatpush1.bf16.xpose.msra.mxu0 0
    %775 = vmatprep.subr.bf16.mxu0 0
    %776 = vmatpush1.bf16.xpose.msra.mxu0 0
    %777 = vmatprep.subr.bf16.mxu0 0
    %778 = vmatpush1.bf16.xpose.msra.mxu0 0
    %779 = vmatprep.subr.bf16.mxu0 0
    %780 = vmatpush1.bf16.xpose.msra.mxu0 0
    %781 = vmatprep.subr.bf16.mxu0 0
    %782 = vmatpush1.bf16.xpose.msra.mxu0 0
    %783 = vmatprep.subr.bf16.mxu0 0
    %784 = vmatpush1.bf16.xpose.msra.mxu0 0
    %785 = vmatprep.subr.bf16.mxu0 0
    %786 = vmatpush1.bf16.xpose.msra.mxu0 0
    %787 = vmatprep.subr.bf16.mxu0 0
    %788 = vmatpush1.bf16.xpose.msra.mxu0 0
    %789 = vmatprep.subr.bf16.mxu0 0
    %790 = vmatpush1.bf16.xpose.msra.mxu0 0
    %791 = vmatprep.subr.bf16.mxu0 0
    %792 = vmatpush1.bf16.xpose.msra.mxu0 0
    %793 = vmatprep.mubr.bf16.mxu0 0
    %794 = vmatmul.mubr.bf16.gmra.mrb[0].mxu0 %v756
    %v795 = vpop.f32.mrb[0].mxu0
    %v796 = vadd.f32 0.0, %v795
    %v797 = vpop.f32.mrb[0].mxu0
    %v798 = vpop.f32.mrb[0].mxu0
    %v799 = vpop.f32.mrb[0].mxu0
    %800 = vdwg.mxu0
    %v801 = vunpack.c.l.b16 %v212
    %v802 = vpack.c.b16 %v801, %v801
    %803 = vrot.lane.b32.xlu0 %v802, 64
    %v804 = vpop.permute.xlu0 %803
    %v806 = vsel %vm256, %v212, 0
    %v809 = vsel %vm256, %v804, 0
    %811 = vmatprep.subr.bf16.mxu0 0
    %812 = vmatpush1.bf16.xpose.msra.mxu0 %v809
    %813 = vmatprep.subr.bf16.mxu0 0
    %814 = vmatpush1.bf16.xpose.msra.mxu0 0
    %815 = vmatprep.subr.bf16.mxu0 0
    %816 = vmatpush1.bf16.xpose.msra.mxu0 0
    %817 = vmatprep.subr.bf16.mxu0 0
    %818 = vmatpush1.bf16.xpose.msra.mxu0 0
    %819 = vmatprep.subr.bf16.mxu0 0
    %820 = vmatpush1.bf16.xpose.msra.mxu0 0
    %821 = vmatprep.subr.bf16.mxu0 0
    %822 = vmatpush1.bf16.xpose.msra.mxu0 0
    %823 = vmatprep.subr.bf16.mxu0 0
    %824 = vmatpush1.bf16.xpose.msra.mxu0 0
    %825 = vmatprep.subr.bf16.mxu0 0
    %826 = vmatpush1.bf16.xpose.msra.mxu0 0
    %827 = vmatprep.subr.bf16.mxu0 0
    %828 = vmatpush1.bf16.xpose.msra.mxu0 0
    %829 = vmatprep.subr.bf16.mxu0 0
    %830 = vmatpush1.bf16.xpose.msra.mxu0 0
    %831 = vmatprep.subr.bf16.mxu0 0
    %832 = vmatpush1.bf16.xpose.msra.mxu0 0
    %833 = vmatprep.subr.bf16.mxu0 0
    %834 = vmatpush1.bf16.xpose.msra.mxu0 0
    %835 = vmatprep.subr.bf16.mxu0 0
    %836 = vmatpush1.bf16.xpose.msra.mxu0 0
    %837 = vmatprep.subr.bf16.mxu0 0
    %838 = vmatpush1.bf16.xpose.msra.mxu0 0
    %839 = vmatprep.subr.bf16.mxu0 0
    %840 = vmatpush1.bf16.xpose.msra.mxu0 0
    %841 = vmatprep.subr.bf16.mxu0 0
    %842 = vmatpush1.bf16.xpose.msra.mxu0 0
    %843 = vmatprep.mubr.bf16.mxu0 0
    %844 = vmatmul.mubr.bf16.gmra.mrb[0].mxu0 %v806
    %v845 = vpop.f32.mrb[0].mxu0
    %v846 = vadd.f32 0.0, %v845
    %v847 = vpop.f32.mrb[0].mxu0
    %v848 = vpop.f32.mrb[0].mxu0
    %v849 = vpop.f32.mrb[0].mxu0
    %850 = vdwg.mxu0
    %v851 = vunpack.c.l.b16 %v214
    %v852 = vpack.c.b16 %v851, %v851
    %853 = vrot.lane.b32.xlu0 %v852, 64
    %v854 = vpop.permute.xlu0 %853
    %v856 = vsel %vm256, %v214, 0
    %v859 = vsel %vm256, %v854, 0
    %861 = vmatprep.subr.bf16.mxu0 0
    %862 = vmatpush1.bf16.xpose.msra.mxu0 %v859
    %863 = vmatprep.subr.bf16.mxu0 0
    %864 = vmatpush1.bf16.xpose.msra.mxu0 0
    %865 = vmatprep.subr.bf16.mxu0 0
    %866 = vmatpush1.bf16.xpose.msra.mxu0 0
    %867 = vmatprep.subr.bf16.mxu0 0
    %868 = vmatpush1.bf16.xpose.msra.mxu0 0
    %869 = vmatprep.subr.bf16.mxu0 0
    %870 = vmatpush1.bf16.xpose.msra.mxu0 0
    %871 = vmatprep.subr.bf16.mxu0 0
    %872 = vmatpush1.bf16.xpose.msra.mxu0 0
    %873 = vmatprep.subr.bf16.mxu0 0
    %874 = vmatpush1.bf16.xpose.msra.mxu0 0
    %875 = vmatprep.subr.bf16.mxu0 0
    %876 = vmatpush1.bf16.xpose.msra.mxu0 0
    %877 = vmatprep.subr.bf16.mxu0 0
    %878 = vmatpush1.bf16.xpose.msra.mxu0 0
    %879 = vmatprep.subr.bf16.mxu0 0
    %880 = vmatpush1.bf16.xpose.msra.mxu0 0
    %881 = vmatprep.subr.bf16.mxu0 0
    %882 = vmatpush1.bf16.xpose.msra.mxu0 0
    %883 = vmatprep.subr.bf16.mxu0 0
    %884 = vmatpush1.bf16.xpose.msra.mxu0 0
    %885 = vmatprep.subr.bf16.mxu0 0
    %886 = vmatpush1.bf16.xpose.msra.mxu0 0
    %887 = vmatprep.subr.bf16.mxu0 0
    %888 = vmatpush1.bf16.xpose.msra.mxu0 0
    %889 = vmatprep.subr.bf16.mxu0 0
    %890 = vmatpush1.bf16.xpose.msra.mxu0 0
    %891 = vmatprep.subr.bf16.mxu0 0
    %892 = vmatpush1.bf16.xpose.msra.mxu0 0
    %893 = vmatprep.mubr.bf16.mxu0 0
    %894 = vmatmul.mubr.bf16.gmra.mrb[0].mxu0 %v856
    %v895 = vpop.f32.mrb[0].mxu0
    %v896 = vadd.f32 0.0, %v895
    %v897 = vpop.f32.mrb[0].mxu0
    %v898 = vpop.f32.mrb[0].mxu0
    %v899 = vpop.f32.mrb[0].mxu0
    %900 = vdwg.mxu0
    %v901 = vunpack.c.l.b16 %v216
    %v902 = vpack.c.b16 %v901, %v901
    %903 = vrot.lane.b32.xlu0 %v902, 64
    %v904 = vpop.permute.xlu0 %903
    %v906 = vsel %vm256, %v216, 0
    %v909 = vsel %vm256, %v904, 0
    %911 = vmatprep.subr.bf16.mxu0 0
    %912 = vmatpush1.bf16.xpose.msra.mxu0 %v909
    %913 = vmatprep.subr.bf16.mxu0 0
    %914 = vmatpush1.bf16.xpose.msra.mxu0 0
    %915 = vmatprep.subr.bf16.mxu0 0
    %916 = vmatpush1.bf16.xpose.msra.mxu0 0
    %917 = vmatprep.subr.bf16.mxu0 0
    %918 = vmatpush1.bf16.xpose.msra.mxu0 0
    %919 = vmatprep.subr.bf16.mxu0 0
    %920 = vmatpush1.bf16.xpose.msra.mxu0 0
    %921 = vmatprep.subr.bf16.mxu0 0
    %922 = vmatpush1.bf16.xpose.msra.mxu0 0
    %923 = vmatprep.subr.bf16.mxu0 0
    %924 = vmatpush1.bf16.xpose.msra.mxu0 0
    %925 = vmatprep.subr.bf16.mxu0 0
    %926 = vmatpush1.bf16.xpose.msra.mxu0 0
    %927 = vmatprep.subr.bf16.mxu0 0
    %928 = vmatpush1.bf16.xpose.msra.mxu0 0
    %929 = vmatprep.subr.bf16.mxu0 0
    %930 = vmatpush1.bf16.xpose.msra.mxu0 0
    %931 = vmatprep.subr.bf16.mxu0 0
    %932 = vmatpush1.bf16.xpose.msra.mxu0 0
    %933 = vmatprep.subr.bf16.mxu0 0
    %934 = vmatpush1.bf16.xpose.msra.mxu0 0
    %935 = vmatprep.subr.bf16.mxu0 0
    %936 = vmatpush1.bf16.xpose.msra.mxu0 0
    %937 = vmatprep.subr.bf16.mxu0 0
    %938 = vmatpush1.bf16.xpose.msra.mxu0 0
    %939 = vmatprep.subr.bf16.mxu0 0
    %940 = vmatpush1.bf16.xpose.msra.mxu0 0
    %941 = vmatprep.subr.bf16.mxu0 0
    %942 = vmatpush1.bf16.xpose.msra.mxu0 0
    %943 = vmatprep.mubr.bf16.mxu0 0
    %944 = vmatmul.mubr.bf16.gmra.mrb[0].mxu0 %v906
    %v945 = vpop.f32.mrb[0].mxu0
    %v946 = vadd.f32 0.0, %v945
    %v947 = vpop.f32.mrb[0].mxu0
    %v948 = vpop.f32.mrb[0].mxu0
    %v949 = vpop.f32.mrb[0].mxu0
    %950 = vdwg.mxu0
    %v951 = vunpack.c.l.b16 %v218
    %v952 = vpack.c.b16 %v951, %v951
    %953 = vrot.lane.b32.xlu0 %v952, 64
    %v954 = vpop.permute.xlu0 %953
    %v956 = vsel %vm256, %v218, 0
    %v959 = vsel %vm256, %v954, 0
    %961 = vmatprep.subr.bf16.mxu0 0
    %962 = vmatpush1.bf16.xpose.msra.mxu0 %v959
    %963 = vmatprep.subr.bf16.mxu0 0
    %964 = vmatpush1.bf16.xpose.msra.mxu0 0
    %965 = vmatprep.subr.bf16.mxu0 0
    %966 = vmatpush1.bf16.xpose.msra.mxu0 0
    %967 = vmatprep.subr.bf16.mxu0 0
    %968 = vmatpush1.bf16.xpose.msra.mxu0 0
    %969 = vmatprep.subr.bf16.mxu0 0
    %970 = vmatpush1.bf16.xpose.msra.mxu0 0
    %971 = vmatprep.subr.bf16.mxu0 0
    %972 = vmatpush1.bf16.xpose.msra.mxu0 0
    %973 = vmatprep.subr.bf16.mxu0 0
    %974 = vmatpush1.bf16.xpose.msra.mxu0 0
    %975 = vmatprep.subr.bf16.mxu0 0
    %976 = vmatpush1.bf16.xpose.msra.mxu0 0
    %977 = vmatprep.subr.bf16.mxu0 0
    %978 = vmatpush1.bf16.xpose.msra.mxu0 0
    %979 = vmatprep.subr.bf16.mxu0 0
    %980 = vmatpush1.bf16.xpose.msra.mxu0 0
    %981 = vmatprep.subr.bf16.mxu0 0
    %982 = vmatpush1.bf16.xpose.msra.mxu0 0
    %983 = vmatprep.subr.bf16.mxu0 0
    %984 = vmatpush1.bf16.xpose.msra.mxu0 0
    %985 = vmatprep.subr.bf16.mxu0 0
    %986 = vmatpush1.bf16.xpose.msra.mxu0 0
    %987 = vmatprep.subr.bf16.mxu0 0
    %988 = vmatpush1.bf16.xpose.msra.mxu0 0
    %989 = vmatprep.subr.bf16.mxu0 0
    %990 = vmatpush1.bf16.xpose.msra.mxu0 0
    %991 = vmatprep.subr.bf16.mxu0 0
    %992 = vmatpush1.bf16.xpose.msra.mxu0 0
    %993 = vmatprep.mubr.bf16.mxu0 0
    %994 = vmatmul.mubr.bf16.gmra.mrb[0].mxu0 %v956
    %v995 = vpop.f32.mrb[0].mxu0
    %v996 = vadd.f32 0.0, %v995
    %v997 = vpop.f32.mrb[0].mxu0
    %v998 = vpop.f32.mrb[0].mxu0
    %v999 = vpop.f32.mrb[0].mxu0
    %1000 = vdwg.mxu0
    %v1001 = vunpack.c.l.b16 %v220
    %v1002 = vpack.c.b16 %v1001, %v1001
    %1003 = vrot.lane.b32.xlu0 %v1002, 64
    %v1004 = vpop.permute.xlu0 %1003
    %v1006 = vsel %vm256, %v220, 0
    %v1009 = vsel %vm256, %v1004, 0
    %1011 = vmatprep.subr.bf16.mxu0 0
    %1012 = vmatpush1.bf16.xpose.msra.mxu0 %v1009
    %1013 = vmatprep.subr.bf16.mxu0 0
    %1014 = vmatpush1.bf16.xpose.msra.mxu0 0
    %1015 = vmatprep.subr.bf16.mxu0 0
    %1016 = vmatpush1.bf16.xpose.msra.mxu0 0
    %1017 = vmatprep.subr.bf16.mxu0 0
    %1018 = vmatpush1.bf16.xpose.msra.mxu0 0
    %1019 = vmatprep.subr.bf16.mxu0 0
    %1020 = vmatpush1.bf16.xpose.msra.mxu0 0
    %1021 = vmatprep.subr.bf16.mxu0 0
    %1022 = vmatpush1.bf16.xpose.msra.mxu0 0
    %1023 = vmatprep.subr.bf16.mxu0 0
    %1024 = vmatpush1.bf16.xpose.msra.mxu0 0
    %1025 = vmatprep.subr.bf16.mxu0 0
    %1026 = vmatpush1.bf16.xpose.msra.mxu0 0
    %1027 = vmatprep.subr.bf16.mxu0 0
    %1028 = vmatpush1.bf16.xpose.msra.mxu0 0
    %1029 = vmatprep.subr.bf16.mxu0 0
    %1030 = vmatpush1.bf16.xpose.msra.mxu0 0
    %1031 = vmatprep.subr.bf16.mxu0 0
    %1032 = vmatpush1.bf16.xpose.msra.mxu0 0
    %1033 = vmatprep.subr.bf16.mxu0 0
    %1034 = vmatpush1.bf16.xpose.msra.mxu0 0
    %1035 = vmatprep.subr.bf16.mxu0 0
    %1036 = vmatpush1.bf16.xpose.msra.mxu0 0
    %1037 = vmatprep.subr.bf16.mxu0 0
    %1038 = vmatpush1.bf16.xpose.msra.mxu0 0
    %1039 = vmatprep.subr.bf16.mxu0 0
    %1040 = vmatpush1.bf16.xpose.msra.mxu0 0
    %1041 = vmatprep.subr.bf16.mxu0 0
    %1042 = vmatpush1.bf16.xpose.msra.mxu0 0
    %1043 = vmatprep.mubr.bf16.mxu0 0
    %1044 = vmatmul.mubr.bf16.gmra.mrb[0].mxu0 %v1006
    %v1045 = vpop.f32.mrb[0].mxu0
    %v1046 = vadd.f32 0.0, %v1045
    %v1047 = vpop.f32.mrb[0].mxu0
    %v1048 = vpop.f32.mrb[0].mxu0
    %v1049 = vpop.f32.mrb[0].mxu0
    %1050 = vdwg.mxu0
    %v1051 = vsel %vm256, %v298, -inf
    %1052 = vmax.xlane.f32.xlu0 %v1051
    %v1053 = vpop.xlane.xlu0 %1052
    %v1054 = vsel %vm256, %v346, -inf
    %1055 = vmax.xlane.f32.xlu0 %v1054
    %v1056 = vpop.xlane.xlu0 %1055
    %v1057 = vsel %vm256, %v396, -inf
    %1058 = vmax.xlane.f32.xlu0 %v1057
    %v1059 = vpop.xlane.xlu0 %1058
    %v1060 = vsel %vm256, %v446, -inf
    %1061 = vmax.xlane.f32.xlu0 %v1060
    %v1062 = vpop.xlane.xlu0 %1061
    %v1063 = vsel %vm256, %v496, -inf
    %1064 = vmax.xlane.f32.xlu0 %v1063
    %v1065 = vpop.xlane.xlu0 %1064
    %v1066 = vsel %vm256, %v546, -inf
    %1067 = vmax.xlane.f32.xlu0 %v1066
    %v1068 = vpop.xlane.xlu0 %1067
    %v1069 = vsel %vm256, %v596, -inf
    %1070 = vmax.xlane.f32.xlu0 %v1069
    %v1071 = vpop.xlane.xlu0 %1070
    %v1072 = vsel %vm256, %v646, -inf
    %1073 = vmax.xlane.f32.xlu0 %v1072
    %v1074 = vpop.xlane.xlu0 %1073
    %v1075 = vsel %vm256, %v696, -inf
    %1076 = vmax.xlane.f32.xlu0 %v1075
    %v1077 = vpop.xlane.xlu0 %1076
    %v1078 = vsel %vm256, %v746, -inf
    %1079 = vmax.xlane.f32.xlu0 %v1078
    %v1080 = vpop.xlane.xlu0 %1079
    %v1081 = vsel %vm256, %v796, -inf
    %1082 = vmax.xlane.f32.xlu0 %v1081
    %v1083 = vpop.xlane.xlu0 %1082
    %v1084 = vsel %vm256, %v846, -inf
    %1085 = vmax.xlane.f32.xlu0 %v1084
    %v1086 = vpop.xlane.xlu0 %1085
    %v1087 = vsel %vm256, %v896, -inf
    %1088 = vmax.xlane.f32.xlu0 %v1087
    %v1089 = vpop.xlane.xlu0 %1088
    %v1090 = vsel %vm256, %v946, -inf
    %1091 = vmax.xlane.f32.xlu0 %v1090
    %v1092 = vpop.xlane.xlu0 %1091
    %v1093 = vsel %vm256, %v996, -inf
    %1094 = vmax.xlane.f32.xlu0 %v1093
    %v1095 = vpop.xlane.xlu0 %1094
    %v1096 = vsel %vm256, %v1046, -inf
    %1097 = vmax.xlane.f32.xlu0 %v1096
    %v1098 = vpop.xlane.xlu0 %1097
    %v1099 = vsub.f32 %v298, %v1053
    %v1100 = vsub.f32 %v346, %v1056
    %v1101 = vsub.f32 %v396, %v1059
    %v1102 = vsub.f32 %v446, %v1062
    %v1103 = vsub.f32 %v496, %v1065
    %v1104 = vsub.f32 %v546, %v1068
    %v1105 = vsub.f32 %v596, %v1071
    %v1106 = vsub.f32 %v646, %v1074
    %v1107 = vsub.f32 %v696, %v1077
    %v1108 = vsub.f32 %v746, %v1080
    %v1109 = vsub.f32 %v796, %v1083
    %v1110 = vsub.f32 %v846, %v1086
    %v1111 = vsub.f32 %v896, %v1089
    %v1112 = vsub.f32 %v946, %v1092
    %v1113 = vsub.f32 %v996, %v1095
    %v1114 = vsub.f32 %v1046, %v1098
    %v1115 = vmul.f32 %v1099, 1.442695
    %v1116 = vpow.pop %v1115
    %v1117 = vmul.f32 %v1100, 1.442695
    %v1118 = vpow.pop %v1117
    %v1119 = vmul.f32 %v1101, 1.442695
    %v1120 = vpow.pop %v1119
    %v1121 = vmul.f32 %v1102, 1.442695
    %v1122 = vpow.pop %v1121
    %v1123 = vmul.f32 %v1103, 1.442695
    %v1124 = vpow.pop %v1123
    %v1125 = vmul.f32 %v1104, 1.442695
    %v1126 = vpow.pop %v1125
    %v1127 = vmul.f32 %v1105, 1.442695
    %v1128 = vpow.pop %v1127
    %v1129 = vmul.f32 %v1106, 1.442695
    %v1130 = vpow.pop %v1129
    %v1131 = vmul.f32 %v1107, 1.442695
    %v1132 = vpow.pop %v1131
    %v1133 = vmul.f32 %v1108, 1.442695
    %v1134 = vpow.pop %v1133
    %v1135 = vmul.f32 %v1109, 1.442695
    %v1136 = vpow.pop %v1135
    %v1137 = vmul.f32 %v1110, 1.442695
    %v1138 = vpow.pop %v1137
    %v1139 = vmul.f32 %v1111, 1.442695
    %v1140 = vpow.pop %v1139
    %v1141 = vmul.f32 %v1112, 1.442695
    %v1142 = vpow.pop %v1141
    %v1143 = vmul.f32 %v1113, 1.442695
    %v1144 = vpow.pop %v1143
    %v1145 = vmul.f32 %v1114, 1.442695
    %v1146 = vpow.pop %v1145
    %v1147 = vsel %vm256, %v1116, 0.0
    %1148 = vadd.xlane.f32.xlu0 %v1147
    %v1149 = vpop.xlane.xlu0 %1148
    %v1150 = vsel %vm256, %v1118, 0.0
    %1151 = vadd.xlane.f32.xlu0 %v1150
    %v1152 = vpop.xlane.xlu0 %1151
    %v1153 = vsel %vm256, %v1120, 0.0
    %1154 = vadd.xlane.f32.xlu0 %v1153
    %v1155 = vpop.xlane.xlu0 %1154
    %v1156 = vsel %vm256, %v1122, 0.0
    %1157 = vadd.xlane.f32.xlu0 %v1156
    %v1158 = vpop.xlane.xlu0 %1157
    %v1159 = vsel %vm256, %v1124, 0.0
    %1160 = vadd.xlane.f32.xlu0 %v1159
    %v1161 = vpop.xlane.xlu0 %1160
    %v1162 = vsel %vm256, %v1126, 0.0
    %1163 = vadd.xlane.f32.xlu0 %v1162
    %v1164 = vpop.xlane.xlu0 %1163
    %v1165 = vsel %vm256, %v1128, 0.0
    %1166 = vadd.xlane.f32.xlu0 %v1165
    %v1167 = vpop.xlane.xlu0 %1166
    %v1168 = vsel %vm256, %v1130, 0.0
    %1169 = vadd.xlane.f32.xlu0 %v1168
    %v1170 = vpop.xlane.xlu0 %1169
    %v1171 = vsel %vm256, %v1132, 0.0
    %1172 = vadd.xlane.f32.xlu0 %v1171
    %v1173 = vpop.xlane.xlu0 %1172
    %v1174 = vsel %vm256, %v1134, 0.0
    %1175 = vadd.xlane.f32.xlu0 %v1174
    %v1176 = vpop.xlane.xlu0 %1175
    %v1177 = vsel %vm256, %v1136, 0.0
    %1178 = vadd.xlane.f32.xlu0 %v1177
    %v1179 = vpop.xlane.xlu0 %1178
    %v1180 = vsel %vm256, %v1138, 0.0
    %1181 = vadd.xlane.f32.xlu0 %v1180
    %v1182 = vpop.xlane.xlu0 %1181
    %v1183 = vsel %vm256, %v1140, 0.0
    %1184 = vadd.xlane.f32.xlu0 %v1183
    %v1185 = vpop.xlane.xlu0 %1184
    %v1186 = vsel %vm256, %v1142, 0.0
    %1187 = vadd.xlane.f32.xlu0 %v1186
    %v1188 = vpop.xlane.xlu0 %1187
    %v1189 = vsel %vm256, %v1144, 0.0
    %1190 = vadd.xlane.f32.xlu0 %v1189
    %v1191 = vpop.xlane.xlu0 %1190
    %v1192 = vsel %vm256, %v1146, 0.0
    %1193 = vadd.xlane.f32.xlu0 %v1192
    %v1194 = vpop.xlane.xlu0 %1193
    %v1195 = vrcp.pop %v1149
    %v1196 = vrcp.pop %v1152
    %v1197 = vrcp.pop %v1155
    %v1198 = vrcp.pop %v1158
    %v1199 = vrcp.pop %v1161
    %v1200 = vrcp.pop %v1164
    %v1201 = vrcp.pop %v1167
    %v1202 = vrcp.pop %v1170
    %v1203 = vrcp.pop %v1173
    %v1204 = vrcp.pop %v1176
    %v1205 = vrcp.pop %v1179
    %v1206 = vrcp.pop %v1182
    %v1207 = vrcp.pop %v1185
    %v1208 = vrcp.pop %v1188
    %v1209 = vrcp.pop %v1191
    %v1210 = vrcp.pop %v1194
    %v1211 = vmul.f32 %v1116, %v1195
    %v1212 = vmul.f32 %v1118, %v1196
    %v1213 = vmul.f32 %v1120, %v1197
    %v1214 = vmul.f32 %v1122, %v1198
    %v1215 = vmul.f32 %v1124, %v1199
    %v1216 = vmul.f32 %v1126, %v1200
    %v1217 = vmul.f32 %v1128, %v1201
    %v1218 = vmul.f32 %v1130, %v1202
    %v1219 = vmul.f32 %v1132, %v1203
    %v1220 = vmul.f32 %v1134, %v1204
    %v1221 = vmul.f32 %v1136, %v1205
    %v1222 = vmul.f32 %v1138, %v1206
    %v1223 = vmul.f32 %v1140, %v1207
    %v1224 = vmul.f32 %v1142, %v1208
    %v1225 = vmul.f32 %v1144, %v1209
    %v1226 = vmul.f32 %v1146, %v1210
    %v1227 = vpack.c.bf16 %v1211, %v1211
    %v1228 = vpack.c.bf16 %v1212, %v1212
    %v1229 = vpack.c.bf16 %v1213, %v1213
    %v1230 = vpack.c.bf16 %v1214, %v1214
    %v1231 = vpack.c.bf16 %v1215, %v1215
    %v1232 = vpack.c.bf16 %v1216, %v1216
    %v1233 = vpack.c.bf16 %v1217, %v1217
    %v1234 = vpack.c.bf16 %v1218, %v1218
    %v1235 = vpack.c.bf16 %v1219, %v1219
    %v1236 = vpack.c.bf16 %v1220, %v1220
    %v1237 = vpack.c.bf16 %v1221, %v1221
    %v1238 = vpack.c.bf16 %v1222, %v1222
    %v1239 = vpack.c.bf16 %v1223, %v1223
    %v1240 = vpack.c.bf16 %v1224, %v1224
    %v1241 = vpack.c.bf16 %v1225, %v1225
    %v1242 = vpack.c.bf16 %v1226, %v1226
    %v1244 = vsel %vm256, %v1227, 0
    %vm1246 = vcmask 1043456
    %v1248 = vsel %vm1246, %v224, 0
    %1250 = vmatprep.subr.bf16.mxu0 0
    %1251 = vmatpush1.bf16.msra.mxu0 %v1248
    %1252 = vmatprep.subr.bf16.mxu0 0
    %1253 = vmatpush1.bf16.msra.mxu0 0
    %1254 = vmatprep.subr.bf16.mxu0 0
    %1255 = vmatpush1.bf16.msra.mxu0 0
    %1256 = vmatprep.subr.bf16.mxu0 0
    %1257 = vmatpush1.bf16.msra.mxu0 0
    %1258 = vmatprep.subr.bf16.mxu0 0
    %1259 = vmatpush1.bf16.msra.mxu0 0
    %1260 = vmatprep.subr.bf16.mxu0 0
    %1261 = vmatpush1.bf16.msra.mxu0 0
    %1262 = vmatprep.subr.bf16.mxu0 0
    %1263 = vmatpush1.bf16.msra.mxu0 0
    %1264 = vmatprep.subr.bf16.mxu0 0
    %1265 = vmatpush1.bf16.msra.mxu0 0
    %1266 = vmatprep.subr.bf16.mxu0 0
    %1267 = vmatpush1.bf16.msra.mxu0 0
    %1268 = vmatprep.subr.bf16.mxu0 0
    %1269 = vmatpush1.bf16.msra.mxu0 0
    %1270 = vmatprep.subr.bf16.mxu0 0
    %1271 = vmatpush1.bf16.msra.mxu0 0
    %1272 = vmatprep.subr.bf16.mxu0 0
    %1273 = vmatpush1.bf16.msra.mxu0 0
    %1274 = vmatprep.subr.bf16.mxu0 0
    %1275 = vmatpush1.bf16.msra.mxu0 0
    %1276 = vmatprep.subr.bf16.mxu0 0
    %1277 = vmatpush1.bf16.msra.mxu0 0
    %1278 = vmatprep.subr.bf16.mxu0 0
    %1279 = vmatpush1.bf16.msra.mxu0 0
    %1280 = vmatprep.subr.bf16.mxu0 0
    %1281 = vmatpush1.bf16.msra.mxu0 0
    %1282 = vmatprep.mubr.bf16.mxu0 0
    %1283 = vmatmul.mubr.bf16.gmra.mrb[0].mxu0 %v1244
    %v1284 = vpop.f32.mrb[0].mxu0
    %v1285 = vadd.f32 0.0, %v1284
    %v1286 = vpop.f32.mrb[0].mxu0
    %v1287 = vpop.f32.mrb[0].mxu0
    %v1288 = vpop.f32.mrb[0].mxu0
    %1289 = vdwg.mxu0
    %v1291 = vsel %vm256, %v1228, 0
    %v1294 = vsel %vm1246, %v225, 0
    %1296 = vmatprep.subr.bf16.mxu0 0
    %1297 = vmatpush1.bf16.msra.mxu0 %v1294
    %1298 = vmatprep.subr.bf16.mxu0 0
    %1299 = vmatpush1.bf16.msra.mxu0 0
    %1300 = vmatprep.subr.bf16.mxu0 0
    %1301 = vmatpush1.bf16.msra.mxu0 0
    %1302 = vmatprep.subr.bf16.mxu0 0
    %1303 = vmatpush1.bf16.msra.mxu0 0
    %1304 = vmatprep.subr.bf16.mxu0 0
    %1305 = vmatpush1.bf16.msra.mxu0 0
    %1306 = vmatprep.subr.bf16.mxu0 0
    %1307 = vmatpush1.bf16.msra.mxu0 0
    %1308 = vmatprep.subr.bf16.mxu0 0
    %1309 = vmatpush1.bf16.msra.mxu0 0
    %1310 = vmatprep.subr.bf16.mxu0 0
    %1311 = vmatpush1.bf16.msra.mxu0 0
    %1312 = vmatprep.subr.bf16.mxu0 0
    %1313 = vmatpush1.bf16.msra.mxu0 0
    %1314 = vmatprep.subr.bf16.mxu0 0
    %1315 = vmatpush1.bf16.msra.mxu0 0
    %1316 = vmatprep.subr.bf16.mxu0 0
    %1317 = vmatpush1.bf16.msra.mxu0 0
    %1318 = vmatprep.subr.bf16.mxu0 0
    %1319 = vmatpush1.bf16.msra.mxu0 0
    %1320 = vmatprep.subr.bf16.mxu0 0
    %1321 = vmatpush1.bf16.msra.mxu0 0
    %1322 = vmatprep.subr.bf16.mxu0 0
    %1323 = vmatpush1.bf16.msra.mxu0 0
    %1324 = vmatprep.subr.bf16.mxu0 0
    %1325 = vmatpush1.bf16.msra.mxu0 0
    %1326 = vmatprep.subr.bf16.mxu0 0
    %1327 = vmatpush1.bf16.msra.mxu0 0
    %1328 = vmatprep.mubr.bf16.mxu0 0
    %1329 = vmatmul.mubr.bf16.gmra.mrb[0].mxu0 %v1291
    %v1330 = vpop.f32.mrb[0].mxu0
    %v1331 = vadd.f32 0.0, %v1330
    %v1332 = vpop.f32.mrb[0].mxu0
    %v1333 = vpop.f32.mrb[0].mxu0
    %v1334 = vpop.f32.mrb[0].mxu0
    %1335 = vdwg.mxu0
    %v1337 = vsel %vm256, %v1229, 0
    %v1340 = vsel %vm1246, %v227, 0
    %1342 = vmatprep.subr.bf16.mxu0 0
    %1343 = vmatpush1.bf16.msra.mxu0 %v1340
    %1344 = vmatprep.subr.bf16.mxu0 0
    %1345 = vmatpush1.bf16.msra.mxu0 0
    %1346 = vmatprep.subr.bf16.mxu0 0
    %1347 = vmatpush1.bf16.msra.mxu0 0
    %1348 = vmatprep.subr.bf16.mxu0 0
    %1349 = vmatpush1.bf16.msra.mxu0 0
    %1350 = vmatprep.subr.bf16.mxu0 0
    %1351 = vmatpush1.bf16.msra.mxu0 0
    %1352 = vmatprep.subr.bf16.mxu0 0
    %1353 = vmatpush1.bf16.msra.mxu0 0
    %1354 = vmatprep.subr.bf16.mxu0 0
    %1355 = vmatpush1.bf16.msra.mxu0 0
    %1356 = vmatprep.subr.bf16.mxu0 0
    %1357 = vmatpush1.bf16.msra.mxu0 0
    %1358 = vmatprep.subr.bf16.mxu0 0
    %1359 = vmatpush1.bf16.msra.mxu0 0
    %1360 = vmatprep.subr.bf16.mxu0 0
    %1361 = vmatpush1.bf16.msra.mxu0 0
    %1362 = vmatprep.subr.bf16.mxu0 0
    %1363 = vmatpush1.bf16.msra.mxu0 0
    %1364 = vmatprep.subr.bf16.mxu0 0
    %1365 = vmatpush1.bf16.msra.mxu0 0
    %1366 = vmatprep.subr.bf16.mxu0 0
    %1367 = vmatpush1.bf16.msra.mxu0 0
    %1368 = vmatprep.subr.bf16.mxu0 0
    %1369 = vmatpush1.bf16.msra.mxu0 0
    %1370 = vmatprep.subr.bf16.mxu0 0
    %1371 = vmatpush1.bf16.msra.mxu0 0
    %1372 = vmatprep.subr.bf16.mxu0 0
    %1373 = vmatpush1.bf16.msra.mxu0 0
    %1374 = vmatprep.mubr.bf16.mxu0 0
    %1375 = vmatmul.mubr.bf16.gmra.mrb[0].mxu0 %v1337
    %v1376 = vpop.f32.mrb[0].mxu0
    %v1377 = vadd.f32 0.0, %v1376
    %v1378 = vpop.f32.mrb[0].mxu0
    %v1379 = vpop.f32.mrb[0].mxu0
    %v1380 = vpop.f32.mrb[0].mxu0
    %1381 = vdwg.mxu0
    %v1383 = vsel %vm256, %v1230, 0
    %v1386 = vsel %vm1246, %v229, 0
    %1388 = vmatprep.subr.bf16.mxu0 0
    %1389 = vmatpush1.bf16.msra.mxu0 %v1386
    %1390 = vmatprep.subr.bf16.mxu0 0
    %1391 = vmatpush1.bf16.msra.mxu0 0
    %1392 = vmatprep.subr.bf16.mxu0 0
    %1393 = vmatpush1.bf16.msra.mxu0 0
    %1394 = vmatprep.subr.bf16.mxu0 0
    %1395 = vmatpush1.bf16.msra.mxu0 0
    %1396 = vmatprep.subr.bf16.mxu0 0
    %1397 = vmatpush1.bf16.msra.mxu0 0
    %1398 = vmatprep.subr.bf16.mxu0 0
    %1399 = vmatpush1.bf16.msra.mxu0 0
    %1400 = vmatprep.subr.bf16.mxu0 0
    %1401 = vmatpush1.bf16.msra.mxu0 0
    %1402 = vmatprep.subr.bf16.mxu0 0
    %1403 = vmatpush1.bf16.msra.mxu0 0
    %1404 = vmatprep.subr.bf16.mxu0 0
    %1405 = vmatpush1.bf16.msra.mxu0 0
    %1406 = vmatprep.subr.bf16.mxu0 0
    %1407 = vmatpush1.bf16.msra.mxu0 0
    %1408 = vmatprep.subr.bf16.mxu0 0
    %1409 = vmatpush1.bf16.msra.mxu0 0
    %1410 = vmatprep.subr.bf16.mxu0 0
    %1411 = vmatpush1.bf16.msra.mxu0 0
    %1412 = vmatprep.subr.bf16.mxu0 0
    %1413 = vmatpush1.bf16.msra.mxu0 0
    %1414 = vmatprep.subr.bf16.mxu0 0
    %1415 = vmatpush1.bf16.msra.mxu0 0
    %1416 = vmatprep.subr.bf16.mxu0 0
    %1417 = vmatpush1.bf16.msra.mxu0 0
    %1418 = vmatprep.subr.bf16.mxu0 0
    %1419 = vmatpush1.bf16.msra.mxu0 0
    %1420 = vmatprep.mubr.bf16.mxu0 0
    %1421 = vmatmul.mubr.bf16.gmra.mrb[0].mxu0 %v1383
    %v1422 = vpop.f32.mrb[0].mxu0
    %v1423 = vadd.f32 0.0, %v1422
    %v1424 = vpop.f32.mrb[0].mxu0
    %v1425 = vpop.f32.mrb[0].mxu0
    %v1426 = vpop.f32.mrb[0].mxu0
    %1427 = vdwg.mxu0
    %v1429 = vsel %vm256, %v1231, 0
    %v1432 = vsel %vm1246, %v231, 0
    %1434 = vmatprep.subr.bf16.mxu0 0
    %1435 = vmatpush1.bf16.msra.mxu0 %v1432
    %1436 = vmatprep.subr.bf16.mxu0 0
    %1437 = vmatpush1.bf16.msra.mxu0 0
    %1438 = vmatprep.subr.bf16.mxu0 0
    %1439 = vmatpush1.bf16.msra.mxu0 0
    %1440 = vmatprep.subr.bf16.mxu0 0
    %1441 = vmatpush1.bf16.msra.mxu0 0
    %1442 = vmatprep.subr.bf16.mxu0 0
    %1443 = vmatpush1.bf16.msra.mxu0 0
    %1444 = vmatprep.subr.bf16.mxu0 0
    %1445 = vmatpush1.bf16.msra.mxu0 0
    %1446 = vmatprep.subr.bf16.mxu0 0
    %1447 = vmatpush1.bf16.msra.mxu0 0
    %1448 = vmatprep.subr.bf16.mxu0 0
    %1449 = vmatpush1.bf16.msra.mxu0 0
    %1450 = vmatprep.subr.bf16.mxu0 0
    %1451 = vmatpush1.bf16.msra.mxu0 0
    %1452 = vmatprep.subr.bf16.mxu0 0
    %1453 = vmatpush1.bf16.msra.mxu0 0
    %1454 = vmatprep.subr.bf16.mxu0 0
    %1455 = vmatpush1.bf16.msra.mxu0 0
    %1456 = vmatprep.subr.bf16.mxu0 0
    %1457 = vmatpush1.bf16.msra.mxu0 0
    %1458 = vmatprep.subr.bf16.mxu0 0
    %1459 = vmatpush1.bf16.msra.mxu0 0
    %1460 = vmatprep.subr.bf16.mxu0 0
    %1461 = vmatpush1.bf16.msra.mxu0 0
    %1462 = vmatprep.subr.bf16.mxu0 0
    %1463 = vmatpush1.bf16.msra.mxu0 0
    %1464 = vmatprep.subr.bf16.mxu0 0
    %1465 = vmatpush1.bf16.msra.mxu0 0
    %1466 = vmatprep.mubr.bf16.mxu0 0
    %1467 = vmatmul.mubr.bf16.gmra.mrb[0].mxu0 %v1429
    %v1468 = vpop.f32.mrb[0].mxu0
    %v1469 = vadd.f32 0.0, %v1468
    %v1470 = vpop.f32.mrb[0].mxu0
    %v1471 = vpop.f32.mrb[0].mxu0
    %v1472 = vpop.f32.mrb[0].mxu0
    %1473 = vdwg.mxu0
    %v1475 = vsel %vm256, %v1232, 0
    %v1478 = vsel %vm1246, %v233, 0
    %1480 = vmatprep.subr.bf16.mxu0 0
    %1481 = vmatpush1.bf16.msra.mxu0 %v1478
    %1482 = vmatprep.subr.bf16.mxu0 0
    %1483 = vmatpush1.bf16.msra.mxu0 0
    %1484 = vmatprep.subr.bf16.mxu0 0
    %1485 = vmatpush1.bf16.msra.mxu0 0
    %1486 = vmatprep.subr.bf16.mxu0 0
    %1487 = vmatpush1.bf16.msra.mxu0 0
    %1488 = vmatprep.subr.bf16.mxu0 0
    %1489 = vmatpush1.bf16.msra.mxu0 0
    %1490 = vmatprep.subr.bf16.mxu0 0
    %1491 = vmatpush1.bf16.msra.mxu0 0
    %1492 = vmatprep.subr.bf16.mxu0 0
    %1493 = vmatpush1.bf16.msra.mxu0 0
    %1494 = vmatprep.subr.bf16.mxu0 0
    %1495 = vmatpush1.bf16.msra.mxu0 0
    %1496 = vmatprep.subr.bf16.mxu0 0
    %1497 = vmatpush1.bf16.msra.mxu0 0
    %1498 = vmatprep.subr.bf16.mxu0 0
    %1499 = vmatpush1.bf16.msra.mxu0 0
    %1500 = vmatprep.subr.bf16.mxu0 0
    %1501 = vmatpush1.bf16.msra.mxu0 0
    %1502 = vmatprep.subr.bf16.mxu0 0
    %1503 = vmatpush1.bf16.msra.mxu0 0
    %1504 = vmatprep.subr.bf16.mxu0 0
    %1505 = vmatpush1.bf16.msra.mxu0 0
    %1506 = vmatprep.subr.bf16.mxu0 0
    %1507 = vmatpush1.bf16.msra.mxu0 0
    %1508 = vmatprep.subr.bf16.mxu0 0
    %1509 = vmatpush1.bf16.msra.mxu0 0
    %1510 = vmatprep.subr.bf16.mxu0 0
    %1511 = vmatpush1.bf16.msra.mxu0 0
    %1512 = vmatprep.mubr.bf16.mxu0 0
    %1513 = vmatmul.mubr.bf16.gmra.mrb[0].mxu0 %v1475
    %v1514 = vpop.f32.mrb[0].mxu0
    %v1515 = vadd.f32 0.0, %v1514
    %v1516 = vpop.f32.mrb[0].mxu0
    %v1517 = vpop.f32.mrb[0].mxu0
    %v1518 = vpop.f32.mrb[0].mxu0
    %1519 = vdwg.mxu0
    %v1521 = vsel %vm256, %v1233, 0
    %v1524 = vsel %vm1246, %v235, 0
    %1526 = vmatprep.subr.bf16.mxu0 0
    %1527 = vmatpush1.bf16.msra.mxu0 %v1524
    %1528 = vmatprep.subr.bf16.mxu0 0
    %1529 = vmatpush1.bf16.msra.mxu0 0
    %1530 = vmatprep.subr.bf16.mxu0 0
    %1531 = vmatpush1.bf16.msra.mxu0 0
    %1532 = vmatprep.subr.bf16.mxu0 0
    %1533 = vmatpush1.bf16.msra.mxu0 0
    %1534 = vmatprep.subr.bf16.mxu0 0
    %1535 = vmatpush1.bf16.msra.mxu0 0
    %1536 = vmatprep.subr.bf16.mxu0 0
    %1537 = vmatpush1.bf16.msra.mxu0 0
    %1538 = vmatprep.subr.bf16.mxu0 0
    %1539 = vmatpush1.bf16.msra.mxu0 0
    %1540 = vmatprep.subr.bf16.mxu0 0
    %1541 = vmatpush1.bf16.msra.mxu0 0
    %1542 = vmatprep.subr.bf16.mxu0 0
    %1543 = vmatpush1.bf16.msra.mxu0 0
    %1544 = vmatprep.subr.bf16.mxu0 0
    %1545 = vmatpush1.bf16.msra.mxu0 0
    %1546 = vmatprep.subr.bf16.mxu0 0
    %1547 = vmatpush1.bf16.msra.mxu0 0
    %1548 = vmatprep.subr.bf16.mxu0 0
    %1549 = vmatpush1.bf16.msra.mxu0 0
    %1550 = vmatprep.subr.bf16.mxu0 0
    %1551 = vmatpush1.bf16.msra.mxu0 0
    %1552 = vmatprep.subr.bf16.mxu0 0
    %1553 = vmatpush1.bf16.msra.mxu0 0
    %1554 = vmatprep.subr.bf16.mxu0 0
    %1555 = vmatpush1.bf16.msra.mxu0 0
    %1556 = vmatprep.subr.bf16.mxu0 0
    %1557 = vmatpush1.bf16.msra.mxu0 0
    %1558 = vmatprep.mubr.bf16.mxu0 0
    %1559 = vmatmul.mubr.bf16.gmra.mrb[0].mxu0 %v1521
    %v1560 = vpop.f32.mrb[0].mxu0
    %v1561 = vadd.f32 0.0, %v1560
    %v1562 = vpop.f32.mrb[0].mxu0
    %v1563 = vpop.f32.mrb[0].mxu0
    %v1564 = vpop.f32.mrb[0].mxu0
    %1565 = vdwg.mxu0
    %v1567 = vsel %vm256, %v1234, 0
    %v1570 = vsel %vm1246, %v237, 0
    %1572 = vmatprep.subr.bf16.mxu0 0
    %1573 = vmatpush1.bf16.msra.mxu0 %v1570
    %1574 = vmatprep.subr.bf16.mxu0 0
    %1575 = vmatpush1.bf16.msra.mxu0 0
    %1576 = vmatprep.subr.bf16.mxu0 0
    %1577 = vmatpush1.bf16.msra.mxu0 0
    %1578 = vmatprep.subr.bf16.mxu0 0
    %1579 = vmatpush1.bf16.msra.mxu0 0
    %1580 = vmatprep.subr.bf16.mxu0 0
    %1581 = vmatpush1.bf16.msra.mxu0 0
    %1582 = vmatprep.subr.bf16.mxu0 0
    %1583 = vmatpush1.bf16.msra.mxu0 0
    %1584 = vmatprep.subr.bf16.mxu0 0
    %1585 = vmatpush1.bf16.msra.mxu0 0
    %1586 = vmatprep.subr.bf16.mxu0 0
    %1587 = vmatpush1.bf16.msra.mxu0 0
    %1588 = vmatprep.subr.bf16.mxu0 0
    %1589 = vmatpush1.bf16.msra.mxu0 0
    %1590 = vmatprep.subr.bf16.mxu0 0
    %1591 = vmatpush1.bf16.msra.mxu0 0
    %1592 = vmatprep.subr.bf16.mxu0 0
    %1593 = vmatpush1.bf16.msra.mxu0 0
    %1594 = vmatprep.subr.bf16.mxu0 0
    %1595 = vmatpush1.bf16.msra.mxu0 0
    %1596 = vmatprep.subr.bf16.mxu0 0
    %1597 = vmatpush1.bf16.msra.mxu0 0
    %1598 = vmatprep.subr.bf16.mxu0 0
    %1599 = vmatpush1.bf16.msra.mxu0 0
    %1600 = vmatprep.subr.bf16.mxu0 0
    %1601 = vmatpush1.bf16.msra.mxu0 0
    %1602 = vmatprep.subr.bf16.mxu0 0
    %1603 = vmatpush1.bf16.msra.mxu0 0
    %1604 = vmatprep.mubr.bf16.mxu0 0
    %1605 = vmatmul.mubr.bf16.gmra.mrb[0].mxu0 %v1567
    %v1606 = vpop.f32.mrb[0].mxu0
    %v1607 = vadd.f32 0.0, %v1606
    %v1608 = vpop.f32.mrb[0].mxu0
    %v1609 = vpop.f32.mrb[0].mxu0
    %v1610 = vpop.f32.mrb[0].mxu0
    %1611 = vdwg.mxu0
    %v1613 = vsel %vm256, %v1235, 0
    %v1616 = vsel %vm1246, %v239, 0
    %1618 = vmatprep.subr.bf16.mxu0 0
    %1619 = vmatpush1.bf16.msra.mxu0 %v1616
    %1620 = vmatprep.subr.bf16.mxu0 0
    %1621 = vmatpush1.bf16.msra.mxu0 0
    %1622 = vmatprep.subr.bf16.mxu0 0
    %1623 = vmatpush1.bf16.msra.mxu0 0
    %1624 = vmatprep.subr.bf16.mxu0 0
    %1625 = vmatpush1.bf16.msra.mxu0 0
    %1626 = vmatprep.subr.bf16.mxu0 0
    %1627 = vmatpush1.bf16.msra.mxu0 0
    %1628 = vmatprep.subr.bf16.mxu0 0
    %1629 = vmatpush1.bf16.msra.mxu0 0
    %1630 = vmatprep.subr.bf16.mxu0 0
    %1631 = vmatpush1.bf16.msra.mxu0 0
    %1632 = vmatprep.subr.bf16.mxu0 0
    %1633 = vmatpush1.bf16.msra.mxu0 0
    %1634 = vmatprep.subr.bf16.mxu0 0
    %1635 = vmatpush1.bf16.msra.mxu0 0
    %1636 = vmatprep.subr.bf16.mxu0 0
    %1637 = vmatpush1.bf16.msra.mxu0 0
    %1638 = vmatprep.subr.bf16.mxu0 0
    %1639 = vmatpush1.bf16.msra.mxu0 0
    %1640 = vmatprep.subr.bf16.mxu0 0
    %1641 = vmatpush1.bf16.msra.mxu0 0
    %1642 = vmatprep.subr.bf16.mxu0 0
    %1643 = vmatpush1.bf16.msra.mxu0 0
    %1644 = vmatprep.subr.bf16.mxu0 0
    %1645 = vmatpush1.bf16.msra.mxu0 0
    %1646 = vmatprep.subr.bf16.mxu0 0
    %1647 = vmatpush1.bf16.msra.mxu0 0
    %1648 = vmatprep.subr.bf16.mxu0 0
    %1649 = vmatpush1.bf16.msra.mxu0 0
    %1650 = vmatprep.mubr.bf16.mxu0 0
    %1651 = vmatmul.mubr.bf16.gmra.mrb[0].mxu0 %v1613
    %v1652 = vpop.f32.mrb[0].mxu0
    %v1653 = vadd.f32 0.0, %v1652
    %v1654 = vpop.f32.mrb[0].mxu0
    %v1655 = vpop.f32.mrb[0].mxu0
    %v1656 = vpop.f32.mrb[0].mxu0
    %1657 = vdwg.mxu0
    %v1659 = vsel %vm256, %v1236, 0
    %v1662 = vsel %vm1246, %v241, 0
    %1664 = vmatprep.subr.bf16.mxu0 0
    %1665 = vmatpush1.bf16.msra.mxu0 %v1662
    %1666 = vmatprep.subr.bf16.mxu0 0
    %1667 = vmatpush1.bf16.msra.mxu0 0
    %1668 = vmatprep.subr.bf16.mxu0 0
    %1669 = vmatpush1.bf16.msra.mxu0 0
    %1670 = vmatprep.subr.bf16.mxu0 0
    %1671 = vmatpush1.bf16.msra.mxu0 0
    %1672 = vmatprep.subr.bf16.mxu0 0
    %1673 = vmatpush1.bf16.msra.mxu0 0
    %1674 = vmatprep.subr.bf16.mxu0 0
    %1675 = vmatpush1.bf16.msra.mxu0 0
    %1676 = vmatprep.subr.bf16.mxu0 0
    %1677 = vmatpush1.bf16.msra.mxu0 0
    %1678 = vmatprep.subr.bf16.mxu0 0
    %1679 = vmatpush1.bf16.msra.mxu0 0
    %1680 = vmatprep.subr.bf16.mxu0 0
    %1681 = vmatpush1.bf16.msra.mxu0 0
    %1682 = vmatprep.subr.bf16.mxu0 0
    %1683 = vmatpush1.bf16.msra.mxu0 0
    %1684 = vmatprep.subr.bf16.mxu0 0
    %1685 = vmatpush1.bf16.msra.mxu0 0
    %1686 = vmatprep.subr.bf16.mxu0 0
    %1687 = vmatpush1.bf16.msra.mxu0 0
    %1688 = vmatprep.subr.bf16.mxu0 0
    %1689 = vmatpush1.bf16.msra.mxu0 0
    %1690 = vmatprep.subr.bf16.mxu0 0
    %1691 = vmatpush1.bf16.msra.mxu0 0
    %1692 = vmatprep.subr.bf16.mxu0 0
    %1693 = vmatpush1.bf16.msra.mxu0 0
    %1694 = vmatprep.subr.bf16.mxu0 0
    %1695 = vmatpush1.bf16.msra.mxu0 0
    %1696 = vmatprep.mubr.bf16.mxu0 0
    %1697 = vmatmul.mubr.bf16.gmra.mrb[0].mxu0 %v1659
    %v1698 = vpop.f32.mrb[0].mxu0
    %v1699 = vadd.f32 0.0, %v1698
    %v1700 = vpop.f32.mrb[0].mxu0
    %v1701 = vpop.f32.mrb[0].mxu0
    %v1702 = vpop.f32.mrb[0].mxu0
    %1703 = vdwg.mxu0
    %v1705 = vsel %vm256, %v1237, 0
    %v1708 = vsel %vm1246, %v243, 0
    %1710 = vmatprep.subr.bf16.mxu0 0
    %1711 = vmatpush1.bf16.msra.mxu0 %v1708
    %1712 = vmatprep.subr.bf16.mxu0 0
    %1713 = vmatpush1.bf16.msra.mxu0 0
    %1714 = vmatprep.subr.bf16.mxu0 0
    %1715 = vmatpush1.bf16.msra.mxu0 0
    %1716 = vmatprep.subr.bf16.mxu0 0
    %1717 = vmatpush1.bf16.msra.mxu0 0
    %1718 = vmatprep.subr.bf16.mxu0 0
    %1719 = vmatpush1.bf16.msra.mxu0 0
    %1720 = vmatprep.subr.bf16.mxu0 0
    %1721 = vmatpush1.bf16.msra.mxu0 0
    %1722 = vmatprep.subr.bf16.mxu0 0
    %1723 = vmatpush1.bf16.msra.mxu0 0
    %1724 = vmatprep.subr.bf16.mxu0 0
    %1725 = vmatpush1.bf16.msra.mxu0 0
    %1726 = vmatprep.subr.bf16.mxu0 0
    %1727 = vmatpush1.bf16.msra.mxu0 0
    %1728 = vmatprep.subr.bf16.mxu0 0
    %1729 = vmatpush1.bf16.msra.mxu0 0
    %1730 = vmatprep.subr.bf16.mxu0 0
    %1731 = vmatpush1.bf16.msra.mxu0 0
    %1732 = vmatprep.subr.bf16.mxu0 0
    %1733 = vmatpush1.bf16.msra.mxu0 0
    %1734 = vmatprep.subr.bf16.mxu0 0
    %1735 = vmatpush1.bf16.msra.mxu0 0
    %1736 = vmatprep.subr.bf16.mxu0 0
    %1737 = vmatpush1.bf16.msra.mxu0 0
    %1738 = vmatprep.subr.bf16.mxu0 0
    %1739 = vmatpush1.bf16.msra.mxu0 0
    %1740 = vmatprep.subr.bf16.mxu0 0
    %1741 = vmatpush1.bf16.msra.mxu0 0
    %1742 = vmatprep.mubr.bf16.mxu0 0
    %1743 = vmatmul.mubr.bf16.gmra.mrb[0].mxu0 %v1705
    %v1744 = vpop.f32.mrb[0].mxu0
    %v1745 = vadd.f32 0.0, %v1744
    %v1746 = vpop.f32.mrb[0].mxu0
    %v1747 = vpop.f32.mrb[0].mxu0
    %v1748 = vpop.f32.mrb[0].mxu0
    %1749 = vdwg.mxu0
    %v1751 = vsel %vm256, %v1238, 0
    %v1754 = vsel %vm1246, %v245, 0
    %1756 = vmatprep.subr.bf16.mxu0 0
    %1757 = vmatpush1.bf16.msra.mxu0 %v1754
    %1758 = vmatprep.subr.bf16.mxu0 0
    %1759 = vmatpush1.bf16.msra.mxu0 0
    %1760 = vmatprep.subr.bf16.mxu0 0
    %1761 = vmatpush1.bf16.msra.mxu0 0
    %1762 = vmatprep.subr.bf16.mxu0 0
    %1763 = vmatpush1.bf16.msra.mxu0 0
    %1764 = vmatprep.subr.bf16.mxu0 0
    %1765 = vmatpush1.bf16.msra.mxu0 0
    %1766 = vmatprep.subr.bf16.mxu0 0
    %1767 = vmatpush1.bf16.msra.mxu0 0
    %1768 = vmatprep.subr.bf16.mxu0 0
    %1769 = vmatpush1.bf16.msra.mxu0 0
    %1770 = vmatprep.subr.bf16.mxu0 0
    %1771 = vmatpush1.bf16.msra.mxu0 0
    %1772 = vmatprep.subr.bf16.mxu0 0
    %1773 = vmatpush1.bf16.msra.mxu0 0
    %1774 = vmatprep.subr.bf16.mxu0 0
    %1775 = vmatpush1.bf16.msra.mxu0 0
    %1776 = vmatprep.subr.bf16.mxu0 0
    %1777 = vmatpush1.bf16.msra.mxu0 0
    %1778 = vmatprep.subr.bf16.mxu0 0
    %1779 = vmatpush1.bf16.msra.mxu0 0
    %1780 = vmatprep.subr.bf16.mxu0 0
    %1781 = vmatpush1.bf16.msra.mxu0 0
    %1782 = vmatprep.subr.bf16.mxu0 0
    %1783 = vmatpush1.bf16.msra.mxu0 0
    %1784 = vmatprep.subr.bf16.mxu0 0
    %1785 = vmatpush1.bf16.msra.mxu0 0
    %1786 = vmatprep.subr.bf16.mxu0 0
    %1787 = vmatpush1.bf16.msra.mxu0 0
    %1788 = vmatprep.mubr.bf16.mxu0 0
    %1789 = vmatmul.mubr.bf16.gmra.mrb[0].mxu0 %v1751
    %v1790 = vpop.f32.mrb[0].mxu0
    %v1791 = vadd.f32 0.0, %v1790
    %v1792 = vpop.f32.mrb[0].mxu0
    %v1793 = vpop.f32.mrb[0].mxu0
    %v1794 = vpop.f32.mrb[0].mxu0
    %1795 = vdwg.mxu0
    %v1797 = vsel %vm256, %v1239, 0
    %v1800 = vsel %vm1246, %v247, 0
    %1802 = vmatprep.subr.bf16.mxu0 0
    %1803 = vmatpush1.bf16.msra.mxu0 %v1800
    %1804 = vmatprep.subr.bf16.mxu0 0
    %1805 = vmatpush1.bf16.msra.mxu0 0
    %1806 = vmatprep.subr.bf16.mxu0 0
    %1807 = vmatpush1.bf16.msra.mxu0 0
    %1808 = vmatprep.subr.bf16.mxu0 0
    %1809 = vmatpush1.bf16.msra.mxu0 0
    %1810 = vmatprep.subr.bf16.mxu0 0
    %1811 = vmatpush1.bf16.msra.mxu0 0
    %1812 = vmatprep.subr.bf16.mxu0 0
    %1813 = vmatpush1.bf16.msra.mxu0 0
    %1814 = vmatprep.subr.bf16.mxu0 0
    %1815 = vmatpush1.bf16.msra.mxu0 0
    %1816 = vmatprep.subr.bf16.mxu0 0
    %1817 = vmatpush1.bf16.msra.mxu0 0
    %1818 = vmatprep.subr.bf16.mxu0 0
    %1819 = vmatpush1.bf16.msra.mxu0 0
    %1820 = vmatprep.subr.bf16.mxu0 0
    %1821 = vmatpush1.bf16.msra.mxu0 0
    %1822 = vmatprep.subr.bf16.mxu0 0
    %1823 = vmatpush1.bf16.msra.mxu0 0
    %1824 = vmatprep.subr.bf16.mxu0 0
    %1825 = vmatpush1.bf16.msra.mxu0 0
    %1826 = vmatprep.subr.bf16.mxu0 0
    %1827 = vmatpush1.bf16.msra.mxu0 0
    %1828 = vmatprep.subr.bf16.mxu0 0
    %1829 = vmatpush1.bf16.msra.mxu0 0
    %1830 = vmatprep.subr.bf16.mxu0 0
    %1831 = vmatpush1.bf16.msra.mxu0 0
    %1832 = vmatprep.subr.bf16.mxu0 0
    %1833 = vmatpush1.bf16.msra.mxu0 0
    %1834 = vmatprep.mubr.bf16.mxu0 0
    %1835 = vmatmul.mubr.bf16.gmra.mrb[0].mxu0 %v1797
    %v1836 = vpop.f32.mrb[0].mxu0
    %v1837 = vadd.f32 0.0, %v1836
    %v1838 = vpop.f32.mrb[0].mxu0
    %v1839 = vpop.f32.mrb[0].mxu0
    %v1840 = vpop.f32.mrb[0].mxu0
    %1841 = vdwg.mxu0
    %v1843 = vsel %vm256, %v1240, 0
    %v1846 = vsel %vm1246, %v249, 0
    %1848 = vmatprep.subr.bf16.mxu0 0
    %1849 = vmatpush1.bf16.msra.mxu0 %v1846
    %1850 = vmatprep.subr.bf16.mxu0 0
    %1851 = vmatpush1.bf16.msra.mxu0 0
    %1852 = vmatprep.subr.bf16.mxu0 0
    %1853 = vmatpush1.bf16.msra.mxu0 0
    %1854 = vmatprep.subr.bf16.mxu0 0
    %1855 = vmatpush1.bf16.msra.mxu0 0
    %1856 = vmatprep.subr.bf16.mxu0 0
    %1857 = vmatpush1.bf16.msra.mxu0 0
    %1858 = vmatprep.subr.bf16.mxu0 0
    %1859 = vmatpush1.bf16.msra.mxu0 0
    %1860 = vmatprep.subr.bf16.mxu0 0
    %1861 = vmatpush1.bf16.msra.mxu0 0
    %1862 = vmatprep.subr.bf16.mxu0 0
    %1863 = vmatpush1.bf16.msra.mxu0 0
    %1864 = vmatprep.subr.bf16.mxu0 0
    %1865 = vmatpush1.bf16.msra.mxu0 0
    %1866 = vmatprep.subr.bf16.mxu0 0
    %1867 = vmatpush1.bf16.msra.mxu0 0
    %1868 = vmatprep.subr.bf16.mxu0 0
    %1869 = vmatpush1.bf16.msra.mxu0 0
    %1870 = vmatprep.subr.bf16.mxu0 0
    %1871 = vmatpush1.bf16.msra.mxu0 0
    %1872 = vmatprep.subr.bf16.mxu0 0
    %1873 = vmatpush1.bf16.msra.mxu0 0
    %1874 = vmatprep.subr.bf16.mxu0 0
    %1875 = vmatpush1.bf16.msra.mxu0 0
    %1876 = vmatprep.subr.bf16.mxu0 0
    %1877 = vmatpush1.bf16.msra.mxu0 0
    %1878 = vmatprep.subr.bf16.mxu0 0
    %1879 = vmatpush1.bf16.msra.mxu0 0
    %1880 = vmatprep.mubr.bf16.mxu0 0
    %1881 = vmatmul.mubr.bf16.gmra.mrb[0].mxu0 %v1843
    %v1882 = vpop.f32.mrb[0].mxu0
    %v1883 = vadd.f32 0.0, %v1882
    %v1884 = vpop.f32.mrb[0].mxu0
    %v1885 = vpop.f32.mrb[0].mxu0
    %v1886 = vpop.f32.mrb[0].mxu0
    %1887 = vdwg.mxu0
    %v1889 = vsel %vm256, %v1241, 0
    %v1892 = vsel %vm1246, %v251, 0
    %1894 = vmatprep.subr.bf16.mxu0 0
    %1895 = vmatpush1.bf16.msra.mxu0 %v1892
    %1896 = vmatprep.subr.bf16.mxu0 0
    %1897 = vmatpush1.bf16.msra.mxu0 0
    %1898 = vmatprep.subr.bf16.mxu0 0
    %1899 = vmatpush1.bf16.msra.mxu0 0
    %1900 = vmatprep.subr.bf16.mxu0 0
    %1901 = vmatpush1.bf16.msra.mxu0 0
    %1902 = vmatprep.subr.bf16.mxu0 0
    %1903 = vmatpush1.bf16.msra.mxu0 0
    %1904 = vmatprep.subr.bf16.mxu0 0
    %1905 = vmatpush1.bf16.msra.mxu0 0
    %1906 = vmatprep.subr.bf16.mxu0 0
    %1907 = vmatpush1.bf16.msra.mxu0 0
    %1908 = vmatprep.subr.bf16.mxu0 0
    %1909 = vmatpush1.bf16.msra.mxu0 0
    %1910 = vmatprep.subr.bf16.mxu0 0
    %1911 = vmatpush1.bf16.msra.mxu0 0
    %1912 = vmatprep.subr.bf16.mxu0 0
    %1913 = vmatpush1.bf16.msra.mxu0 0
    %1914 = vmatprep.subr.bf16.mxu0 0
    %1915 = vmatpush1.bf16.msra.mxu0 0
    %1916 = vmatprep.subr.bf16.mxu0 0
    %1917 = vmatpush1.bf16.msra.mxu0 0
    %1918 = vmatprep.subr.bf16.mxu0 0
    %1919 = vmatpush1.bf16.msra.mxu0 0
    %1920 = vmatprep.subr.bf16.mxu0 0
    %1921 = vmatpush1.bf16.msra.mxu0 0
    %1922 = vmatprep.subr.bf16.mxu0 0
    %1923 = vmatpush1.bf16.msra.mxu0 0
    %1924 = vmatprep.subr.bf16.mxu0 0
    %1925 = vmatpush1.bf16.msra.mxu0 0
    %1926 = vmatprep.mubr.bf16.mxu0 0
    %1927 = vmatmul.mubr.bf16.gmra.mrb[0].mxu0 %v1889
    %v1928 = vpop.f32.mrb[0].mxu0
    %v1929 = vadd.f32 0.0, %v1928
    %v1930 = vpop.f32.mrb[0].mxu0
    %v1931 = vpop.f32.mrb[0].mxu0
    %v1932 = vpop.f32.mrb[0].mxu0
    %1933 = vdwg.mxu0
    %v1935 = vsel %vm256, %v1242, 0
    %v1938 = vsel %vm1246, %v253, 0
    %1940 = vmatprep.subr.bf16.mxu0 0
    %1941 = vmatpush1.bf16.msra.mxu0 %v1938
    %1942 = vmatprep.subr.bf16.mxu0 0
    %1943 = vmatpush1.bf16.msra.mxu0 0
    %1944 = vmatprep.subr.bf16.mxu0 0
    %1945 = vmatpush1.bf16.msra.mxu0 0
    %1946 = vmatprep.subr.bf16.mxu0 0
    %1947 = vmatpush1.bf16.msra.mxu0 0
    %1948 = vmatprep.subr.bf16.mxu0 0
    %1949 = vmatpush1.bf16.msra.mxu0 0
    %1950 = vmatprep.subr.bf16.mxu0 0
    %1951 = vmatpush1.bf16.msra.mxu0 0
    %1952 = vmatprep.subr.bf16.mxu0 0
    %1953 = vmatpush1.bf16.msra.mxu0 0
    %1954 = vmatprep.subr.bf16.mxu0 0
    %1955 = vmatpush1.bf16.msra.mxu0 0
    %1956 = vmatprep.subr.bf16.mxu0 0
    %1957 = vmatpush1.bf16.msra.mxu0 0
    %1958 = vmatprep.subr.bf16.mxu0 0
    %1959 = vmatpush1.bf16.msra.mxu0 0
    %1960 = vmatprep.subr.bf16.mxu0 0
    %1961 = vmatpush1.bf16.msra.mxu0 0
    %1962 = vmatprep.subr.bf16.mxu0 0
    %1963 = vmatpush1.bf16.msra.mxu0 0
    %1964 = vmatprep.subr.bf16.mxu0 0
    %1965 = vmatpush1.bf16.msra.mxu0 0
    %1966 = vmatprep.subr.bf16.mxu0 0
    %1967 = vmatpush1.bf16.msra.mxu0 0
    %1968 = vmatprep.subr.bf16.mxu0 0
    %1969 = vmatpush1.bf16.msra.mxu0 0
    %1970 = vmatprep.subr.bf16.mxu0 0
    %1971 = vmatpush1.bf16.msra.mxu0 0
    %1972 = vmatprep.mubr.bf16.mxu0 0
    %1973 = vmatmul.mubr.bf16.gmra.mrb[0].mxu0 %v1935
    %v1974 = vpop.f32.mrb[0].mxu0
    %v1975 = vadd.f32 0.0, %v1974
    %v1976 = vpop.f32.mrb[0].mxu0
    %v1977 = vpop.f32.mrb[0].mxu0
    %v1978 = vpop.f32.mrb[0].mxu0
    %1979 = vdwg.mxu0
    %v1980 = vpack.c.bf16 %v1331, %v1285
    %v1981 = vpack.c.bf16 %v1423, %v1377
    %v1982 = vpack.c.bf16 %v1515, %v1469
    %v1983 = vpack.c.bf16 %v1607, %v1561
    %v1984 = vpack.c.bf16 %v1699, %v1653
    %v1985 = vpack.c.bf16 %v1791, %v1745
    %v1986 = vpack.c.bf16 %v1883, %v1837
    %v1987 = vpack.c.bf16 %v1975, %v1929
    %v1988 = vld [vmem:[%s2] sm:$0xf]
    %v1989 = vld [vmem:[%s2 + $0x4] sm:$0xf]
    %v1990 = vld [vmem:[%s2 + $0x8] sm:$0xf]
    %v1991 = vld [vmem:[%s2 + $0xc] sm:$0xf]
    %v1992 = vld [vmem:[%s2 + $0x10] sm:$0xf]
    %v1993 = vld [vmem:[%s2 + $0x14] sm:$0xf]
    %v1994 = vld [vmem:[%s2 + $0x18] sm:$0xf]
    %v1995 = vld [vmem:[%s2 + $0x1c] sm:$0xf]
    %v1997 = vsel %vm256, %v1980, 0
    %v2000 = vsel %vm1246, %v1988, 0
    %2002 = vmatprep.subr.bf16.mxu0 0
    %2003 = vmatpush1.bf16.msra.mxu0 %v2000
    %2004 = vmatprep.subr.bf16.mxu0 0
    %2005 = vmatpush1.bf16.msra.mxu0 0
    %2006 = vmatprep.subr.bf16.mxu0 0
    %2007 = vmatpush1.bf16.msra.mxu0 0
    %2008 = vmatprep.subr.bf16.mxu0 0
    %2009 = vmatpush1.bf16.msra.mxu0 0
    %2010 = vmatprep.subr.bf16.mxu0 0
    %2011 = vmatpush1.bf16.msra.mxu0 0
    %2012 = vmatprep.subr.bf16.mxu0 0
    %2013 = vmatpush1.bf16.msra.mxu0 0
    %2014 = vmatprep.subr.bf16.mxu0 0
    %2015 = vmatpush1.bf16.msra.mxu0 0
    %2016 = vmatprep.subr.bf16.mxu0 0
    %2017 = vmatpush1.bf16.msra.mxu0 0
    %2018 = vmatprep.subr.bf16.mxu0 0
    %2019 = vmatpush1.bf16.msra.mxu0 0
    %2020 = vmatprep.subr.bf16.mxu0 0
    %2021 = vmatpush1.bf16.msra.mxu0 0
    %2022 = vmatprep.subr.bf16.mxu0 0
    %2023 = vmatpush1.bf16.msra.mxu0 0
    %2024 = vmatprep.subr.bf16.mxu0 0
    %2025 = vmatpush1.bf16.msra.mxu0 0
    %2026 = vmatprep.subr.bf16.mxu0 0
    %2027 = vmatpush1.bf16.msra.mxu0 0
    %2028 = vmatprep.subr.bf16.mxu0 0
    %2029 = vmatpush1.bf16.msra.mxu0 0
    %2030 = vmatprep.subr.bf16.mxu0 0
    %2031 = vmatpush1.bf16.msra.mxu0 0
    %2032 = vmatprep.subr.bf16.mxu0 0
    %2033 = vmatpush1.bf16.msra.mxu0 0
    %2034 = vmatprep.mubr.bf16.mxu0 0
    %2035 = vmatmul.mubr.bf16.gmra.mrb[0].mxu0 %v1997
    %v2036 = vpop.f32.mrb[0].mxu0
    %v2037 = vadd.f32 0.0, %v2036
    %v2038 = vpop.f32.mrb[0].mxu0
    %v2039 = vpop.f32.mrb[0].mxu0
    %v2040 = vadd.f32 0.0, %v2039
    %v2041 = vpop.f32.mrb[0].mxu0
    %2042 = vdwg.mxu0
    %v2044 = vsel %vm256, %v1981, 0
    %v2047 = vsel %vm1246, %v1989, 0
    %2049 = vmatprep.subr.bf16.mxu0 0
    %2050 = vmatpush1.bf16.msra.mxu0 %v2047
    %2051 = vmatprep.subr.bf16.mxu0 0
    %2052 = vmatpush1.bf16.msra.mxu0 0
    %2053 = vmatprep.subr.bf16.mxu0 0
    %2054 = vmatpush1.bf16.msra.mxu0 0
    %2055 = vmatprep.subr.bf16.mxu0 0
    %2056 = vmatpush1.bf16.msra.mxu0 0
    %2057 = vmatprep.subr.bf16.mxu0 0
    %2058 = vmatpush1.bf16.msra.mxu0 0
    %2059 = vmatprep.subr.bf16.mxu0 0
    %2060 = vmatpush1.bf16.msra.mxu0 0
    %2061 = vmatprep.subr.bf16.mxu0 0
    %2062 = vmatpush1.bf16.msra.mxu0 0
    %2063 = vmatprep.subr.bf16.mxu0 0
    %2064 = vmatpush1.bf16.msra.mxu0 0
    %2065 = vmatprep.subr.bf16.mxu0 0
    %2066 = vmatpush1.bf16.msra.mxu0 0
    %2067 = vmatprep.subr.bf16.mxu0 0
    %2068 = vmatpush1.bf16.msra.mxu0 0
    %2069 = vmatprep.subr.bf16.mxu0 0
    %2070 = vmatpush1.bf16.msra.mxu0 0
    %2071 = vmatprep.subr.bf16.mxu0 0
    %2072 = vmatpush1.bf16.msra.mxu0 0
    %2073 = vmatprep.subr.bf16.mxu0 0
    %2074 = vmatpush1.bf16.msra.mxu0 0
    %2075 = vmatprep.subr.bf16.mxu0 0
    %2076 = vmatpush1.bf16.msra.mxu0 0
    %2077 = vmatprep.subr.bf16.mxu0 0
    %2078 = vmatpush1.bf16.msra.mxu0 0
    %2079 = vmatprep.subr.bf16.mxu0 0
    %2080 = vmatpush1.bf16.msra.mxu0 0
    %2081 = vmatprep.mubr.bf16.mxu0 0
    %2082 = vmatmul.mubr.bf16.gmra.mrb[0].mxu0 %v2044
    %v2083 = vpop.f32.mrb[0].mxu0
    %v2084 = vadd.f32 0.0, %v2083
    %v2085 = vpop.f32.mrb[0].mxu0
    %v2086 = vpop.f32.mrb[0].mxu0
    %v2087 = vadd.f32 0.0, %v2086
    %v2088 = vpop.f32.mrb[0].mxu0
    %2089 = vdwg.mxu0
    %v2091 = vsel %vm256, %v1982, 0
    %v2094 = vsel %vm1246, %v1990, 0
    %2096 = vmatprep.subr.bf16.mxu0 0
    %2097 = vmatpush1.bf16.msra.mxu0 %v2094
    %2098 = vmatprep.subr.bf16.mxu0 0
    %2099 = vmatpush1.bf16.msra.mxu0 0
    %2100 = vmatprep.subr.bf16.mxu0 0
    %2101 = vmatpush1.bf16.msra.mxu0 0
    %2102 = vmatprep.subr.bf16.mxu0 0
    %2103 = vmatpush1.bf16.msra.mxu0 0
    %2104 = vmatprep.subr.bf16.mxu0 0
    %2105 = vmatpush1.bf16.msra.mxu0 0
    %2106 = vmatprep.subr.bf16.mxu0 0
    %2107 = vmatpush1.bf16.msra.mxu0 0
    %2108 = vmatprep.subr.bf16.mxu0 0
    %2109 = vmatpush1.bf16.msra.mxu0 0
    %2110 = vmatprep.subr.bf16.mxu0 0
    %2111 = vmatpush1.bf16.msra.mxu0 0
    %2112 = vmatprep.subr.bf16.mxu0 0
    %2113 = vmatpush1.bf16.msra.mxu0 0
    %2114 = vmatprep.subr.bf16.mxu0 0
    %2115 = vmatpush1.bf16.msra.mxu0 0
    %2116 = vmatprep.subr.bf16.mxu0 0
    %2117 = vmatpush1.bf16.msra.mxu0 0
    %2118 = vmatprep.subr.bf16.mxu0 0
    %2119 = vmatpush1.bf16.msra.mxu0 0
    %2120 = vmatprep.subr.bf16.mxu0 0
    %2121 = vmatpush1.bf16.msra.mxu0 0
    %2122 = vmatprep.subr.bf16.mxu0 0
    %2123 = vmatpush1.bf16.msra.mxu0 0
    %2124 = vmatprep.subr.bf16.mxu0 0
    %2125 = vmatpush1.bf16.msra.mxu0 0
    %2126 = vmatprep.subr.bf16.mxu0 0
    %2127 = vmatpush1.bf16.msra.mxu0 0
    %2128 = vmatprep.mubr.bf16.mxu0 0
    %2129 = vmatmul.mubr.bf16.gmra.mrb[0].mxu0 %v2091
    %v2130 = vpop.f32.mrb[0].mxu0
    %v2131 = vadd.f32 0.0, %v2130
    %v2132 = vpop.f32.mrb[0].mxu0
    %v2133 = vpop.f32.mrb[0].mxu0
    %v2134 = vadd.f32 0.0, %v2133
    %v2135 = vpop.f32.mrb[0].mxu0
    %2136 = vdwg.mxu0
    %v2138 = vsel %vm256, %v1983, 0
    %v2141 = vsel %vm1246, %v1991, 0
    %2143 = vmatprep.subr.bf16.mxu0 0
    %2144 = vmatpush1.bf16.msra.mxu0 %v2141
    %2145 = vmatprep.subr.bf16.mxu0 0
    %2146 = vmatpush1.bf16.msra.mxu0 0
    %2147 = vmatprep.subr.bf16.mxu0 0
    %2148 = vmatpush1.bf16.msra.mxu0 0
    %2149 = vmatprep.subr.bf16.mxu0 0
    %2150 = vmatpush1.bf16.msra.mxu0 0
    %2151 = vmatprep.subr.bf16.mxu0 0
    %2152 = vmatpush1.bf16.msra.mxu0 0
    %2153 = vmatprep.subr.bf16.mxu0 0
    %2154 = vmatpush1.bf16.msra.mxu0 0
    %2155 = vmatprep.subr.bf16.mxu0 0
    %2156 = vmatpush1.bf16.msra.mxu0 0
    %2157 = vmatprep.subr.bf16.mxu0 0
    %2158 = vmatpush1.bf16.msra.mxu0 0
    %2159 = vmatprep.subr.bf16.mxu0 0
    %2160 = vmatpush1.bf16.msra.mxu0 0
    %2161 = vmatprep.subr.bf16.mxu0 0
    %2162 = vmatpush1.bf16.msra.mxu0 0
    %2163 = vmatprep.subr.bf16.mxu0 0
    %2164 = vmatpush1.bf16.msra.mxu0 0
    %2165 = vmatprep.subr.bf16.mxu0 0
    %2166 = vmatpush1.bf16.msra.mxu0 0
    %2167 = vmatprep.subr.bf16.mxu0 0
    %2168 = vmatpush1.bf16.msra.mxu0 0
    %2169 = vmatprep.subr.bf16.mxu0 0
    %2170 = vmatpush1.bf16.msra.mxu0 0
    %2171 = vmatprep.subr.bf16.mxu0 0
    %2172 = vmatpush1.bf16.msra.mxu0 0
    %2173 = vmatprep.subr.bf16.mxu0 0
    %2174 = vmatpush1.bf16.msra.mxu0 0
    %2175 = vmatprep.mubr.bf16.mxu0 0
    %2176 = vmatmul.mubr.bf16.gmra.mrb[0].mxu0 %v2138
    %v2177 = vpop.f32.mrb[0].mxu0
    %v2178 = vadd.f32 0.0, %v2177
    %v2179 = vpop.f32.mrb[0].mxu0
    %v2180 = vpop.f32.mrb[0].mxu0
    %v2181 = vadd.f32 0.0, %v2180
    %v2182 = vpop.f32.mrb[0].mxu0
    %2183 = vdwg.mxu0
    %v2185 = vsel %vm256, %v1984, 0
    %v2188 = vsel %vm1246, %v1992, 0
    %2190 = vmatprep.subr.bf16.mxu0 0
    %2191 = vmatpush1.bf16.msra.mxu0 %v2188
    %2192 = vmatprep.subr.bf16.mxu0 0
    %2193 = vmatpush1.bf16.msra.mxu0 0
    %2194 = vmatprep.subr.bf16.mxu0 0
    %2195 = vmatpush1.bf16.msra.mxu0 0
    %2196 = vmatprep.subr.bf16.mxu0 0
    %2197 = vmatpush1.bf16.msra.mxu0 0
    %2198 = vmatprep.subr.bf16.mxu0 0
    %2199 = vmatpush1.bf16.msra.mxu0 0
    %2200 = vmatprep.subr.bf16.mxu0 0
    %2201 = vmatpush1.bf16.msra.mxu0 0
    %2202 = vmatprep.subr.bf16.mxu0 0
    %2203 = vmatpush1.bf16.msra.mxu0 0
    %2204 = vmatprep.subr.bf16.mxu0 0
    %2205 = vmatpush1.bf16.msra.mxu0 0
    %2206 = vmatprep.subr.bf16.mxu0 0
    %2207 = vmatpush1.bf16.msra.mxu0 0
    %2208 = vmatprep.subr.bf16.mxu0 0
    %2209 = vmatpush1.bf16.msra.mxu0 0
    %2210 = vmatprep.subr.bf16.mxu0 0
    %2211 = vmatpush1.bf16.msra.mxu0 0
    %2212 = vmatprep.subr.bf16.mxu0 0
    %2213 = vmatpush1.bf16.msra.mxu0 0
    %2214 = vmatprep.subr.bf16.mxu0 0
    %2215 = vmatpush1.bf16.msra.mxu0 0
    %2216 = vmatprep.subr.bf16.mxu0 0
    %2217 = vmatpush1.bf16.msra.mxu0 0
    %2218 = vmatprep.subr.bf16.mxu0 0
    %2219 = vmatpush1.bf16.msra.mxu0 0
    %2220 = vmatprep.subr.bf16.mxu0 0
    %2221 = vmatpush1.bf16.msra.mxu0 0
    %2222 = vmatprep.mubr.bf16.mxu0 0
    %2223 = vmatmul.mubr.bf16.gmra.mrb[0].mxu0 %v2185
    %v2224 = vpop.f32.mrb[0].mxu0
    %v2225 = vadd.f32 0.0, %v2224
    %v2226 = vpop.f32.mrb[0].mxu0
    %v2227 = vpop.f32.mrb[0].mxu0
    %v2228 = vadd.f32 0.0, %v2227
    %v2229 = vpop.f32.mrb[0].mxu0
    %2230 = vdwg.mxu0
    %v2232 = vsel %vm256, %v1985, 0
    %v2235 = vsel %vm1246, %v1993, 0
    %2237 = vmatprep.subr.bf16.mxu0 0
    %2238 = vmatpush1.bf16.msra.mxu0 %v2235
    %2239 = vmatprep.subr.bf16.mxu0 0
    %2240 = vmatpush1.bf16.msra.mxu0 0
    %2241 = vmatprep.subr.bf16.mxu0 0
    %2242 = vmatpush1.bf16.msra.mxu0 0
    %2243 = vmatprep.subr.bf16.mxu0 0
    %2244 = vmatpush1.bf16.msra.mxu0 0
    %2245 = vmatprep.subr.bf16.mxu0 0
    %2246 = vmatpush1.bf16.msra.mxu0 0
    %2247 = vmatprep.subr.bf16.mxu0 0
    %2248 = vmatpush1.bf16.msra.mxu0 0
    %2249 = vmatprep.subr.bf16.mxu0 0
    %2250 = vmatpush1.bf16.msra.mxu0 0
    %2251 = vmatprep.subr.bf16.mxu0 0
    %2252 = vmatpush1.bf16.msra.mxu0 0
    %2253 = vmatprep.subr.bf16.mxu0 0
    %2254 = vmatpush1.bf16.msra.mxu0 0
    %2255 = vmatprep.subr.bf16.mxu0 0
    %2256 = vmatpush1.bf16.msra.mxu0 0
    %2257 = vmatprep.subr.bf16.mxu0 0
    %2258 = vmatpush1.bf16.msra.mxu0 0
    %2259 = vmatprep.subr.bf16.mxu0 0
    %2260 = vmatpush1.bf16.msra.mxu0 0
    %2261 = vmatprep.subr.bf16.mxu0 0
    %2262 = vmatpush1.bf16.msra.mxu0 0
    %2263 = vmatprep.subr.bf16.mxu0 0
    %2264 = vmatpush1.bf16.msra.mxu0 0
    %2265 = vmatprep.subr.bf16.mxu0 0
    %2266 = vmatpush1.bf16.msra.mxu0 0
    %2267 = vmatprep.subr.bf16.mxu0 0
    %2268 = vmatpush1.bf16.msra.mxu0 0
    %2269 = vmatprep.mubr.bf16.mxu0 0
    %2270 = vmatmul.mubr.bf16.gmra.mrb[0].mxu0 %v2232
    %v2271 = vpop.f32.mrb[0].mxu0
    %v2272 = vadd.f32 0.0, %v2271
    %v2273 = vpop.f32.mrb[0].mxu0
    %v2274 = vpop.f32.mrb[0].mxu0
    %v2275 = vadd.f32 0.0, %v2274
    %v2276 = vpop.f32.mrb[0].mxu0
    %2277 = vdwg.mxu0
    %v2279 = vsel %vm256, %v1986, 0
    %v2282 = vsel %vm1246, %v1994, 0
    %2284 = vmatprep.subr.bf16.mxu0 0
    %2285 = vmatpush1.bf16.msra.mxu0 %v2282
    %2286 = vmatprep.subr.bf16.mxu0 0
    %2287 = vmatpush1.bf16.msra.mxu0 0
    %2288 = vmatprep.subr.bf16.mxu0 0
    %2289 = vmatpush1.bf16.msra.mxu0 0
    %2290 = vmatprep.subr.bf16.mxu0 0
    %2291 = vmatpush1.bf16.msra.mxu0 0
    %2292 = vmatprep.subr.bf16.mxu0 0
    %2293 = vmatpush1.bf16.msra.mxu0 0
    %2294 = vmatprep.subr.bf16.mxu0 0
    %2295 = vmatpush1.bf16.msra.mxu0 0
    %2296 = vmatprep.subr.bf16.mxu0 0
    %2297 = vmatpush1.bf16.msra.mxu0 0
    %2298 = vmatprep.subr.bf16.mxu0 0
    %2299 = vmatpush1.bf16.msra.mxu0 0
    %2300 = vmatprep.subr.bf16.mxu0 0
    %2301 = vmatpush1.bf16.msra.mxu0 0
    %2302 = vmatprep.subr.bf16.mxu0 0
    %2303 = vmatpush1.bf16.msra.mxu0 0
    %2304 = vmatprep.subr.bf16.mxu0 0
    %2305 = vmatpush1.bf16.msra.mxu0 0
    %2306 = vmatprep.subr.bf16.mxu0 0
    %2307 = vmatpush1.bf16.msra.mxu0 0
    %2308 = vmatprep.subr.bf16.mxu0 0
    %2309 = vmatpush1.bf16.msra.mxu0 0
    %2310 = vmatprep.subr.bf16.mxu0 0
    %2311 = vmatpush1.bf16.msra.mxu0 0
    %2312 = vmatprep.subr.bf16.mxu0 0
    %2313 = vmatpush1.bf16.msra.mxu0 0
    %2314 = vmatprep.subr.bf16.mxu0 0
    %2315 = vmatpush1.bf16.msra.mxu0 0
    %2316 = vmatprep.mubr.bf16.mxu0 0
    %2317 = vmatmul.mubr.bf16.gmra.mrb[0].mxu0 %v2279
    %v2318 = vpop.f32.mrb[0].mxu0
    %v2319 = vadd.f32 0.0, %v2318
    %v2320 = vpop.f32.mrb[0].mxu0
    %v2321 = vpop.f32.mrb[0].mxu0
    %v2322 = vadd.f32 0.0, %v2321
    %v2323 = vpop.f32.mrb[0].mxu0
    %2324 = vdwg.mxu0
    %v2326 = vsel %vm256, %v1987, 0
    %v2329 = vsel %vm1246, %v1995, 0
    %2331 = vmatprep.subr.bf16.mxu0 0
    %2332 = vmatpush1.bf16.msra.mxu0 %v2329
    %2333 = vmatprep.subr.bf16.mxu0 0
    %2334 = vmatpush1.bf16.msra.mxu0 0
    %2335 = vmatprep.subr.bf16.mxu0 0
    %2336 = vmatpush1.bf16.msra.mxu0 0
    %2337 = vmatprep.subr.bf16.mxu0 0
    %2338 = vmatpush1.bf16.msra.mxu0 0
    %2339 = vmatprep.subr.bf16.mxu0 0
    %2340 = vmatpush1.bf16.msra.mxu0 0
    %2341 = vmatprep.subr.bf16.mxu0 0
    %2342 = vmatpush1.bf16.msra.mxu0 0
    %2343 = vmatprep.subr.bf16.mxu0 0
    %2344 = vmatpush1.bf16.msra.mxu0 0
    %2345 = vmatprep.subr.bf16.mxu0 0
    %2346 = vmatpush1.bf16.msra.mxu0 0
    %2347 = vmatprep.subr.bf16.mxu0 0
    %2348 = vmatpush1.bf16.msra.mxu0 0
    %2349 = vmatprep.subr.bf16.mxu0 0
    %2350 = vmatpush1.bf16.msra.mxu0 0
    %2351 = vmatprep.subr.bf16.mxu0 0
    %2352 = vmatpush1.bf16.msra.mxu0 0
    %2353 = vmatprep.subr.bf16.mxu0 0
    %2354 = vmatpush1.bf16.msra.mxu0 0
    %2355 = vmatprep.subr.bf16.mxu0 0
    %2356 = vmatpush1.bf16.msra.mxu0 0
    %2357 = vmatprep.subr.bf16.mxu0 0
    %2358 = vmatpush1.bf16.msra.mxu0 0
    %2359 = vmatprep.subr.bf16.mxu0 0
    %2360 = vmatpush1.bf16.msra.mxu0 0
    %2361 = vmatprep.subr.bf16.mxu0 0
    %2362 = vmatpush1.bf16.msra.mxu0 0
    %2363 = vmatprep.mubr.bf16.mxu0 0
    %2364 = vmatmul.mubr.bf16.gmra.mrb[0].mxu0 %v2326
    %v2365 = vpop.f32.mrb[0].mxu0
    %v2366 = vadd.f32 0.0, %v2365
    %v2367 = vpop.f32.mrb[0].mxu0
    %v2368 = vpop.f32.mrb[0].mxu0
    %v2369 = vadd.f32 0.0, %v2368
    %v2370 = vpop.f32.mrb[0].mxu0
    %2371 = vdwg.mxu0
    %v2372 = vsel %vm47, %v2037, 0.0
    %v2373 = vsel %vm47, %v2084, 0.0
    %v2374 = vadd.f32 %v2372, %v2373
    %v2375 = vsel %vm47, %v2131, 0.0
    %v2376 = vadd.f32 %v2374, %v2375
    %v2377 = vsel %vm47, %v2178, 0.0
    %v2378 = vadd.f32 %v2376, %v2377
    %v2379 = vsel %vm47, %v2225, 0.0
    %v2380 = vadd.f32 %v2378, %v2379
    %v2381 = vsel %vm47, %v2272, 0.0
    %v2382 = vadd.f32 %v2380, %v2381
    %v2383 = vsel %vm47, %v2319, 0.0
    %v2384 = vadd.f32 %v2382, %v2383
    %v2385 = vsel %vm47, %v2366, 0.0
    %v2386 = vadd.f32 %v2384, %v2385
    %v2387 = vsel %vm47, %v2040, 0.0
    %v2388 = vsel %vm47, %v2087, 0.0
    %v2389 = vadd.f32 %v2387, %v2388
    %v2390 = vsel %vm47, %v2134, 0.0
    %v2391 = vadd.f32 %v2389, %v2390
    %v2392 = vsel %vm47, %v2181, 0.0
    %v2393 = vadd.f32 %v2391, %v2392
    %v2394 = vsel %vm47, %v2228, 0.0
    %v2395 = vadd.f32 %v2393, %v2394
    %v2396 = vsel %vm47, %v2275, 0.0
    %v2397 = vadd.f32 %v2395, %v2396
    %v2398 = vsel %vm47, %v2322, 0.0
    %v2399 = vadd.f32 %v2397, %v2398
    %v2400 = vsel %vm47, %v2369, 0.0
    %v2401 = vadd.f32 %v2399, %v2400
    %v2402 = vld [vmem:[%s3] sm:$0x1]
    %v2404 = vlaneseq
    %v2405 = vshrl.u32 %v2404, 7
    %v2406 = vsub.s32 0, %v2405
    %v2407 = vrot.slane %v2402, %v2406
    %v2409 = vadd.f32 %v2386, %v2407
    %v2410 = vadd.f32 %v2401, %v2407
    %v2411 = vadd.f32 %v43, %v2409
    %v2412 = vadd.f32 %v44, %v2410
    %v2413 = vld [vmem:[%s6] sm:$0x1]
    %v2414 = vld [vmem:[%s7] sm:$0x1]
    %v2415 = vsel %vm47, %v2411, 0.0
    %2416 = vadd.xlane.f32.xlu0 %v2415
    %v2417 = vpop.xlane.xlu0 %2416
    %v2418 = vsel %vm47, %v2412, 0.0
    %2419 = vadd.xlane.f32.xlu0 %v2418
    %v2420 = vpop.xlane.xlu0 %2419
    %v2421 = vmul.f32 %v2417, %v54
    %v2422 = vmul.f32 %v2420, %v54
    %v2423 = vsub.f32 %v2411, %v2421
    %v2424 = vsub.f32 %v2412, %v2422
    %v2425 = vmul.f32 %v2423, %v2423
    %v2426 = vmul.f32 %v2424, %v2424
    %v2427 = vsel %vm47, %v2425, 0.0
    %2428 = vadd.xlane.f32.xlu0 %v2427
    %v2429 = vpop.xlane.xlu0 %2428
    %v2430 = vsel %vm47, %v2426, 0.0
    %2431 = vadd.xlane.f32.xlu0 %v2430
    %v2432 = vpop.xlane.xlu0 %2431
    %v2433 = vmul.f32 %v2429, %v54
    %v2434 = vmul.f32 %v2432, %v54
    %v2435 = vadd.f32 %v2433, 1e-05
    %v2436 = vadd.f32 %v2434, 1e-05
    %v2437 = vrsqrt.pop %v2435
    %v2438 = vrsqrt.pop %v2436
    %v2439 = vmul.f32 %v2423, %v2437
    %v2440 = vmul.f32 %v2424, %v2438
    %v2442 = vlaneseq
    %v2443 = vshrl.u32 %v2442, 7
    %v2444 = vsub.s32 0, %v2443
    %v2445 = vrot.slane %v2413, %v2444
    %v2447 = vmul.f32 %v2439, %v2445
    %v2448 = vmul.f32 %v2440, %v2445
    %v2450 = vlaneseq
    %v2451 = vshrl.u32 %v2450, 7
    %v2452 = vsub.s32 0, %v2451
    %v2453 = vrot.slane %v2414, %v2452
    %v2455 = vadd.f32 %v2447, %v2453
    %v2456 = vadd.f32 %v2448, %v2453
    %v2457 = vpack.c.bf16 %v2456, %v2455
    %v2458 = vld [vmem:[%s8] sm:$0xff]
    %v2459 = vld [vmem:[%s8 + $0x8] sm:$0xff]
    %v2460 = vld [vmem:[%s8 + $0x10] sm:$0xff]
    %v2461 = vld [vmem:[%s8 + $0x18] sm:$0xff]
    %v2462 = vld [vmem:[%s8 + $0x20] sm:$0xff]
    %v2463 = vld [vmem:[%s8 + $0x28] sm:$0xff]
    %v2464 = vld [vmem:[%s8 + $0x30] sm:$0xff]
    %v2465 = vld [vmem:[%s8 + $0x38] sm:$0xff]
    %v2466 = vld [vmem:[%s9] sm:$0x3]
    %v2468 = vlaneseq
    %v2469 = vshrl.u32 %v2468, 7
    %v2470 = vsub.s32 0, %v2469
    %v2471 = vrot.slane %v2466, %v2470
    %v2472 = vlaneseq
    %v2473 = vshrl.u32 %v2472, 7
    %v2474 = vsub.s32 1, %v2473
    %v2475 = vrot.slane %v2466, %v2474
    %v2486 = vunpack.c.l.b16 %v2458
    %v2487 = vunpack.c.h.b16 %v2458
    %v2488 = vunpack.c.l.b16 %v2459
    %v2489 = vunpack.c.h.b16 %v2459
    %v2490 = vunpack.c.l.b16 %v2460
    %v2491 = vunpack.c.h.b16 %v2460
    %v2492 = vunpack.c.l.b16 %v2461
    %v2493 = vunpack.c.h.b16 %v2461
    %v2494 = vunpack.c.l.b16 %v2462
    %v2495 = vunpack.c.h.b16 %v2462
    %v2496 = vunpack.c.l.b16 %v2463
    %v2497 = vunpack.c.h.b16 %v2463
    %v2498 = vunpack.c.l.b16 %v2464
    %v2499 = vunpack.c.h.b16 %v2464
    %v2500 = vunpack.c.l.b16 %v2465
    %v2501 = vunpack.c.h.b16 %v2465
    %v2502 = vpack.c.b16 %v2488, %v2486
    %v2503 = vpack.c.b16 %v2489, %v2487
    %v2504 = vpack.c.b16 %v2492, %v2490
    %v2505 = vpack.c.b16 %v2493, %v2491
    %v2506 = vpack.c.b16 %v2496, %v2494
    %v2507 = vpack.c.b16 %v2497, %v2495
    %v2508 = vpack.c.b16 %v2500, %v2498
    %v2509 = vpack.c.b16 %v2501, %v2499
    %v2519 = vsel %vm47, %v2457, 0
    %2521 = vmatprep.subr.bf16.mxu0 %v2503
    %2522 = vmatpush1.bf16.msra.mxu0 %v2502
    %2523 = vmatprep.subr.bf16.mxu0 %v2505
    %2524 = vmatpush1.bf16.msra.mxu0 %v2504
    %2525 = vmatprep.subr.bf16.mxu0 %v2507
    %2526 = vmatpush1.bf16.msra.mxu0 %v2506
    %2527 = vmatprep.subr.bf16.mxu0 %v2509
    %2528 = vmatpush1.bf16.msra.mxu0 %v2508
    %2529 = vmatprep.subr.bf16.mxu0 0
    %2530 = vmatpush1.bf16.msra.mxu0 0
    %2531 = vmatprep.subr.bf16.mxu0 0
    %2532 = vmatpush1.bf16.msra.mxu0 0
    %2533 = vmatprep.subr.bf16.mxu0 0
    %2534 = vmatpush1.bf16.msra.mxu0 0
    %2535 = vmatprep.subr.bf16.mxu0 0
    %2536 = vmatpush1.bf16.msra.mxu0 0
    %2537 = vmatprep.subr.bf16.mxu0 0
    %2538 = vmatpush1.bf16.msra.mxu0 0
    %2539 = vmatprep.subr.bf16.mxu0 0
    %2540 = vmatpush1.bf16.msra.mxu0 0
    %2541 = vmatprep.subr.bf16.mxu0 0
    %2542 = vmatpush1.bf16.msra.mxu0 0
    %2543 = vmatprep.subr.bf16.mxu0 0
    %2544 = vmatpush1.bf16.msra.mxu0 0
    %2545 = vmatprep.subr.bf16.mxu0 0
    %2546 = vmatpush1.bf16.msra.mxu0 0
    %2547 = vmatprep.subr.bf16.mxu0 0
    %2548 = vmatpush1.bf16.msra.mxu0 0
    %2549 = vmatprep.subr.bf16.mxu0 0
    %2550 = vmatpush1.bf16.msra.mxu0 0
    %2551 = vmatprep.subr.bf16.mxu0 0
    %2552 = vmatpush1.bf16.msra.mxu0 0
    %2553 = vmatprep.mubr.bf16.mxu0 0
    %2554 = vmatmul.mubr.bf16.gmra.mrb[0].mxu0 %v2519
    %v2555 = vpop.f32.mrb[0].mxu0
    %v2556 = vadd.f32 %v2471, %v2555
    %v2557 = vpop.f32.mrb[0].mxu0
    %v2558 = vadd.f32 %v2475, %v2557
    %v2559 = vpop.f32.mrb[0].mxu0
    %v2560 = vadd.f32 %v2471, %v2559
    %v2561 = vpop.f32.mrb[0].mxu0
    %v2562 = vadd.f32 %v2475, %v2561
    %2563 = vdwg.mxu0
    %v2564 = vmax.f32 %v2556, 0.0
    %v2565 = vmax.f32 %v2558, 0.0
    %v2566 = vmax.f32 %v2560, 0.0
    %v2567 = vmax.f32 %v2562, 0.0
    %v2568 = vpack.c.bf16 %v2566, %v2564
    %v2569 = vpack.c.bf16 %v2567, %v2565
    %v2570 = vld [vmem:[%s10] sm:$0xf]
    %v2571 = vld [vmem:[%s10 + $0x4] sm:$0xf]
    %v2572 = vld [vmem:[%s10 + $0x8] sm:$0xf]
    %v2573 = vld [vmem:[%s10 + $0xc] sm:$0xf]
    %v2574 = vld [vmem:[%s10 + $0x10] sm:$0xf]
    %v2575 = vld [vmem:[%s10 + $0x14] sm:$0xf]
    %v2576 = vld [vmem:[%s10 + $0x18] sm:$0xf]
    %v2577 = vld [vmem:[%s10 + $0x1c] sm:$0xf]
    %v2578 = vld [vmem:[%s10 + $0x20] sm:$0xf]
    %v2579 = vld [vmem:[%s10 + $0x24] sm:$0xf]
    %v2580 = vld [vmem:[%s10 + $0x28] sm:$0xf]
    %v2581 = vld [vmem:[%s10 + $0x2c] sm:$0xf]
    %v2582 = vld [vmem:[%s10 + $0x30] sm:$0xf]
    %v2583 = vld [vmem:[%s10 + $0x34] sm:$0xf]
    %v2584 = vld [vmem:[%s10 + $0x38] sm:$0xf]
    %v2585 = vld [vmem:[%s10 + $0x3c] sm:$0xf]
    %v2586 = vld [vmem:[%s10 + $0x40] sm:$0xf]
    %v2587 = vld [vmem:[%s10 + $0x44] sm:$0xf]
    %v2588 = vld [vmem:[%s10 + $0x48] sm:$0xf]
    %v2589 = vld [vmem:[%s10 + $0x4c] sm:$0xf]
    %v2590 = vld [vmem:[%s10 + $0x50] sm:$0xf]
    %v2591 = vld [vmem:[%s10 + $0x54] sm:$0xf]
    %v2592 = vld [vmem:[%s10 + $0x58] sm:$0xf]
    %v2593 = vld [vmem:[%s10 + $0x5c] sm:$0xf]
    %v2594 = vld [vmem:[%s10 + $0x60] sm:$0xf]
    %v2595 = vld [vmem:[%s10 + $0x64] sm:$0xf]
    %v2596 = vld [vmem:[%s10 + $0x68] sm:$0xf]
    %v2597 = vld [vmem:[%s10 + $0x6c] sm:$0xf]
    %v2598 = vld [vmem:[%s10 + $0x70] sm:$0xf]
    %v2599 = vld [vmem:[%s10 + $0x74] sm:$0xf]
    %v2600 = vld [vmem:[%s10 + $0x78] sm:$0xf]
    %v2601 = vld [vmem:[%s10 + $0x7c] sm:$0xf]
    %v2602 = vld [vmem:[%s11] sm:$0x1]
    %v2604 = vlaneseq
    %v2605 = vshrl.u32 %v2604, 7
    %v2606 = vsub.s32 0, %v2605
    %v2607 = vrot.slane %v2602, %v2606
    %v2641 = vunpack.c.l.b16 %v2570
    %v2642 = vunpack.c.l.b16 %v2571
    %v2643 = vunpack.c.l.b16 %v2572
    %v2644 = vunpack.c.l.b16 %v2573
    %v2645 = vunpack.c.l.b16 %v2574
    %v2646 = vunpack.c.l.b16 %v2575
    %v2647 = vunpack.c.l.b16 %v2576
    %v2648 = vunpack.c.l.b16 %v2577
    %v2649 = vunpack.c.l.b16 %v2578
    %v2650 = vunpack.c.l.b16 %v2579
    %v2651 = vunpack.c.l.b16 %v2580
    %v2652 = vunpack.c.l.b16 %v2581
    %v2653 = vunpack.c.l.b16 %v2582
    %v2654 = vunpack.c.l.b16 %v2583
    %v2655 = vunpack.c.l.b16 %v2584
    %v2656 = vunpack.c.l.b16 %v2585
    %v2657 = vunpack.c.l.b16 %v2586
    %v2658 = vunpack.c.l.b16 %v2587
    %v2659 = vunpack.c.l.b16 %v2588
    %v2660 = vunpack.c.l.b16 %v2589
    %v2661 = vunpack.c.l.b16 %v2590
    %v2662 = vunpack.c.l.b16 %v2591
    %v2663 = vunpack.c.l.b16 %v2592
    %v2664 = vunpack.c.l.b16 %v2593
    %v2665 = vunpack.c.l.b16 %v2594
    %v2666 = vunpack.c.l.b16 %v2595
    %v2667 = vunpack.c.l.b16 %v2596
    %v2668 = vunpack.c.l.b16 %v2597
    %v2669 = vunpack.c.l.b16 %v2598
    %v2670 = vunpack.c.l.b16 %v2599
    %v2671 = vunpack.c.l.b16 %v2600
    %v2672 = vunpack.c.l.b16 %v2601
    %v2673 = vpack.c.b16 %v2642, %v2641
    %v2674 = vpack.c.b16 %v2644, %v2643
    %v2675 = vpack.c.b16 %v2646, %v2645
    %v2676 = vpack.c.b16 %v2648, %v2647
    %v2677 = vpack.c.b16 %v2650, %v2649
    %v2678 = vpack.c.b16 %v2652, %v2651
    %v2679 = vpack.c.b16 %v2654, %v2653
    %v2680 = vpack.c.b16 %v2656, %v2655
    %v2681 = vpack.c.b16 %v2658, %v2657
    %v2682 = vpack.c.b16 %v2660, %v2659
    %v2683 = vpack.c.b16 %v2662, %v2661
    %v2684 = vpack.c.b16 %v2664, %v2663
    %v2685 = vpack.c.b16 %v2666, %v2665
    %v2686 = vpack.c.b16 %v2668, %v2667
    %v2687 = vpack.c.b16 %v2670, %v2669
    %v2688 = vpack.c.b16 %v2672, %v2671
    %2705 = vmatprep.subr.bf16.mxu0 0
    %2706 = vmatpush1.bf16.msra.mxu0 %v2673
    %2707 = vmatprep.subr.bf16.mxu0 0
    %2708 = vmatpush1.bf16.msra.mxu0 %v2674
    %2709 = vmatprep.subr.bf16.mxu0 0
    %2710 = vmatpush1.bf16.msra.mxu0 %v2675
    %2711 = vmatprep.subr.bf16.mxu0 0
    %2712 = vmatpush1.bf16.msra.mxu0 %v2676
    %2713 = vmatprep.subr.bf16.mxu0 0
    %2714 = vmatpush1.bf16.msra.mxu0 %v2677
    %2715 = vmatprep.subr.bf16.mxu0 0
    %2716 = vmatpush1.bf16.msra.mxu0 %v2678
    %2717 = vmatprep.subr.bf16.mxu0 0
    %2718 = vmatpush1.bf16.msra.mxu0 %v2679
    %2719 = vmatprep.subr.bf16.mxu0 0
    %2720 = vmatpush1.bf16.msra.mxu0 %v2680
    %2721 = vmatprep.subr.bf16.mxu0 0
    %2722 = vmatpush1.bf16.msra.mxu0 %v2681
    %2723 = vmatprep.subr.bf16.mxu0 0
    %2724 = vmatpush1.bf16.msra.mxu0 %v2682
    %2725 = vmatprep.subr.bf16.mxu0 0
    %2726 = vmatpush1.bf16.msra.mxu0 %v2683
    %2727 = vmatprep.subr.bf16.mxu0 0
    %2728 = vmatpush1.bf16.msra.mxu0 %v2684
    %2729 = vmatprep.subr.bf16.mxu0 0
    %2730 = vmatpush1.bf16.msra.mxu0 %v2685
    %2731 = vmatprep.subr.bf16.mxu0 0
    %2732 = vmatpush1.bf16.msra.mxu0 %v2686
    %2733 = vmatprep.subr.bf16.mxu0 0
    %2734 = vmatpush1.bf16.msra.mxu0 %v2687
    %2735 = vmatprep.subr.bf16.mxu0 0
    %2736 = vmatpush1.bf16.msra.mxu0 %v2688
    %2737 = vmatprep.mubr.bf16.mxu0 %v2569
    %2738 = vmatmul.mubr.bf16.gmra.mrb[0].mxu0 %v2568
    %v2739 = vpop.f32.mrb[0].mxu0
    %v2740 = vadd.f32 %v2607, %v2739
    %v2741 = vpop.f32.mrb[0].mxu0
    %v2742 = vpop.f32.mrb[0].mxu0
    %v2743 = vadd.f32 %v2607, %v2742
    %v2744 = vpop.f32.mrb[0].mxu0
    %2745 = vdwg.mxu0
    %v2746 = vadd.f32 %v2411, %v2740
    %v2747 = vadd.f32 %v2412, %v2743
    %2748 = vst.msk [vmem:[#allocation2] sm:$0xff] %vm47, %v2746
    %2749 = vst.msk [vmem:[#allocation2 + $0x8] sm:$0xff] %vm47, %v2747
    // Predicated region
    $region50: #{tpu_custom_call.1} parent=1 // pred_check
      _
    $region51: #{tpu_custom_call.1} parent=1 // pred_check_branch
      %2751 = sbr.rel (0) target = $region53
    $region52: #{tpu_custom_call.1} parent=1 // pred_region
      %s2753 = ssub.s32 256, 256
      %2754 = vsyncadd [#allocation3], %s2753
      %s2755 = sshll.u32 [#allocation2], 4
      %s2756 = int_to_ptr.vmem [resolvable:$true] %s2755
      %2761 = dma.vmem_to_hbm [thread:$0]  %s2756, 256, %s12, [#allocation3], 128, 128, 8
    $region53: #{tpu_custom_call.1} parent=1 // pred_fallthru
      _
    // Predicated region
    $region54: #{tpu_custom_call.1} parent=1 // pred_check
      _
    $region55: #{tpu_custom_call.1} parent=1 // pred_check_branch
      %2763 = sbr.rel (0) target = $region57
    $region56: #{tpu_custom_call.1} parent=1 // pred_region
      %2764 = dma.done [#allocation3], 256
    $region57: #{tpu_custom_call.1} parent=1 // pred_fallthru
      _
    %2765 = vsyncpa [#allocation3], 1

</llo_original>
